<compile_context>
chip_gen: v7x
topology: tpu7x:2x2x1
jax: 0.10.0
libtpu: 0.0.40
codegen_flags: <defaults>
</compile_context>

<pallas_src>
import functools

import jax
import jax.numpy as jnp
from jax.experimental import pallas as pl
from jax.experimental.pallas import tpu as pltpu


def gat_kernel(ft_ref, a1_ref, a2_ref, adj_ref, out_ref,
               m_sc, l_sc, acc_sc, *, alpha, num_heads, out_dim):
    """One (dst tile, src block) step, all heads fused, flash-style softmax.

    ft_ref : (t_src, H*D) bf16   projected src features (this src block)
    a1_ref : (H, t_src)  f32     src attention scores, lane-dense
    a2_ref : (t_dst, H)  f32     dst attention scores (this dst tile)
    adj_ref: (t_dst, t_src) int8 adjacency block adj[dst, src]
    out_ref: (t_dst, H*D) f32    lane-dense output slab (resident across src)
    m_sc   : (t_dst, H)  f32     running max per head
    l_sc   : (t_dst, H)  f32     running softmax denominator per head
    acc_sc : (t_dst, H*D) f32    running weighted feature sums
    """
    H, D = num_heads, out_dim
    j = pl.program_id(1)
    neg = jnp.float32(-1e30)

    @pl.when(j == 0)
    def _():
        # Finite sentinel (== mask value) avoids any inf-inf NaN risk.
        m_sc[...] = jnp.full_like(m_sc, neg)
        l_sc[...] = jnp.zeros_like(l_sc)
        acc_sc[...] = jnp.zeros_like(acc_sc)

    # Additive mask bias computed ONCE per tile, reused by every head.
    adjf = adj_ref[...].astype(jnp.float32)          # i8 -> f32 widen, 1 pass
    bias = jnp.where(adjf > 0.0, jnp.float32(0.0), neg)   # (T, S)

    a1 = a1_ref[...]                                  # (H, S) lane-dense
    a2 = a2_ref[...]                                  # (T, H)
    ft = ft_ref[...]                                  # (S, H*D) bf16

    for h in range(H):                                # static unroll over heads
        # e[dst, src] = leaky_relu(a1[src] + a2[dst]); max-form (0 < alpha < 1).
        e = a2[:, h:h + 1] + a1[h:h + 1, :]           # (T, S)
        e = jnp.maximum(e, alpha * e)
        masked = e + bias                             # (T, S)

        # Online (flash-style) softmax update for this src block.
        m_prev = m_sc[:, h:h + 1]                                     # (T, 1)
        m_new = jnp.maximum(m_prev, jnp.max(masked, axis=-1, keepdims=True))
        corr = jnp.exp(m_prev - m_new)                                # (T, 1)
        p = jnp.exp(masked - m_new)                                   # (T, S)

        l_sc[:, h:h + 1] = corr * l_sc[:, h:h + 1] + jnp.sum(
            p, axis=-1, keepdims=True)
        # Message passing on the MXU: bf16 operands, f32 accumulation.
        acc_sc[:, h * D:(h + 1) * D] = (
            corr * acc_sc[:, h * D:(h + 1) * D]
            + jnp.dot(p.astype(jnp.bfloat16), ft[:, h * D:(h + 1) * D],
                      preferred_element_type=jnp.float32))
        m_sc[:, h:h + 1] = m_new

    @pl.when(j == pl.num_programs(1) - 1)
    def _():
        # Deferred normalization: one EUP reciprocal, guard against denom=0.
        inv_l = pl.reciprocal(jnp.maximum(l_sc[...], jnp.float32(1e-30)),
                              approx=True)            # (T, H)
        for h in range(H):
            out_ref[:, h * D:(h + 1) * D] = (
                acc_sc[:, h * D:(h + 1) * D] * inv_l[:, h:h + 1]
            ).astype(out_ref.dtype)


def gat_forward(x, w, attn_l, attn_r, adj, *, alpha, t_dst=None, t_src=None):
    """x: (N, C), w: (H, C, D), attn_l/attn_r: (H, D), adj: (N, N) -> (N, H, D)."""
    N, C = x.shape
    H, _, D = w.shape
    HD = H * D

    if t_dst is None:
        t_dst = min(N, 128)
    if t_src is None:
        t_src = min(N, 512)
    assert N % t_dst == 0, (N, t_dst)
    assert N % t_src == 0, (N, t_src)
    # Lane-dim constraint: src blocks must be full-width or a multiple of 128.
    assert t_src == N or t_src % 128 == 0, t_src

    # ---- Hoisted projection + attention scores (plain XLA, runs once) ----
    w_flat = jnp.transpose(w, (1, 0, 2)).reshape(C, HD)          # (C, H*D)
    ft_f32 = jnp.dot(x, w_flat)                                  # (N, H*D) f32
    ft3 = ft_f32.reshape(N, H, D)
    a1 = jnp.einsum("nhd,hd->hn", ft3, attn_l)                   # (H, N) lane-dense
    a2 = jnp.einsum("nhd,hd->nh", ft3, attn_r)                   # (N, H)
    ft_bf = ft_f32.astype(jnp.bfloat16)                          # (N, H*D) bf16

    adj_i8 = (adj > 0).astype(jnp.int8)                          # minimal HBM traffic

    out_flat = pl.pallas_call(
        functools.partial(gat_kernel, alpha=alpha, num_heads=H, out_dim=D),
        out_shape=jax.ShapeDtypeStruct((N, HD), jnp.float32),
        grid_spec=pltpu.PrefetchScalarGridSpec(
            num_scalar_prefetch=0,
            grid=(N // t_dst, N // t_src),                       # (dst, src-reduction)
            in_specs=[
                pl.BlockSpec((t_src, HD), lambda i, j: (j, 0)),  # ft src block
                pl.BlockSpec((H, t_src), lambda i, j: (0, j)),   # a1 (lane-dense)
                pl.BlockSpec((t_dst, H), lambda i, j: (i, 0)),   # a2 dst tile
                pl.BlockSpec((t_dst, t_src), lambda i, j: (i, j)),  # adj block
            ],
            out_specs=pl.BlockSpec((t_dst, HD), lambda i, j: (i, 0)),
            scratch_shapes=[
                pltpu.VMEM((t_dst, H), jnp.float32),             # running max
                pltpu.VMEM((t_dst, H), jnp.float32),             # running denom
                pltpu.VMEM((t_dst, HD), jnp.float32),            # accumulator
            ],
        ),
        compiler_params=pltpu.CompilerParams(
            dimension_semantics=("parallel", "arbitrary"),
            vmem_limit_bytes=48 * 1024 * 1024,                   # headroom on v7x
        ),
    )(ft_bf, a1, a2, adj_i8)

    # Free reshape (no transpose): column h*D+d of out_flat is head h, dim d.
    return out_flat.reshape(N, H, D)


def gat_reference(x, w, attn_l, attn_r, adj, *, alpha):
    """Pure-JAX f32 reference (module semantics) for verification."""
    ft = jnp.einsum("nc,hcd->hnd", x, w)                         # (H, N, D)
    a1 = jnp.sum(ft * attn_l[:, None, :], axis=-1)               # (H, N) per-src
    a2 = jnp.sum(ft * attn_r[:, None, :], axis=-1)               # (H, N) per-dst
    e = a2[:, :, None] + a1[:, None, :]                          # (H, dst, src)
    e = jnp.where(e > 0, e, alpha * e)
    masked = jnp.where(adj[None] > 0, e, -1e30)
    m = jnp.max(masked, axis=-1, keepdims=True)
    p = jnp.exp(masked - m) * adj[None]
    attn = p / jnp.sum(p, axis=-1, keepdims=True)
    out = jnp.einsum("hvs,hsd->hvd", attn, ft)
    return jnp.transpose(out, (1, 0, 2))


if __name__ == "__main__":
    # Small deterministic setup.  N=256 with t_src=128 exercises both grid
    # axes (2 dst tiles x 2 src blocks) and the online-softmax correction.
    N = 256         # number of graph nodes
    in_dim = 32
    out_dim = 32
    num_heads = 4   # H*D = 128 -> lane-dense output slab
    alpha = 0.2     # LeakyReLU negative slope

    key = jax.random.PRNGKey(0)
    k_x, k_w, k_al, k_ar, k_adj = jax.random.split(key, 5)

    # Node features
    x = jax.random.normal(k_x, (N, in_dim), dtype=jnp.float32)

    # Parameters (deterministic synthetic init, xavier_normal-style gain=1.414)
    fc_std = 1.414 * jnp.sqrt(2.0 / (in_dim + num_heads * out_dim))
    w = fc_std * jax.random.normal(
        k_w, (num_heads, in_dim, out_dim), dtype=jnp.float32)
    attn_std = 1.414 * jnp.sqrt(2.0 / (num_heads * out_dim + out_dim))
    attn_l = attn_std * jax.random.normal(
        k_al, (num_heads, out_dim), dtype=jnp.float32)
    attn_r = attn_std * jax.random.normal(
        k_ar, (num_heads, out_dim), dtype=jnp.float32)

    # Random sparse graph as dense adjacency mask (adj[dst, src]), with
    # self-loops so every node has at least one incoming edge.
    adj = jax.random.bernoulli(k_adj, 0.25, (N, N)).astype(jnp.float32)
    adj = jnp.maximum(adj, jnp.eye(N, dtype=jnp.float32))

    out = gat_forward(x, w, attn_l, attn_r, adj, alpha=alpha,
                      t_dst=128, t_src=128)
    out = jax.block_until_ready(out)
    assert out.shape == (N, num_heads, out_dim), out.shape

    ref = gat_reference(x, w, attn_l, attn_r, adj, alpha=alpha)
    # Tolerance loosened vs the pure-f32 path because MXU operands (p, ft) are
    # bf16 (accumulation stays f32 via preferred_element_type).
    max_err = float(jnp.max(jnp.abs(out - ref)))
    assert jnp.allclose(out, ref, atol=5e-2, rtol=5e-2), max_err

    print("KERNEL_OK")
</pallas_src>

<mosaic_0001>
module attributes {stable_mosaic.version = 11 : i64} {
  func.func @gat_kernel(%arg0: i32, %arg1: i32, %arg2: memref<128x128xbf16, #tpu.memory_space<vmem>>, %arg3: memref<4x128xf32, #tpu.memory_space<vmem>>, %arg4: memref<128x4xf32, #tpu.memory_space<vmem>>, %arg5: memref<128x128xi8, #tpu.memory_space<vmem>>, %arg6: memref<128x128xf32, #tpu.memory_space<vmem>>, %arg7: memref<128x4xf32, #tpu.memory_space<vmem>>, %arg8: memref<128x4xf32, #tpu.memory_space<vmem>>, %arg9: memref<128x128xf32, #tpu.memory_space<vmem>>) attributes {dimension_semantics = [#tpu.dimension_semantics<parallel>, #tpu.dimension_semantics<arbitrary>], iteration_bounds = array<i64: 2, 2>, scalar_prefetch = 0 : i64, scratch_operands = 3 : i64, tpu.core_type = #tpu.core_type<tc>, window_params = [{transform_indices = @transform_0, window_bounds = array<i64: 128, 128>}, {transform_indices = @transform_1, window_bounds = array<i64: 4, 128>}, {transform_indices = @transform_2, window_bounds = array<i64: 128, 4>}, {transform_indices = @transform_3, window_bounds = array<i64: 128, 128>}, {transform_indices = @transform_4, window_bounds = array<i64: 128, 128>}]} {
    %c0_i32 = arith.constant 0 : i32
    %0 = arith.cmpi eq, %arg1, %c0_i32 : i32
    %1 = arith.extui %0 : i1 to i32
    %cst = arith.constant -1.000000e+30 : f32
    %c0_i32_0 = arith.constant 0 : i32
    %2 = arith.cmpi ne, %1, %c0_i32_0 : i32
    scf.if %2 {
      %148 = vector.broadcast %cst : f32 to vector<128x4xf32>
      %c0_70 = arith.constant 0 : index
      %c0_71 = arith.constant 0 : index
      %149 = vector.load %arg7[%c0_70, %c0_71] : memref<128x4xf32, #tpu.memory_space<vmem>>, vector<128x4xf32>
      tpu.vector_store %arg7[%c0_70, %c0_71], %148 {strides = array<i32>} : memref<128x4xf32, #tpu.memory_space<vmem>>, vector<128x4xf32>,
      %cst_72 = arith.constant 0.000000e+00 : f32
      %150 = vector.broadcast %cst_72 : f32 to vector<128x4xf32>
      %c0_73 = arith.constant 0 : index
      %c0_74 = arith.constant 0 : index
      %151 = vector.load %arg8[%c0_73, %c0_74] : memref<128x4xf32, #tpu.memory_space<vmem>>, vector<128x4xf32>
      tpu.vector_store %arg8[%c0_73, %c0_74], %150 {strides = array<i32>} : memref<128x4xf32, #tpu.memory_space<vmem>>, vector<128x4xf32>,
      %cst_75 = arith.constant 0.000000e+00 : f32
      %152 = vector.broadcast %cst_75 : f32 to vector<128x128xf32>
      %c0_76 = arith.constant 0 : index
      %c0_77 = arith.constant 0 : index
      %153 = vector.load %arg9[%c0_76, %c0_77] : memref<128x128xf32, #tpu.memory_space<vmem>>, vector<128x128xf32>
      tpu.vector_store %arg9[%c0_76, %c0_77], %152 {strides = array<i32>} : memref<128x128xf32, #tpu.memory_space<vmem>>, vector<128x128xf32>,
    } else {
    }
    %c0 = arith.constant 0 : index
    %c0_1 = arith.constant 0 : index
    %3 = vector.load %arg5[%c0, %c0_1] : memref<128x128xi8, #tpu.memory_space<vmem>>, vector<128x128xi8>
    %4 = arith.sitofp %3 : vector<128x128xi8> to vector<128x128xf32>
    %cst_2 = arith.constant 0.000000e+00 : f32
    %5 = vector.broadcast %cst_2 : f32 to vector<128x128xf32>
    %6 = arith.cmpf ogt, %4, %5 : vector<128x128xf32>
    %cst_3 = arith.constant 0.000000e+00 : f32
    %cst_4 = arith.constant -1.000000e+30 : f32
    %7 = vector.broadcast %cst_3 : f32 to vector<128x128xf32>
    %8 = vector.broadcast %cst_4 : f32 to vector<128x128xf32>
    %9 = arith.select %6, %7, %8 : vector<128x128xi1>, vector<128x128xf32>
    %c0_5 = arith.constant 0 : index
    %c0_6 = arith.constant 0 : index
    %10 = vector.load %arg3[%c0_5, %c0_6] : memref<4x128xf32, #tpu.memory_space<vmem>>, vector<4x128xf32>
    %c0_7 = arith.constant 0 : index
    %c0_8 = arith.constant 0 : index
    %11 = vector.load %arg4[%c0_7, %c0_8] : memref<128x4xf32, #tpu.memory_space<vmem>>, vector<128x4xf32>
    %c0_9 = arith.constant 0 : index
    %c0_10 = arith.constant 0 : index
    %12 = vector.load %arg2[%c0_9, %c0_10] : memref<128x128xbf16, #tpu.memory_space<vmem>>, vector<128x128xbf16>
    %13 = vector.extract_strided_slice %11 {offsets = [0, 0], sizes = [128, 1], strides = [1, 1]} : vector<128x4xf32> to vector<128x1xf32>
    %14 = vector.extract_strided_slice %10 {offsets = [0, 0], sizes = [1, 128], strides = [1, 1]} : vector<4x128xf32> to vector<1x128xf32>
    %15 = vector.broadcast %13 : vector<128x1xf32> to vector<128x128xf32>
    %16 = vector.broadcast %14 : vector<1x128xf32> to vector<128x128xf32>
    %17 = arith.addf %15, %16 : vector<128x128xf32>
    %cst_11 = arith.constant 2.000000e-01 : f32
    %18 = vector.broadcast %cst_11 : f32 to vector<128x128xf32>
    %19 = arith.mulf %18, %17 : vector<128x128xf32>
    %20 = arith.maximumf %17, %19 : vector<128x128xf32>
    %21 = arith.addf %20, %9 : vector<128x128xf32>
    %c0_12 = arith.constant 0 : index
    %c0_13 = arith.constant 0 : index
    %22 = vector.load %arg7[%c0_12, %c0_13] : memref<128x4xf32, #tpu.memory_space<vmem>>, vector<128x1xf32>
    %cst_14 = arith.constant dense<0xFF800000> : vector<128xf32>
    %23 = vector.multi_reduction <maximumf>, %21, %cst_14 [1] : vector<128x128xf32> to vector<128xf32>
    %24 = vector.shape_cast %23 : vector<128xf32> to vector<128x1xf32>
    %25 = arith.maximumf %22, %24 : vector<128x1xf32>
    %26 = arith.subf %22, %25 : vector<128x1xf32>
    %27 = math.exp %26 : vector<128x1xf32>
    %28 = vector.broadcast %25 : vector<128x1xf32> to vector<128x128xf32>
    %29 = arith.subf %21, %28 : vector<128x128xf32>
    %30 = math.exp %29 : vector<128x128xf32>
    %c0_15 = arith.constant 0 : index
    %c0_16 = arith.constant 0 : index
    %31 = vector.load %arg8[%c0_15, %c0_16] : memref<128x4xf32, #tpu.memory_space<vmem>>, vector<128x1xf32>
    %32 = arith.mulf %27, %31 : vector<128x1xf32>
    %cst_17 = arith.constant dense<0.000000e+00> : vector<128xf32>
    %33 = vector.multi_reduction <add>, %30, %cst_17 [1] : vector<128x128xf32> to vector<128xf32>
    %34 = vector.shape_cast %33 : vector<128xf32> to vector<128x1xf32>
    %35 = arith.addf %32, %34 : vector<128x1xf32>
    %c0_18 = arith.constant 0 : index
    %c0_19 = arith.constant 0 : index
    %36 = vector.load %arg8[%c0_18, %c0_19] : memref<128x4xf32, #tpu.memory_space<vmem>>, vector<128x1xf32>
    tpu.vector_store %arg8[%c0_18, %c0_19], %35 {strides = array<i32>} : memref<128x4xf32, #tpu.memory_space<vmem>>, vector<128x1xf32>,
    %c0_20 = arith.constant 0 : index
    %c0_21 = arith.constant 0 : index
    %37 = vector.load %arg9[%c0_20, %c0_21] : memref<128x128xf32, #tpu.memory_space<vmem>>, vector<128x32xf32>
    %38 = vector.broadcast %27 : vector<128x1xf32> to vector<128x32xf32>
    %39 = arith.mulf %38, %37 : vector<128x32xf32>
    %40 = arith.truncf %30 : vector<128x128xf32> to vector<128x128xbf16>
    %41 = vector.extract_strided_slice %12 {offsets = [0, 0], sizes = [128, 32], strides = [1, 1]} : vector<128x128xbf16> to vector<128x32xbf16>
    %cst_22 = arith.constant dense<0.000000e+00> : vector<128x32xf32>
    %42 = tpu.matmul %40, %41, %cst_22 {dimension_numbers = #tpu.dot_dimension_numbers<[1], [0], [0], [1], [0, 0, 1, 1], [], []>} : vector<128x128xbf16>, vector<128x32xbf16>, vector<128x32xf32> -> vector<128x32xf32>
    %43 = arith.addf %39, %42 : vector<128x32xf32>
    %c0_23 = arith.constant 0 : index
    %c0_24 = arith.constant 0 : index
    %44 = vector.load %arg9[%c0_23, %c0_24] : memref<128x128xf32, #tpu.memory_space<vmem>>, vector<128x32xf32>
    tpu.vector_store %arg9[%c0_23, %c0_24], %43 {strides = array<i32>} : memref<128x128xf32, #tpu.memory_space<vmem>>, vector<128x32xf32>,
    %c0_25 = arith.constant 0 : index
    %c0_26 = arith.constant 0 : index
    %45 = vector.load %arg7[%c0_25, %c0_26] : memref<128x4xf32, #tpu.memory_space<vmem>>, vector<128x1xf32>
    tpu.vector_store %arg7[%c0_25, %c0_26], %25 {strides = array<i32>} : memref<128x4xf32, #tpu.memory_space<vmem>>, vector<128x1xf32>,
    %46 = vector.extract_strided_slice %11 {offsets = [0, 1], sizes = [128, 1], strides = [1, 1]} : vector<128x4xf32> to vector<128x1xf32>
    %47 = vector.extract_strided_slice %10 {offsets = [1, 0], sizes = [1, 128], strides = [1, 1]} : vector<4x128xf32> to vector<1x128xf32>
    %48 = vector.broadcast %46 : vector<128x1xf32> to vector<128x128xf32>
    %49 = vector.broadcast %47 : vector<1x128xf32> to vector<128x128xf32>
    %50 = arith.addf %48, %49 : vector<128x128xf32>
    %cst_27 = arith.constant 2.000000e-01 : f32
    %51 = vector.broadcast %cst_27 : f32 to vector<128x128xf32>
    %52 = arith.mulf %51, %50 : vector<128x128xf32>
    %53 = arith.maximumf %50, %52 : vector<128x128xf32>
    %54 = arith.addf %53, %9 : vector<128x128xf32>
    %c0_28 = arith.constant 0 : index
    %c1 = arith.constant 1 : index
    %55 = vector.load %arg7[%c0_28, %c1] : memref<128x4xf32, #tpu.memory_space<vmem>>, vector<128x1xf32>
    %cst_29 = arith.constant dense<0xFF800000> : vector<128xf32>
    %56 = vector.multi_reduction <maximumf>, %54, %cst_29 [1] : vector<128x128xf32> to vector<128xf32>
    %57 = vector.shape_cast %56 : vector<128xf32> to vector<128x1xf32>
    %58 = arith.maximumf %55, %57 : vector<128x1xf32>
    %59 = arith.subf %55, %58 : vector<128x1xf32>
    %60 = math.exp %59 : vector<128x1xf32>
    %61 = vector.broadcast %58 : vector<128x1xf32> to vector<128x128xf32>
    %62 = arith.subf %54, %61 : vector<128x128xf32>
    %63 = math.exp %62 : vector<128x128xf32>
    %c0_30 = arith.constant 0 : index
    %c1_31 = arith.constant 1 : index
    %64 = vector.load %arg8[%c0_30, %c1_31] : memref<128x4xf32, #tpu.memory_space<vmem>>, vector<128x1xf32>
    %65 = arith.mulf %60, %64 : vector<128x1xf32>
    %cst_32 = arith.constant dense<0.000000e+00> : vector<128xf32>
    %66 = vector.multi_reduction <add>, %63, %cst_32 [1] : vector<128x128xf32> to vector<128xf32>
    %67 = vector.shape_cast %66 : vector<128xf32> to vector<128x1xf32>
    %68 = arith.addf %65, %67 : vector<128x1xf32>
    %c0_33 = arith.constant 0 : index
    %c1_34 = arith.constant 1 : index
    %69 = vector.load %arg8[%c0_33, %c1_34] : memref<128x4xf32, #tpu.memory_space<vmem>>, vector<128x1xf32>
    tpu.vector_store %arg8[%c0_33, %c1_34], %68 {strides = array<i32>} : memref<128x4xf32, #tpu.memory_space<vmem>>, vector<128x1xf32>,
    %c0_35 = arith.constant 0 : index
    %c32 = arith.constant 32 : index
    %70 = vector.load %arg9[%c0_35, %c32] : memref<128x128xf32, #tpu.memory_space<vmem>>, vector<128x32xf32>
    %71 = vector.broadcast %60 : vector<128x1xf32> to vector<128x32xf32>
    %72 = arith.mulf %71, %70 : vector<128x32xf32>
    %73 = arith.truncf %63 : vector<128x128xf32> to vector<128x128xbf16>
    %74 = vector.extract_strided_slice %12 {offsets = [0, 32], sizes = [128, 32], strides = [1, 1]} : vector<128x128xbf16> to vector<128x32xbf16>
    %cst_36 = arith.constant dense<0.000000e+00> : vector<128x32xf32>
    %75 = tpu.matmul %73, %74, %cst_36 {dimension_numbers = #tpu.dot_dimension_numbers<[1], [0], [0], [1], [0, 0, 1, 1], [], []>} : vector<128x128xbf16>, vector<128x32xbf16>, vector<128x32xf32> -> vector<128x32xf32>
    %76 = arith.addf %72, %75 : vector<128x32xf32>
    %c0_37 = arith.constant 0 : index
    %c32_38 = arith.constant 32 : index
    %77 = vector.load %arg9[%c0_37, %c32_38] : memref<128x128xf32, #tpu.memory_space<vmem>>, vector<128x32xf32>
    tpu.vector_store %arg9[%c0_37, %c32_38], %76 {strides = array<i32>} : memref<128x128xf32, #tpu.memory_space<vmem>>, vector<128x32xf32>,
    %c0_39 = arith.constant 0 : index
    %c1_40 = arith.constant 1 : index
    %78 = vector.load %arg7[%c0_39, %c1_40] : memref<128x4xf32, #tpu.memory_space<vmem>>, vector<128x1xf32>
    tpu.vector_store %arg7[%c0_39, %c1_40], %58 {strides = array<i32>} : memref<128x4xf32, #tpu.memory_space<vmem>>, vector<128x1xf32>,
    %79 = vector.extract_strided_slice %11 {offsets = [0, 2], sizes = [128, 1], strides = [1, 1]} : vector<128x4xf32> to vector<128x1xf32>
    %80 = vector.extract_strided_slice %10 {offsets = [2, 0], sizes = [1, 128], strides = [1, 1]} : vector<4x128xf32> to vector<1x128xf32>
    %81 = vector.broadcast %79 : vector<128x1xf32> to vector<128x128xf32>
    %82 = vector.broadcast %80 : vector<1x128xf32> to vector<128x128xf32>
    %83 = arith.addf %81, %82 : vector<128x128xf32>
    %cst_41 = arith.constant 2.000000e-01 : f32
    %84 = vector.broadcast %cst_41 : f32 to vector<128x128xf32>
    %85 = arith.mulf %84, %83 : vector<128x128xf32>
    %86 = arith.maximumf %83, %85 : vector<128x128xf32>
    %87 = arith.addf %86, %9 : vector<128x128xf32>
    %c0_42 = arith.constant 0 : index
    %c2 = arith.constant 2 : index
    %88 = vector.load %arg7[%c0_42, %c2] : memref<128x4xf32, #tpu.memory_space<vmem>>, vector<128x1xf32>
    %cst_43 = arith.constant dense<0xFF800000> : vector<128xf32>
    %89 = vector.multi_reduction <maximumf>, %87, %cst_43 [1] : vector<128x128xf32> to vector<128xf32>
    %90 = vector.shape_cast %89 : vector<128xf32> to vector<128x1xf32>
    %91 = arith.maximumf %88, %90 : vector<128x1xf32>
    %92 = arith.subf %88, %91 : vector<128x1xf32>
    %93 = math.exp %92 : vector<128x1xf32>
    %94 = vector.broadcast %91 : vector<128x1xf32> to vector<128x128xf32>
    %95 = arith.subf %87, %94 : vector<128x128xf32>
    %96 = math.exp %95 : vector<128x128xf32>
    %c0_44 = arith.constant 0 : index
    %c2_45 = arith.constant 2 : index
    %97 = vector.load %arg8[%c0_44, %c2_45] : memref<128x4xf32, #tpu.memory_space<vmem>>, vector<128x1xf32>
    %98 = arith.mulf %93, %97 : vector<128x1xf32>
    %cst_46 = arith.constant dense<0.000000e+00> : vector<128xf32>
    %99 = vector.multi_reduction <add>, %96, %cst_46 [1] : vector<128x128xf32> to vector<128xf32>
    %100 = vector.shape_cast %99 : vector<128xf32> to vector<128x1xf32>
    %101 = arith.addf %98, %100 : vector<128x1xf32>
    %c0_47 = arith.constant 0 : index
    %c2_48 = arith.constant 2 : index
    %102 = vector.load %arg8[%c0_47, %c2_48] : memref<128x4xf32, #tpu.memory_space<vmem>>, vector<128x1xf32>
    tpu.vector_store %arg8[%c0_47, %c2_48], %101 {strides = array<i32>} : memref<128x4xf32, #tpu.memory_space<vmem>>, vector<128x1xf32>,
    %c0_49 = arith.constant 0 : index
    %c64 = arith.constant 64 : index
    %103 = vector.load %arg9[%c0_49, %c64] : memref<128x128xf32, #tpu.memory_space<vmem>>, vector<128x32xf32>
    %104 = vector.broadcast %93 : vector<128x1xf32> to vector<128x32xf32>
    %105 = arith.mulf %104, %103 : vector<128x32xf32>
    %106 = arith.truncf %96 : vector<128x128xf32> to vector<128x128xbf16>
    %107 = vector.extract_strided_slice %12 {offsets = [0, 64], sizes = [128, 32], strides = [1, 1]} : vector<128x128xbf16> to vector<128x32xbf16>
    %cst_50 = arith.constant dense<0.000000e+00> : vector<128x32xf32>
    %108 = tpu.matmul %106, %107, %cst_50 {dimension_numbers = #tpu.dot_dimension_numbers<[1], [0], [0], [1], [0, 0, 1, 1], [], []>} : vector<128x128xbf16>, vector<128x32xbf16>, vector<128x32xf32> -> vector<128x32xf32>
    %109 = arith.addf %105, %108 : vector<128x32xf32>
    %c0_51 = arith.constant 0 : index
    %c64_52 = arith.constant 64 : index
    %110 = vector.load %arg9[%c0_51, %c64_52] : memref<128x128xf32, #tpu.memory_space<vmem>>, vector<128x32xf32>
    tpu.vector_store %arg9[%c0_51, %c64_52], %109 {strides = array<i32>} : memref<128x128xf32, #tpu.memory_space<vmem>>, vector<128x32xf32>,
    %c0_53 = arith.constant 0 : index
    %c2_54 = arith.constant 2 : index
    %111 = vector.load %arg7[%c0_53, %c2_54] : memref<128x4xf32, #tpu.memory_space<vmem>>, vector<128x1xf32>
    tpu.vector_store %arg7[%c0_53, %c2_54], %91 {strides = array<i32>} : memref<128x4xf32, #tpu.memory_space<vmem>>, vector<128x1xf32>,
    %112 = vector.extract_strided_slice %11 {offsets = [0, 3], sizes = [128, 1], strides = [1, 1]} : vector<128x4xf32> to vector<128x1xf32>
    %113 = vector.extract_strided_slice %10 {offsets = [3, 0], sizes = [1, 128], strides = [1, 1]} : vector<4x128xf32> to vector<1x128xf32>
    %114 = vector.broadcast %112 : vector<128x1xf32> to vector<128x128xf32>
    %115 = vector.broadcast %113 : vector<1x128xf32> to vector<128x128xf32>
    %116 = arith.addf %114, %115 : vector<128x128xf32>
    %cst_55 = arith.constant 2.000000e-01 : f32
    %117 = vector.broadcast %cst_55 : f32 to vector<128x128xf32>
    %118 = arith.mulf %117, %116 : vector<128x128xf32>
    %119 = arith.maximumf %116, %118 : vector<128x128xf32>
    %120 = arith.addf %119, %9 : vector<128x128xf32>
    %c0_56 = arith.constant 0 : index
    %c3 = arith.constant 3 : index
    %121 = vector.load %arg7[%c0_56, %c3] : memref<128x4xf32, #tpu.memory_space<vmem>>, vector<128x1xf32>
    %cst_57 = arith.constant dense<0xFF800000> : vector<128xf32>
    %122 = vector.multi_reduction <maximumf>, %120, %cst_57 [1] : vector<128x128xf32> to vector<128xf32>
    %123 = vector.shape_cast %122 : vector<128xf32> to vector<128x1xf32>
    %124 = arith.maximumf %121, %123 : vector<128x1xf32>
    %125 = arith.subf %121, %124 : vector<128x1xf32>
    %126 = math.exp %125 : vector<128x1xf32>
    %127 = vector.broadcast %124 : vector<128x1xf32> to vector<128x128xf32>
    %128 = arith.subf %120, %127 : vector<128x128xf32>
    %129 = math.exp %128 : vector<128x128xf32>
    %c0_58 = arith.constant 0 : index
    %c3_59 = arith.constant 3 : index
    %130 = vector.load %arg8[%c0_58, %c3_59] : memref<128x4xf32, #tpu.memory_space<vmem>>, vector<128x1xf32>
    %131 = arith.mulf %126, %130 : vector<128x1xf32>
    %cst_60 = arith.constant dense<0.000000e+00> : vector<128xf32>
    %132 = vector.multi_reduction <add>, %129, %cst_60 [1] : vector<128x128xf32> to vector<128xf32>
    %133 = vector.shape_cast %132 : vector<128xf32> to vector<128x1xf32>
    %134 = arith.addf %131, %133 : vector<128x1xf32>
    %c0_61 = arith.constant 0 : index
    %c3_62 = arith.constant 3 : index
    %135 = vector.load %arg8[%c0_61, %c3_62] : memref<128x4xf32, #tpu.memory_space<vmem>>, vector<128x1xf32>
    tpu.vector_store %arg8[%c0_61, %c3_62], %134 {strides = array<i32>} : memref<128x4xf32, #tpu.memory_space<vmem>>, vector<128x1xf32>,
    %c0_63 = arith.constant 0 : index
    %c96 = arith.constant 96 : index
    %136 = vector.load %arg9[%c0_63, %c96] : memref<128x128xf32, #tpu.memory_space<vmem>>, vector<128x32xf32>
    %137 = vector.broadcast %126 : vector<128x1xf32> to vector<128x32xf32>
    %138 = arith.mulf %137, %136 : vector<128x32xf32>
    %139 = arith.truncf %129 : vector<128x128xf32> to vector<128x128xbf16>
    %140 = vector.extract_strided_slice %12 {offsets = [0, 96], sizes = [128, 32], strides = [1, 1]} : vector<128x128xbf16> to vector<128x32xbf16>
    %cst_64 = arith.constant dense<0.000000e+00> : vector<128x32xf32>
    %141 = tpu.matmul %139, %140, %cst_64 {dimension_numbers = #tpu.dot_dimension_numbers<[1], [0], [0], [1], [0, 0, 1, 1], [], []>} : vector<128x128xbf16>, vector<128x32xbf16>, vector<128x32xf32> -> vector<128x32xf32>
    %142 = arith.addf %138, %141 : vector<128x32xf32>
    %c0_65 = arith.constant 0 : index
    %c96_66 = arith.constant 96 : index
    %143 = vector.load %arg9[%c0_65, %c96_66] : memref<128x128xf32, #tpu.memory_space<vmem>>, vector<128x32xf32>
    tpu.vector_store %arg9[%c0_65, %c96_66], %142 {strides = array<i32>} : memref<128x128xf32, #tpu.memory_space<vmem>>, vector<128x32xf32>,
    %c0_67 = arith.constant 0 : index
    %c3_68 = arith.constant 3 : index
    %144 = vector.load %arg7[%c0_67, %c3_68] : memref<128x4xf32, #tpu.memory_space<vmem>>, vector<128x1xf32>
    tpu.vector_store %arg7[%c0_67, %c3_68], %124 {strides = array<i32>} : memref<128x4xf32, #tpu.memory_space<vmem>>, vector<128x1xf32>,
    %c1_i32 = arith.constant 1 : i32
    %145 = arith.cmpi eq, %arg1, %c1_i32 : i32
    %146 = arith.extui %145 : i1 to i32
    %c0_i32_69 = arith.constant 0 : i32
    %147 = arith.cmpi ne, %146, %c0_i32_69 : i32
    scf.if %147 {
      %c0_70 = arith.constant 0 : index
      %c0_71 = arith.constant 0 : index
      %148 = vector.load %arg8[%c0_70, %c0_71] : memref<128x4xf32, #tpu.memory_space<vmem>>, vector<128x4xf32>
      %cst_72 = arith.constant 1.000000e-30 : f32
      %149 = vector.broadcast %cst_72 : f32 to vector<128x4xf32>
      %150 = arith.maximumf %148, %149 : vector<128x4xf32>
      %151 = tpu.reciprocal %150 {approx = true} : vector<128x4xf32> -> vector<128x4xf32>
      %c0_73 = arith.constant 0 : index
      %c0_74 = arith.constant 0 : index
      %152 = vector.load %arg9[%c0_73, %c0_74] : memref<128x128xf32, #tpu.memory_space<vmem>>, vector<128x32xf32>
      %153 = vector.extract_strided_slice %151 {offsets = [0, 0], sizes = [128, 1], strides = [1, 1]} : vector<128x4xf32> to vector<128x1xf32>
      %154 = vector.broadcast %153 : vector<128x1xf32> to vector<128x32xf32>
      %155 = arith.mulf %152, %154 : vector<128x32xf32>
      %c0_75 = arith.constant 0 : index
      %c0_76 = arith.constant 0 : index
      %156 = vector.load %arg6[%c0_75, %c0_76] : memref<128x128xf32, #tpu.memory_space<vmem>>, vector<128x32xf32>
      tpu.vector_store %arg6[%c0_75, %c0_76], %155 {strides = array<i32>} : memref<128x128xf32, #tpu.memory_space<vmem>>, vector<128x32xf32>,
      %c0_77 = arith.constant 0 : index
      %c32_78 = arith.constant 32 : index
      %157 = vector.load %arg9[%c0_77, %c32_78] : memref<128x128xf32, #tpu.memory_space<vmem>>, vector<128x32xf32>
      %158 = vector.extract_strided_slice %151 {offsets = [0, 1], sizes = [128, 1], strides = [1, 1]} : vector<128x4xf32> to vector<128x1xf32>
      %159 = vector.broadcast %158 : vector<128x1xf32> to vector<128x32xf32>
      %160 = arith.mulf %157, %159 : vector<128x32xf32>
      %c0_79 = arith.constant 0 : index
      %c32_80 = arith.constant 32 : index
      %161 = vector.load %arg6[%c0_79, %c32_80] : memref<128x128xf32, #tpu.memory_space<vmem>>, vector<128x32xf32>
      tpu.vector_store %arg6[%c0_79, %c32_80], %160 {strides = array<i32>} : memref<128x128xf32, #tpu.memory_space<vmem>>, vector<128x32xf32>,
      %c0_81 = arith.constant 0 : index
      %c64_82 = arith.constant 64 : index
      %162 = vector.load %arg9[%c0_81, %c64_82] : memref<128x128xf32, #tpu.memory_space<vmem>>, vector<128x32xf32>
      %163 = vector.extract_strided_slice %151 {offsets = [0, 2], sizes = [128, 1], strides = [1, 1]} : vector<128x4xf32> to vector<128x1xf32>
      %164 = vector.broadcast %163 : vector<128x1xf32> to vector<128x32xf32>
      %165 = arith.mulf %162, %164 : vector<128x32xf32>
      %c0_83 = arith.constant 0 : index
      %c64_84 = arith.constant 64 : index
      %166 = vector.load %arg6[%c0_83, %c64_84] : memref<128x128xf32, #tpu.memory_space<vmem>>, vector<128x32xf32>
      tpu.vector_store %arg6[%c0_83, %c64_84], %165 {strides = array<i32>} : memref<128x128xf32, #tpu.memory_space<vmem>>, vector<128x32xf32>,
      %c0_85 = arith.constant 0 : index
      %c96_86 = arith.constant 96 : index
      %167 = vector.load %arg9[%c0_85, %c96_86] : memref<128x128xf32, #tpu.memory_space<vmem>>, vector<128x32xf32>
      %168 = vector.extract_strided_slice %151 {offsets = [0, 3], sizes = [128, 1], strides = [1, 1]} : vector<128x4xf32> to vector<128x1xf32>
      %169 = vector.broadcast %168 : vector<128x1xf32> to vector<128x32xf32>
      %170 = arith.mulf %167, %169 : vector<128x32xf32>
      %c0_87 = arith.constant 0 : index
      %c96_88 = arith.constant 96 : index
      %171 = vector.load %arg6[%c0_87, %c96_88] : memref<128x128xf32, #tpu.memory_space<vmem>>, vector<128x32xf32>
      tpu.vector_store %arg6[%c0_87, %c96_88], %170 {strides = array<i32>} : memref<128x128xf32, #tpu.memory_space<vmem>>, vector<128x32xf32>,
    } else {
    }
    return
  }
  func.func @transform_0(%arg0: i32, %arg1: i32) -> (i32, i32) {
    %c0_i32 = arith.constant 0 : i32
    %c0_i32_0 = arith.constant 0 : i32
    return %arg1, %c0_i32 : i32, i32
  }
  func.func @transform_1(%arg0: i32, %arg1: i32) -> (i32, i32) {
    %c0_i32 = arith.constant 0 : i32
    %c0_i32_0 = arith.constant 0 : i32
    return %c0_i32, %arg1 : i32, i32
  }
  func.func @transform_2(%arg0: i32, %arg1: i32) -> (i32, i32) {
    %c0_i32 = arith.constant 0 : i32
    %c0_i32_0 = arith.constant 0 : i32
    return %arg0, %c0_i32 : i32, i32
  }
  func.func @transform_3(%arg0: i32, %arg1: i32) -> (i32, i32) {
    %c0_i32 = arith.constant 0 : i32
    return %arg0, %arg1 : i32, i32
  }
  func.func @transform_4(%arg0: i32, %arg1: i32) -> (i32, i32) {
    %c0_i32 = arith.constant 0 : i32
    %c0_i32_0 = arith.constant 0 : i32
    return %arg0, %c0_i32 : i32, i32
  }
}

</mosaic_0001>

<llo_original>
// kernel: tpu_custom_call.1
$region0: #{tpu_custom_call.1}
  #allocation0 [shape = 'u32[]', space=smem, size = 0x4, offset = 0x4, fixed_abs, tag = 'smem constant byte address 0x4 - core index']
  #allocation1 [shape = 'u32[144,128]{1,0:T(1,128)}', space=vmem, size = 0x12000, scoped, tag = 'internal scratch']
  #allocation2 [shape = 'f32[128,4]{1,0:T(8,128)}', space=vmem, size = 0x10000, scoped, tag = 'scratch operand']
  #allocation3 [shape = 'f32[128,4]{1,0:T(8,128)}', space=vmem, size = 0x10000, scoped, tag = 'scratch operand']
  #allocation4 [shape = 'f32[128,128]{1,0:T(8,128)}', space=vmem, size = 0x10000, scoped, tag = 'scratch operand']
  %s0 = inlined_call_operand.vmem [shape: bf16[256,128], index: 0, kind: input, shape index: {}]
  %s1 = inlined_call_operand.vmem [shape: f32[4,256], index: 1, kind: input, shape index: {}]
  %s2 = inlined_call_operand.vmem [shape: f32[256,4], index: 2, kind: input, shape index: {}]
  %s3 = inlined_call_operand.vmem [shape: s8[256,256], index: 3, kind: input, shape index: {}]
  %s4 = inlined_call_operand.hbm [shape: f32[256,128], index: 4, kind: output, shape index: {}]
  %s5 = sld [smem:[#allocation0]]
  $region95: #{tpu_custom_call.1} parent=0
    _
  %s7 = ssub.s32 1, %s5
  %s8 = scalar_select 0, %s7, %s5
  $region1: #{tpu_custom_call.1} parent=0
    #allocation5 [shape = 'u8[32768]{0}', space=vmem, size = 0x8000, scoped, tag = 'input window, operand 3']
    #allocation6 [shape = 'u8[131072]{0}', space=vmem, size = 0x20000, scoped, tag = 'output window, operand 0']
    #allocation7 [shape = 's32[2]{0}', space=sflag, size = 0x8, scoped, tag = 'scoped memory for tpu_custom_call.1']
    %9 = vsyncpa [#allocation7], 0
    %s10 = scalar_lea.sflag [#allocation7], 1
    %11 = vsyncpa %s10, 0
    loop: start=0, step=1, limit=6
    $region2: #{tpu_custom_call.1} parent=1 // loop_pre_header
      _
    $region3: #{tpu_custom_call.1} parent=1 // loop_header
      %s13 = sphi 0, %s17
      %p14 = scmp.ge.s32.totalorder %s13, 6
      %s20 = sphi 0, %s32
      %s21 = sphi 0, %s28
      %s22 = sphi 0, %s20
      %s23 = sphi 0, %s21
      %s24 = sphi 0, %s22
      %s25 = sphi 0, %s23
      %s35 = sphi 0, %s37
      %s38 = sphi 0, %s35
      %s39 = sphi 0, %s38
      %s55 = sphi 0, %s39
      %s61 = sphi 0, %s63
      %s64 = sphi 0, %s61
      %s65 = sphi 0, %s64
      %s81 = sphi 0, %s65
      %s87 = sphi 0, %s89
      %s90 = sphi 0, %s87
      %s91 = sphi 0, %s90
      %s107 = sphi 0, %s91
      %s115 = sphi 0, %s117
      %s118 = sphi 0, %s115
      %s119 = sphi 0, %s118
      %s135 = sphi 0, %s119
      %s141 = sphi 0, %s143
      %s144 = sphi 0, %s141
      %s145 = sphi 0, %s144
      %s161 = sphi 0, %s145
    $region4: #{tpu_custom_call.1} parent=1 // loop_header_branch
      %16 = sbr.rel (%p14) target = $region8
    $region5: #{tpu_custom_call.1} parent=1 // loop_body
      %s18 = ssub.s32 %s13, 1
      %s19 = ssub.s32 %s13, 2
      %s26 = sadd.s32 1, %s21
      %p27 = scmp.ge.s32.totalorder %s26, 2
      %s28 = scalar_select %p27, 0, %s26
      %s29 = sadd.s32 1, %s20
      %s30 = scalar_select %p27, %s29, %s20
      %p31 = scmp.ge.s32.totalorder %s30, 2
      %s32 = scalar_select %p31, 0, %s30
      %s33 = ssub.s32 %s21, %s28
      %p34 = scmp.eq.s32.totalorder %s33, 0
      %s36 = sadd.s32 %s35, 1
      %s37 = scalar_select %p34, %s35, %s36
      %p40 = pneg %p34
      %p41 = scmp.eq.s32.totalorder %s13, 3
      %p42 = por %p40, %p41
      %p43 = scmp.ne.s32.totalorder %s35, %s38
      %p44 = scmp.eq.s32.totalorder %s13, 0
      %p45 = por %p43, %p44
      %p46 = scmp.ne.s32.totalorder %s35, %s38
      %p47 = scmp.eq.s32.totalorder %s18, 3
      %p48 = por %p46, %p47
      %p49 = scmp.ne.s32.totalorder %s38, %s39
      %p50 = scmp.eq.s32.totalorder %s18, 0
      %p51 = por %p49, %p50
      %p52 = scmp.ne.s32.totalorder %s38, %s39
      %p53 = scmp.eq.s32.totalorder %s19, 3
      %p54 = por %p52, %p53
      %p56 = scmp.ne.s32.totalorder %s39, %s55
      %p57 = scmp.eq.s32.totalorder %s19, 0
      %p58 = por %p56, %p57
      %s59 = ssub.s32 %s21, %s28
      %p60 = scmp.eq.s32.totalorder %s59, 0
      %s62 = sadd.s32 %s61, 1
      %s63 = scalar_select %p60, %s61, %s62
      %p66 = pneg %p60
      %p67 = scmp.eq.s32.totalorder %s13, 3
      %p68 = por %p66, %p67
      %p69 = scmp.ne.s32.totalorder %s61, %s64
      %p70 = scmp.eq.s32.totalorder %s13, 0
      %p71 = por %p69, %p70
      %p72 = scmp.ne.s32.totalorder %s61, %s64
      %p73 = scmp.eq.s32.totalorder %s18, 3
      %p74 = por %p72, %p73
      %p75 = scmp.ne.s32.totalorder %s64, %s65
      %p76 = scmp.eq.s32.totalorder %s18, 0
      %p77 = por %p75, %p76
      %p78 = scmp.ne.s32.totalorder %s64, %s65
      %p79 = scmp.eq.s32.totalorder %s19, 3
      %p80 = por %p78, %p79
      %p82 = scmp.ne.s32.totalorder %s65, %s81
      %p83 = scmp.eq.s32.totalorder %s19, 0
      %p84 = por %p82, %p83
      %s85 = ssub.s32 %s20, %s32
      %p86 = scmp.eq.s32.totalorder %s85, 0
      %s88 = sadd.s32 %s87, 1
      %s89 = scalar_select %p86, %s87, %s88
      %p92 = pneg %p86
      %p93 = scmp.eq.s32.totalorder %s13, 3
      %p94 = por %p92, %p93
      %p95 = scmp.ne.s32.totalorder %s87, %s90
      %p96 = scmp.eq.s32.totalorder %s13, 0
      %p97 = por %p95, %p96
      %p98 = scmp.ne.s32.totalorder %s87, %s90
      %p99 = scmp.eq.s32.totalorder %s18, 3
      %p100 = por %p98, %p99
      %p101 = scmp.ne.s32.totalorder %s90, %s91
      %p102 = scmp.eq.s32.totalorder %s18, 0
      %p103 = por %p101, %p102
      %p104 = scmp.ne.s32.totalorder %s90, %s91
      %p105 = scmp.eq.s32.totalorder %s19, 3
      %p106 = por %p104, %p105
      %p108 = scmp.ne.s32.totalorder %s91, %s107
      %p109 = scmp.eq.s32.totalorder %s19, 0
      %p110 = por %p108, %p109
      %s111 = ssub.s32 %s20, %s32
      %s112 = ssub.s32 %s21, %s28
      %s113 = sor.u32 %s111, %s112
      %p114 = scmp.eq.s32.totalorder %s113, 0
      %s116 = sadd.s32 %s115, 1
      %s117 = scalar_select %p114, %s115, %s116
      %p120 = pneg %p114
      %p121 = scmp.eq.s32.totalorder %s13, 3
      %p122 = por %p120, %p121
      %p123 = scmp.ne.s32.totalorder %s115, %s118
      %p124 = scmp.eq.s32.totalorder %s13, 0
      %p125 = por %p123, %p124
      %p126 = scmp.ne.s32.totalorder %s115, %s118
      %p127 = scmp.eq.s32.totalorder %s18, 3
      %p128 = por %p126, %p127
      %p129 = scmp.ne.s32.totalorder %s118, %s119
      %p130 = scmp.eq.s32.totalorder %s18, 0
      %p131 = por %p129, %p130
      %p132 = scmp.ne.s32.totalorder %s118, %s119
      %p133 = scmp.eq.s32.totalorder %s19, 3
      %p134 = por %p132, %p133
      %p136 = scmp.ne.s32.totalorder %s119, %s135
      %p137 = scmp.eq.s32.totalorder %s19, 0
      %p138 = por %p136, %p137
      %s139 = ssub.s32 %s20, %s32
      %p140 = scmp.eq.s32.totalorder %s139, 0
      %s142 = sadd.s32 %s141, 1
      %s143 = scalar_select %p140, %s141, %s142
      %p146 = pneg %p140
      %p147 = scmp.eq.s32.totalorder %s13, 3
      %p148 = por %p146, %p147
      %p149 = scmp.ne.s32.totalorder %s141, %s144
      %p150 = scmp.eq.s32.totalorder %s13, 0
      %p151 = por %p149, %p150
      %p152 = scmp.ne.s32.totalorder %s141, %s144
      %p153 = scmp.eq.s32.totalorder %s18, 3
      %p154 = por %p152, %p153
      %p155 = scmp.ne.s32.totalorder %s144, %s145
      %p156 = scmp.eq.s32.totalorder %s18, 0
      %p157 = por %p155, %p156
      %p158 = scmp.ne.s32.totalorder %s144, %s145
      %p159 = scmp.eq.s32.totalorder %s19, 3
      %p160 = por %p158, %p159
      %p162 = scmp.ne.s32.totalorder %s145, %s161
      %p163 = scmp.eq.s32.totalorder %s19, 0
      %p164 = por %p162, %p163
      %p165 = scmp.le.s32.totalorder 1, %s13
      %p166 = scmp.lt.s32.totalorder %s13, 5
      %p167 = pnand %p165, %p166
      %p168 = pneg %p167
      // Predicated region
      $region9: #{tpu_custom_call.1} parent=5 // pred_check
        _
      $region10: #{tpu_custom_call.1} parent=5 // pred_check_branch
        %170 = sbr.rel (%p167) target = $region12
      $region11: #{tpu_custom_call.1} parent=5 // pred_region
        %s171 = ssub.s32 %s13, 1
      $region12: #{tpu_custom_call.1} parent=5 // pred_fallthru
        _
      %p172 = scmp.lt.s32.totalorder %s13, 4
      // Predicated region
      $region13: #{tpu_custom_call.1} parent=5 // pred_check
        %p173 = pneg %p172
      $region14: #{tpu_custom_call.1} parent=5 // pred_check_branch
        %175 = sbr.rel (%p173) target = $region16
      $region15: #{tpu_custom_call.1} parent=5 // pred_region
        // Predicated region
        $region17: #{tpu_custom_call.1} parent=15 // pred_check
          %p176 = pneg %p45
        $region18: #{tpu_custom_call.1} parent=15 // pred_check_branch
          %178 = sbr.rel (%p176) target = $region20
        $region19: #{tpu_custom_call.1} parent=15 // pred_region
          %s179 = smul.u32 16, %s21
          %p180 = scmp.lt.s32.totalorder %s179, 31
          %s181 = scalar_select %p180, %s179, 31
          %s182 = smul.addr %s181, 4
          %s183 = scalar_lea.vmem %s0, %s182
          %s184 = smul.u32 16, %s21
        $region20: #{tpu_custom_call.1} parent=15 // pred_fallthru
          _
        // Predicated region
        $region21: #{tpu_custom_call.1} parent=15 // pred_check
          %p185 = pneg %p71
        $region22: #{tpu_custom_call.1} parent=15 // pred_check_branch
          %187 = sbr.rel (%p185) target = $region24
        $region23: #{tpu_custom_call.1} parent=15 // pred_region
          %p188 = scmp.lt.s32.totalorder %s21, 1
          %s189 = scalar_select %p188, %s21, 1
          %s190 = smul.addr %s189, 4
          %s191 = scalar_lea.vmem %s1, %s190
        $region24: #{tpu_custom_call.1} parent=15 // pred_fallthru
          _
        // Predicated region
        $region25: #{tpu_custom_call.1} parent=15 // pred_check
          %p192 = pneg %p97
        $region26: #{tpu_custom_call.1} parent=15 // pred_check_branch
          %194 = sbr.rel (%p192) target = $region28
        $region27: #{tpu_custom_call.1} parent=15 // pred_region
          %s195 = smul.u32 16, %s20
          %p196 = scmp.lt.s32.totalorder %s195, 31
          %s197 = scalar_select %p196, %s195, 31
          %s198 = smul.addr %s197, 8
          %s199 = scalar_lea.vmem %s2, %s198
          %s200 = smul.u32 16, %s20
        $region28: #{tpu_custom_call.1} parent=15 // pred_fallthru
          _
        // Predicated region
        $region29: #{tpu_custom_call.1} parent=15 // pred_check
          %p201 = pneg %p125
        $region30: #{tpu_custom_call.1} parent=15 // pred_check_branch
          %203 = sbr.rel (%p201) target = $region32
        $region31: #{tpu_custom_call.1} parent=15 // pred_region
          %s204 = sand.u32 %s115, 1
          %s205 = sand.u32 %s115, 1
          %s206 = smul.addr %s205, 32
          %s207 = scalar_lea.vmem [#allocation5], %s206
          %s208 = smul.u32 4, %s20
          %s209 = smul.addr %s208, 2
          %s210 = sadd.s32 %s21, %s209
          %s211 = smul.addr %s210, 8
          %s212 = scalar_lea.vmem %s3, %s211
          // Predicated region
          $region33: #{tpu_custom_call.1} parent=31 // pred_check
            _
          $region34: #{tpu_custom_call.1} parent=31 // pred_check_branch
            %214 = sbr.rel (0) target = $region36
          $region35: #{tpu_custom_call.1} parent=31 // pred_region
            // Predicated region
            $region37: #{tpu_custom_call.1} parent=35 // pred_check
              _
            $region38: #{tpu_custom_call.1} parent=35 // pred_check_branch
              %216 = sbr.rel (0) target = $region40
            $region39: #{tpu_custom_call.1} parent=35 // pred_region
              // Predicated region
              $region52: #{tpu_custom_call.1} parent=39 // pred_check
                _
              $region53: #{tpu_custom_call.1} parent=39 // pred_check_branch
                %237 = sbr.rel (0) target = $region55
              $region54: #{tpu_custom_call.1} parent=39 // pred_region
                loop: start=0, step=1, limit=1
                $region56: #{tpu_custom_call.1} parent=54 // loop_pre_header
                  _
                $region57: #{tpu_custom_call.1} parent=54 // loop_header
                  %s239 = sphi 0, %s243
                  %p240 = scmp.ge.s32.totalorder %s239, 1
                  %s244 = sphi %s212, %s212
                  %s245 = sphi %s207, %s207
                $region58: #{tpu_custom_call.1} parent=54 // loop_header_branch
                  %242 = sbr.rel (%p240) target = $region62
                $region59: #{tpu_custom_call.1} parent=54 // loop_body
                  %v246 = vld [vmem:[%s244] sm:$0xff]
                  %247 = vst [vmem:[%s245] sm:$0xff] %v246
                  %v248 = vld [vmem:[%s244 + $0x10] sm:$0xff]
                  %249 = vst [vmem:[%s245 + $0x8] sm:$0xff] %v248
                  %v250 = vld [vmem:[%s244 + $0x20] sm:$0xff]
                  %251 = vst [vmem:[%s245 + $0x10] sm:$0xff] %v250
                  %v252 = vld [vmem:[%s244 + $0x30] sm:$0xff]
                  %253 = vst [vmem:[%s245 + $0x18] sm:$0xff] %v252
                $region60: #{tpu_custom_call.1} parent=54 // loop_footer
                  %s243 = sadd.s32 1, %s239
                $region61: #{tpu_custom_call.1} parent=54 // loop_footer_branch
                  %238 = sbr.rel target = $region57
                $region62: #{tpu_custom_call.1} parent=54 // loop_exit
                  _
              $region55: #{tpu_custom_call.1} parent=39 // pred_fallthru
                _
              // Predicated region
              $region63: #{tpu_custom_call.1} parent=39 // pred_check
                _
              $region64: #{tpu_custom_call.1} parent=39 // pred_check_branch
                %255 = sbr.rel target = $region66
              $region65: #{tpu_custom_call.1} parent=39 // pred_region
                _
              $region66: #{tpu_custom_call.1} parent=39 // pred_fallthru
                _
            $region40: #{tpu_custom_call.1} parent=35 // pred_fallthru
              _
            // Predicated region
            $region41: #{tpu_custom_call.1} parent=35 // pred_check
              _
            $region42: #{tpu_custom_call.1} parent=35 // pred_check_branch
              %218 = sbr.rel target = $region44
            $region43: #{tpu_custom_call.1} parent=35 // pred_region
              loop: start=0, step=1, limit=1
              $region45: #{tpu_custom_call.1} parent=43 // loop_pre_header
                _
              $region46: #{tpu_custom_call.1} parent=43 // loop_header
                %s221 = sphi 0, %s225
                %p222 = scmp.ge.s32.totalorder %s221, 1
                %s226 = sphi %s212, %s212
                %s227 = sphi %s207, %s207
              $region47: #{tpu_custom_call.1} parent=43 // loop_header_branch
                %224 = sbr.rel (%p222) target = $region51
              $region48: #{tpu_custom_call.1} parent=43 // loop_body
                %v228 = vld [vmem:[%s226] sm:$0xff]
                %229 = vst [vmem:[%s227] sm:$0xff] %v228
                %v230 = vld [vmem:[%s226 + $0x10] sm:$0xff]
                %231 = vst [vmem:[%s227 + $0x8] sm:$0xff] %v230
                %v232 = vld [vmem:[%s226 + $0x20] sm:$0xff]
                %233 = vst [vmem:[%s227 + $0x10] sm:$0xff] %v232
                %v234 = vld [vmem:[%s226 + $0x30] sm:$0xff]
                %235 = vst [vmem:[%s227 + $0x18] sm:$0xff] %v234
              $region49: #{tpu_custom_call.1} parent=43 // loop_footer
                %s225 = sadd.s32 1, %s221
              $region50: #{tpu_custom_call.1} parent=43 // loop_footer_branch
                %220 = sbr.rel target = $region46
              $region51: #{tpu_custom_call.1} parent=43 // loop_exit
                _
            $region44: #{tpu_custom_call.1} parent=35 // pred_fallthru
              _
          $region36: #{tpu_custom_call.1} parent=31 // pred_fallthru
            _
          %256 = vnop
        $region32: #{tpu_custom_call.1} parent=15 // pred_fallthru
          _
      $region16: #{tpu_custom_call.1} parent=5 // pred_fallthru
        _
      %p257 = scmp.le.s32.totalorder 1, %s13
      %p258 = scmp.lt.s32.totalorder %s13, 5
      %p259 = pnand %p257, %p258
      %p260 = pneg %p259
      // Predicated region
      $region67: #{tpu_custom_call.1} parent=5 // pred_check
        _
      $region68: #{tpu_custom_call.1} parent=5 // pred_check_branch
        %262 = sbr.rel (%p259) target = $region70
      $region69: #{tpu_custom_call.1} parent=5 // pred_region
        %s263 = ssub.s32 %s13, 1
        %s264 = sand.u32 %s118, 1
        %s265 = sand.u32 %s118, 1
        %s266 = smul.addr %s265, 32
        %s267 = scalar_lea.vmem [#allocation5], %s266
        // Predicated region
        $region71: #{tpu_custom_call.1} parent=69 // pred_check
          %p268 = pneg %p131
        $region72: #{tpu_custom_call.1} parent=69 // pred_check_branch
          %270 = sbr.rel (%p268) target = $region74
        $region73: #{tpu_custom_call.1} parent=69 // pred_region
          _
        $region74: #{tpu_custom_call.1} parent=69 // pred_fallthru
          _
        %s271 = smul.u32 16, %s23
        %p272 = scmp.lt.s32.totalorder %s271, 31
        %s273 = scalar_select %p272, %s271, 31
        %s274 = smul.addr %s273, 4
        %s275 = scalar_lea.vmem %s0, %s274
        %p276 = pneg %p51
        %p277 = pneg %p48
        %p278 = scmp.lt.s32.totalorder %s23, 1
        %s279 = scalar_select %p278, %s23, 1
        %s280 = smul.addr %s279, 4
        %s281 = scalar_lea.vmem %s1, %s280
        %p282 = pneg %p77
        %p283 = pneg %p74
        %s284 = smul.u32 16, %s22
        %p285 = scmp.lt.s32.totalorder %s284, 31
        %s286 = scalar_select %p285, %s284, 31
        %s287 = smul.addr %s286, 8
        %s288 = scalar_lea.vmem %s2, %s287
        %p289 = pneg %p103
        %p290 = pneg %p100
        %s291 = sand.u32 %s118, 1
        %s292 = sand.u32 %s118, 1
        %s293 = smul.addr %s292, 32
        %s294 = scalar_lea.vmem [#allocation5], %s293
        %p295 = pneg %p131
        %p296 = pneg %p128
        %p297 = pneg %p157
        %p298 = pneg %p154
        %s299 = sand.u32 %s144, 1
        %s300 = scalar_lea.sflag [#allocation7], %s299
        %s301 = sand.u32 %s144, 1
        %s302 = smul.addr %s301, 128
        %s303 = scalar_lea.vmem [#allocation6], %s302
        %s304 = smul.u32 16, %s23
        %p305 = scmp.lt.s32.totalorder %s304, 31
        %s306 = scalar_select %p305, %s304, 31
        %s307 = smul.addr %s306, 4
        %s308 = scalar_lea.vmem %s0, %s307
        %s309 = smul.u32 16, %s23
        %p310 = scmp.lt.s32.totalorder %s23, 1
        %s311 = scalar_select %p310, %s23, 1
        %s312 = smul.addr %s311, 4
        %s313 = scalar_lea.vmem %s1, %s312
        %s314 = smul.u32 16, %s22
        %p315 = scmp.lt.s32.totalorder %s314, 31
        %s316 = scalar_select %p315, %s314, 31
        %s317 = smul.addr %s316, 8
        %s318 = scalar_lea.vmem %s2, %s317
        %s319 = smul.u32 16, %s22
        %s320 = smul.u32 4, %s22
        %s321 = smul.u32 16, %s22
        %p323 = scmp.eq.s32.totalorder %s23, 0
        // Predicated region
        $region75: #{tpu_custom_call.1} parent=69 // pred_check
          %p324 = pneg %p323
        $region76: #{tpu_custom_call.1} parent=69 // pred_check_branch
          %326 = sbr.rel (%p324) target = $region78
        $region77: #{tpu_custom_call.1} parent=69 // pred_region
          %vm327 = vcmask 31744
          %328 = vst.msk [vmem:[#allocation2] sm:$0xff] %vm327, -1e+30
          %329 = vst.msk [vmem:[#allocation2 + $0x8] sm:$0xff] %vm327, -1e+30
          %330 = vst.msk [vmem:[#allocation2 + $0x10] sm:$0xff] %vm327, -1e+30
          %331 = vst.msk [vmem:[#allocation2 + $0x18] sm:$0xff] %vm327, -1e+30
          %332 = vst.msk [vmem:[#allocation2 + $0x20] sm:$0xff] %vm327, -1e+30
          %333 = vst.msk [vmem:[#allocation2 + $0x28] sm:$0xff] %vm327, -1e+30
          %334 = vst.msk [vmem:[#allocation2 + $0x30] sm:$0xff] %vm327, -1e+30
          %335 = vst.msk [vmem:[#allocation2 + $0x38] sm:$0xff] %vm327, -1e+30
          %336 = vst.msk [vmem:[#allocation2 + $0x40] sm:$0xff] %vm327, -1e+30
          %337 = vst.msk [vmem:[#allocation2 + $0x48] sm:$0xff] %vm327, -1e+30
          %338 = vst.msk [vmem:[#allocation2 + $0x50] sm:$0xff] %vm327, -1e+30
          %339 = vst.msk [vmem:[#allocation2 + $0x58] sm:$0xff] %vm327, -1e+30
          %340 = vst.msk [vmem:[#allocation2 + $0x60] sm:$0xff] %vm327, -1e+30
          %341 = vst.msk [vmem:[#allocation2 + $0x68] sm:$0xff] %vm327, -1e+30
          %342 = vst.msk [vmem:[#allocation2 + $0x70] sm:$0xff] %vm327, -1e+30
          %343 = vst.msk [vmem:[#allocation2 + $0x78] sm:$0xff] %vm327, -1e+30
          %344 = vst.msk [vmem:[#allocation3] sm:$0xff] %vm327, 0.0
          %345 = vst.msk [vmem:[#allocation3 + $0x8] sm:$0xff] %vm327, 0.0
          %346 = vst.msk [vmem:[#allocation3 + $0x10] sm:$0xff] %vm327, 0.0
          %347 = vst.msk [vmem:[#allocation3 + $0x18] sm:$0xff] %vm327, 0.0
          %348 = vst.msk [vmem:[#allocation3 + $0x20] sm:$0xff] %vm327, 0.0
          %349 = vst.msk [vmem:[#allocation3 + $0x28] sm:$0xff] %vm327, 0.0
          %350 = vst.msk [vmem:[#allocation3 + $0x30] sm:$0xff] %vm327, 0.0
          %351 = vst.msk [vmem:[#allocation3 + $0x38] sm:$0xff] %vm327, 0.0
          %352 = vst.msk [vmem:[#allocation3 + $0x40] sm:$0xff] %vm327, 0.0
          %353 = vst.msk [vmem:[#allocation3 + $0x48] sm:$0xff] %vm327, 0.0
          %354 = vst.msk [vmem:[#allocation3 + $0x50] sm:$0xff] %vm327, 0.0
          %355 = vst.msk [vmem:[#allocation3 + $0x58] sm:$0xff] %vm327, 0.0
          %356 = vst.msk [vmem:[#allocation3 + $0x60] sm:$0xff] %vm327, 0.0
          %357 = vst.msk [vmem:[#allocation3 + $0x68] sm:$0xff] %vm327, 0.0
          %358 = vst.msk [vmem:[#allocation3 + $0x70] sm:$0xff] %vm327, 0.0
          %359 = vst.msk [vmem:[#allocation3 + $0x78] sm:$0xff] %vm327, 0.0
          %360 = vst [vmem:[#allocation4] sm:$0xff] 0.0
          %361 = vst [vmem:[#allocation4 + $0x8] sm:$0xff] 0.0
          %362 = vst [vmem:[#allocation4 + $0x10] sm:$0xff] 0.0
          %363 = vst [vmem:[#allocation4 + $0x18] sm:$0xff] 0.0
          %364 = vst [vmem:[#allocation4 + $0x20] sm:$0xff] 0.0
          %365 = vst [vmem:[#allocation4 + $0x28] sm:$0xff] 0.0
          %366 = vst [vmem:[#allocation4 + $0x30] sm:$0xff] 0.0
          %367 = vst [vmem:[#allocation4 + $0x38] sm:$0xff] 0.0
          %368 = vst [vmem:[#allocation4 + $0x40] sm:$0xff] 0.0
          %369 = vst [vmem:[#allocation4 + $0x48] sm:$0xff] 0.0
          %370 = vst [vmem:[#allocation4 + $0x50] sm:$0xff] 0.0
          %371 = vst [vmem:[#allocation4 + $0x58] sm:$0xff] 0.0
          %372 = vst [vmem:[#allocation4 + $0x60] sm:$0xff] 0.0
          %373 = vst [vmem:[#allocation4 + $0x68] sm:$0xff] 0.0
          %374 = vst [vmem:[#allocation4 + $0x70] sm:$0xff] 0.0
          %375 = vst [vmem:[#allocation4 + $0x78] sm:$0xff] 0.0
        $region78: #{tpu_custom_call.1} parent=69 // pred_fallthru
          _
        %v376 = vld [vmem:[%s267] sm:$0xff]
        %v377 = vld [vmem:[%s267 + $0x8] sm:$0xff]
        %v378 = vld [vmem:[%s267 + $0x10] sm:$0xff]
        %v379 = vld [vmem:[%s267 + $0x18] sm:$0xff]
        %v380 = vunpack.c.0.s8 %v376
        %v381 = vunpack.c.1.s8 %v376
        %v382 = vunpack.c.2.s8 %v376
        %v383 = vunpack.c.3.s8 %v376
        %v384 = vunpack.c.0.s8 %v377
        %v385 = vunpack.c.1.s8 %v377
        %v386 = vunpack.c.2.s8 %v377
        %v387 = vunpack.c.3.s8 %v377
        %v388 = vunpack.c.0.s8 %v378
        %v389 = vunpack.c.1.s8 %v378
        %v390 = vunpack.c.2.s8 %v378
        %v391 = vunpack.c.3.s8 %v378
        %v392 = vunpack.c.0.s8 %v379
        %v393 = vunpack.c.1.s8 %v379
        %v394 = vunpack.c.2.s8 %v379
        %v395 = vunpack.c.3.s8 %v379
        %v396 = vcvt.s32.f32 %v380
        %v397 = vcvt.s32.f32 %v381
        %v398 = vcvt.s32.f32 %v382
        %v399 = vcvt.s32.f32 %v383
        %v400 = vcvt.s32.f32 %v384
        %v401 = vcvt.s32.f32 %v385
        %v402 = vcvt.s32.f32 %v386
        %v403 = vcvt.s32.f32 %v387
        %v404 = vcvt.s32.f32 %v388
        %v405 = vcvt.s32.f32 %v389
        %v406 = vcvt.s32.f32 %v390
        %v407 = vcvt.s32.f32 %v391
        %v408 = vcvt.s32.f32 %v392
        %v409 = vcvt.s32.f32 %v393
        %v410 = vcvt.s32.f32 %v394
        %v411 = vcvt.s32.f32 %v395
        %vm412 = vcmp.gt.f32.partialorder %v396, 0.0
        %vm413 = vcmp.gt.f32.partialorder %v397, 0.0
        %vm414 = vcmp.gt.f32.partialorder %v398, 0.0
        %vm415 = vcmp.gt.f32.partialorder %v399, 0.0
        %vm416 = vcmp.gt.f32.partialorder %v400, 0.0
        %vm417 = vcmp.gt.f32.partialorder %v401, 0.0
        %vm418 = vcmp.gt.f32.partialorder %v402, 0.0
        %vm419 = vcmp.gt.f32.partialorder %v403, 0.0
        %vm420 = vcmp.gt.f32.partialorder %v404, 0.0
        %vm421 = vcmp.gt.f32.partialorder %v405, 0.0
        %vm422 = vcmp.gt.f32.partialorder %v406, 0.0
        %vm423 = vcmp.gt.f32.partialorder %v407, 0.0
        %vm424 = vcmp.gt.f32.partialorder %v408, 0.0
        %vm425 = vcmp.gt.f32.partialorder %v409, 0.0
        %vm426 = vcmp.gt.f32.partialorder %v410, 0.0
        %vm427 = vcmp.gt.f32.partialorder %v411, 0.0
        %v428 = vsel %vm412, 0.0, -1e+30
        %v429 = vsel %vm413, 0.0, -1e+30
        %v430 = vsel %vm414, 0.0, -1e+30
        %v431 = vsel %vm415, 0.0, -1e+30
        %v432 = vsel %vm416, 0.0, -1e+30
        %v433 = vsel %vm417, 0.0, -1e+30
        %v434 = vsel %vm418, 0.0, -1e+30
        %v435 = vsel %vm419, 0.0, -1e+30
        %v436 = vsel %vm420, 0.0, -1e+30
        %v437 = vsel %vm421, 0.0, -1e+30
        %v438 = vsel %vm422, 0.0, -1e+30
        %v439 = vsel %vm423, 0.0, -1e+30
        %v440 = vsel %vm424, 0.0, -1e+30
        %v441 = vsel %vm425, 0.0, -1e+30
        %v442 = vsel %vm426, 0.0, -1e+30
        %v443 = vsel %vm427, 0.0, -1e+30
        %v444 = vld [vmem:[%s313] sm:$0xf]
        %v445 = vld [vmem:[%s318] sm:$0xff]
        %v446 = vld [vmem:[%s318 + $0x8] sm:$0xff]
        %v447 = vld [vmem:[%s318 + $0x10] sm:$0xff]
        %v448 = vld [vmem:[%s318 + $0x18] sm:$0xff]
        %v449 = vld [vmem:[%s318 + $0x20] sm:$0xff]
        %v450 = vld [vmem:[%s318 + $0x28] sm:$0xff]
        %v451 = vld [vmem:[%s318 + $0x30] sm:$0xff]
        %v452 = vld [vmem:[%s318 + $0x38] sm:$0xff]
        %v453 = vld [vmem:[%s318 + $0x40] sm:$0xff]
        %v454 = vld [vmem:[%s318 + $0x48] sm:$0xff]
        %v455 = vld [vmem:[%s318 + $0x50] sm:$0xff]
        %v456 = vld [vmem:[%s318 + $0x58] sm:$0xff]
        %v457 = vld [vmem:[%s318 + $0x60] sm:$0xff]
        %v458 = vld [vmem:[%s318 + $0x68] sm:$0xff]
        %v459 = vld [vmem:[%s318 + $0x70] sm:$0xff]
        %v460 = vld [vmem:[%s318 + $0x78] sm:$0xff]
        %v461 = vld [vmem:[%s308] sm:$0xf]
        %v462 = vld [vmem:[%s308 + $0x4] sm:$0xf]
        %v463 = vld [vmem:[%s308 + $0x8] sm:$0xf]
        %v464 = vld [vmem:[%s308 + $0xc] sm:$0xf]
        %v465 = vld [vmem:[%s308 + $0x10] sm:$0xf]
        %v466 = vld [vmem:[%s308 + $0x14] sm:$0xf]
        %v467 = vld [vmem:[%s308 + $0x18] sm:$0xf]
        %v468 = vld [vmem:[%s308 + $0x1c] sm:$0xf]
        %v469 = vld [vmem:[%s308 + $0x20] sm:$0xf]
        %v470 = vld [vmem:[%s308 + $0x24] sm:$0xf]
        %v471 = vld [vmem:[%s308 + $0x28] sm:$0xf]
        %v472 = vld [vmem:[%s308 + $0x2c] sm:$0xf]
        %v473 = vld [vmem:[%s308 + $0x30] sm:$0xf]
        %v474 = vld [vmem:[%s308 + $0x34] sm:$0xf]
        %v475 = vld [vmem:[%s308 + $0x38] sm:$0xf]
        %v476 = vld [vmem:[%s308 + $0x3c] sm:$0xf]
        %478 = vset.pattern.permute.xlu0 0
        %479 = vperm.xlu0 %478, %v445
        %v480 = vpop.permute.xlu0 %479
        %483 = vset.pattern.permute.xlu0 0
        %484 = vperm.xlu0 %483, %v446
        %v485 = vpop.permute.xlu0 %484
        %488 = vset.pattern.permute.xlu0 0
        %489 = vperm.xlu0 %488, %v447
        %v490 = vpop.permute.xlu0 %489
        %493 = vset.pattern.permute.xlu0 0
        %494 = vperm.xlu0 %493, %v448
        %v495 = vpop.permute.xlu0 %494
        %498 = vset.pattern.permute.xlu0 0
        %499 = vperm.xlu0 %498, %v449
        %v500 = vpop.permute.xlu0 %499
        %503 = vset.pattern.permute.xlu0 0
        %504 = vperm.xlu0 %503, %v450
        %v505 = vpop.permute.xlu0 %504
        %508 = vset.pattern.permute.xlu0 0
        %509 = vperm.xlu0 %508, %v451
        %v510 = vpop.permute.xlu0 %509
        %513 = vset.pattern.permute.xlu0 0
        %514 = vperm.xlu0 %513, %v452
        %v515 = vpop.permute.xlu0 %514
        %518 = vset.pattern.permute.xlu0 0
        %519 = vperm.xlu0 %518, %v453
        %v520 = vpop.permute.xlu0 %519
        %523 = vset.pattern.permute.xlu0 0
        %524 = vperm.xlu0 %523, %v454
        %v525 = vpop.permute.xlu0 %524
        %528 = vset.pattern.permute.xlu0 0
        %529 = vperm.xlu0 %528, %v455
        %v530 = vpop.permute.xlu0 %529
        %533 = vset.pattern.permute.xlu0 0
        %534 = vperm.xlu0 %533, %v456
        %v535 = vpop.permute.xlu0 %534
        %538 = vset.pattern.permute.xlu0 0
        %539 = vperm.xlu0 %538, %v457
        %v540 = vpop.permute.xlu0 %539
        %543 = vset.pattern.permute.xlu0 0
        %544 = vperm.xlu0 %543, %v458
        %v545 = vpop.permute.xlu0 %544
        %548 = vset.pattern.permute.xlu0 0
        %549 = vperm.xlu0 %548, %v459
        %v550 = vpop.permute.xlu0 %549
        %553 = vset.pattern.permute.xlu0 0
        %554 = vperm.xlu0 %553, %v460
        %v555 = vpop.permute.xlu0 %554
        %v557 = vlaneseq
        %v558 = vshrl.u32 %v557, 7
        %v559 = vsub.s32 0, %v558
        %v560 = vrot.slane %v444, %v559
        %v561 = vadd.f32 %v480, %v560
        %v562 = vadd.f32 %v485, %v560
        %v563 = vadd.f32 %v490, %v560
        %v564 = vadd.f32 %v495, %v560
        %v565 = vadd.f32 %v500, %v560
        %v566 = vadd.f32 %v505, %v560
        %v567 = vadd.f32 %v510, %v560
        %v568 = vadd.f32 %v515, %v560
        %v569 = vadd.f32 %v520, %v560
        %v570 = vadd.f32 %v525, %v560
        %v571 = vadd.f32 %v530, %v560
        %v572 = vadd.f32 %v535, %v560
        %v573 = vadd.f32 %v540, %v560
        %v574 = vadd.f32 %v545, %v560
        %v575 = vadd.f32 %v550, %v560
        %v576 = vadd.f32 %v555, %v560
        %v577 = vmul.f32 %v561, 0.2
        %v578 = vmul.f32 %v562, 0.2
        %v579 = vmul.f32 %v563, 0.2
        %v580 = vmul.f32 %v564, 0.2
        %v581 = vmul.f32 %v565, 0.2
        %v582 = vmul.f32 %v566, 0.2
        %v583 = vmul.f32 %v567, 0.2
        %v584 = vmul.f32 %v568, 0.2
        %v585 = vmul.f32 %v569, 0.2
        %v586 = vmul.f32 %v570, 0.2
        %v587 = vmul.f32 %v571, 0.2
        %v588 = vmul.f32 %v572, 0.2
        %v589 = vmul.f32 %v573, 0.2
        %v590 = vmul.f32 %v574, 0.2
        %v591 = vmul.f32 %v575, 0.2
        %v592 = vmul.f32 %v576, 0.2
        %v593 = vmax.f32 %v561, %v577
        %v594 = vmax.f32 %v562, %v578
        %v595 = vmax.f32 %v563, %v579
        %v596 = vmax.f32 %v564, %v580
        %v597 = vmax.f32 %v565, %v581
        %v598 = vmax.f32 %v566, %v582
        %v599 = vmax.f32 %v567, %v583
        %v600 = vmax.f32 %v568, %v584
        %v601 = vmax.f32 %v569, %v585
        %v602 = vmax.f32 %v570, %v586
        %v603 = vmax.f32 %v571, %v587
        %v604 = vmax.f32 %v572, %v588
        %v605 = vmax.f32 %v573, %v589
        %v606 = vmax.f32 %v574, %v590
        %v607 = vmax.f32 %v575, %v591
        %v608 = vmax.f32 %v576, %v592
        %v609 = vadd.f32 %v593, %v428
        %v610 = vadd.f32 %v594, %v429
        %v611 = vadd.f32 %v595, %v430
        %v612 = vadd.f32 %v596, %v431
        %v613 = vadd.f32 %v597, %v432
        %v614 = vadd.f32 %v598, %v433
        %v615 = vadd.f32 %v599, %v434
        %v616 = vadd.f32 %v600, %v435
        %v617 = vadd.f32 %v601, %v436
        %v618 = vadd.f32 %v602, %v437
        %v619 = vadd.f32 %v603, %v438
        %v620 = vadd.f32 %v604, %v439
        %v621 = vadd.f32 %v605, %v440
        %v622 = vadd.f32 %v606, %v441
        %v623 = vadd.f32 %v607, %v442
        %v624 = vadd.f32 %v608, %v443
        %v625 = vld [vmem:[#allocation2] sm:$0xff]
        %v626 = vld [vmem:[#allocation2 + $0x8] sm:$0xff]
        %v627 = vld [vmem:[#allocation2 + $0x10] sm:$0xff]
        %v628 = vld [vmem:[#allocation2 + $0x18] sm:$0xff]
        %v629 = vld [vmem:[#allocation2 + $0x20] sm:$0xff]
        %v630 = vld [vmem:[#allocation2 + $0x28] sm:$0xff]
        %v631 = vld [vmem:[#allocation2 + $0x30] sm:$0xff]
        %v632 = vld [vmem:[#allocation2 + $0x38] sm:$0xff]
        %v633 = vld [vmem:[#allocation2 + $0x40] sm:$0xff]
        %v634 = vld [vmem:[#allocation2 + $0x48] sm:$0xff]
        %v635 = vld [vmem:[#allocation2 + $0x50] sm:$0xff]
        %v636 = vld [vmem:[#allocation2 + $0x58] sm:$0xff]
        %v637 = vld [vmem:[#allocation2 + $0x60] sm:$0xff]
        %v638 = vld [vmem:[#allocation2 + $0x68] sm:$0xff]
        %v639 = vld [vmem:[#allocation2 + $0x70] sm:$0xff]
        %v640 = vld [vmem:[#allocation2 + $0x78] sm:$0xff]
        %641 = vmax.xlane.f32.xlu0 %v609
        %v642 = vpop.xlane.xlu0 %641
        %643 = vmax.xlane.f32.xlu0 %v610
        %v644 = vpop.xlane.xlu0 %643
        %645 = vmax.xlane.f32.xlu0 %v611
        %v646 = vpop.xlane.xlu0 %645
        %647 = vmax.xlane.f32.xlu0 %v612
        %v648 = vpop.xlane.xlu0 %647
        %649 = vmax.xlane.f32.xlu0 %v613
        %v650 = vpop.xlane.xlu0 %649
        %651 = vmax.xlane.f32.xlu0 %v614
        %v652 = vpop.xlane.xlu0 %651
        %653 = vmax.xlane.f32.xlu0 %v615
        %v654 = vpop.xlane.xlu0 %653
        %655 = vmax.xlane.f32.xlu0 %v616
        %v656 = vpop.xlane.xlu0 %655
        %657 = vmax.xlane.f32.xlu0 %v617
        %v658 = vpop.xlane.xlu0 %657
        %659 = vmax.xlane.f32.xlu0 %v618
        %v660 = vpop.xlane.xlu0 %659
        %661 = vmax.xlane.f32.xlu0 %v619
        %v662 = vpop.xlane.xlu0 %661
        %663 = vmax.xlane.f32.xlu0 %v620
        %v664 = vpop.xlane.xlu0 %663
        %665 = vmax.xlane.f32.xlu0 %v621
        %v666 = vpop.xlane.xlu0 %665
        %667 = vmax.xlane.f32.xlu0 %v622
        %v668 = vpop.xlane.xlu0 %667
        %669 = vmax.xlane.f32.xlu0 %v623
        %v670 = vpop.xlane.xlu0 %669
        %671 = vmax.xlane.f32.xlu0 %v624
        %v672 = vpop.xlane.xlu0 %671
        %v673 = vmax.f32 %v625, %v642
        %v674 = vmax.f32 %v626, %v644
        %v675 = vmax.f32 %v627, %v646
        %v676 = vmax.f32 %v628, %v648
        %v677 = vmax.f32 %v629, %v650
        %v678 = vmax.f32 %v630, %v652
        %v679 = vmax.f32 %v631, %v654
        %v680 = vmax.f32 %v632, %v656
        %v681 = vmax.f32 %v633, %v658
        %v682 = vmax.f32 %v634, %v660
        %v683 = vmax.f32 %v635, %v662
        %v684 = vmax.f32 %v636, %v664
        %v685 = vmax.f32 %v637, %v666
        %v686 = vmax.f32 %v638, %v668
        %v687 = vmax.f32 %v639, %v670
        %v688 = vmax.f32 %v640, %v672
        %v689 = vsub.f32 %v625, %v673
        %v690 = vsub.f32 %v626, %v674
        %v691 = vsub.f32 %v627, %v675
        %v692 = vsub.f32 %v628, %v676
        %v693 = vsub.f32 %v629, %v677
        %v694 = vsub.f32 %v630, %v678
        %v695 = vsub.f32 %v631, %v679
        %v696 = vsub.f32 %v632, %v680
        %v697 = vsub.f32 %v633, %v681
        %v698 = vsub.f32 %v634, %v682
        %v699 = vsub.f32 %v635, %v683
        %v700 = vsub.f32 %v636, %v684
        %v701 = vsub.f32 %v637, %v685
        %v702 = vsub.f32 %v638, %v686
        %v703 = vsub.f32 %v639, %v687
        %v704 = vsub.f32 %v640, %v688
        %v705 = vmul.f32 %v689, 1.442695
        %v706 = vpow.pop %v705
        %v707 = vmul.f32 %v690, 1.442695
        %v708 = vpow.pop %v707
        %v709 = vmul.f32 %v691, 1.442695
        %v710 = vpow.pop %v709
        %v711 = vmul.f32 %v692, 1.442695
        %v712 = vpow.pop %v711
        %v713 = vmul.f32 %v693, 1.442695
        %v714 = vpow.pop %v713
        %v715 = vmul.f32 %v694, 1.442695
        %v716 = vpow.pop %v715
        %v717 = vmul.f32 %v695, 1.442695
        %v718 = vpow.pop %v717
        %v719 = vmul.f32 %v696, 1.442695
        %v720 = vpow.pop %v719
        %v721 = vmul.f32 %v697, 1.442695
        %v722 = vpow.pop %v721
        %v723 = vmul.f32 %v698, 1.442695
        %v724 = vpow.pop %v723
        %v725 = vmul.f32 %v699, 1.442695
        %v726 = vpow.pop %v725
        %v727 = vmul.f32 %v700, 1.442695
        %v728 = vpow.pop %v727
        %v729 = vmul.f32 %v701, 1.442695
        %v730 = vpow.pop %v729
        %v731 = vmul.f32 %v702, 1.442695
        %v732 = vpow.pop %v731
        %v733 = vmul.f32 %v703, 1.442695
        %v734 = vpow.pop %v733
        %v735 = vmul.f32 %v704, 1.442695
        %v736 = vpow.pop %v735
        %738 = vset.pattern.permute.xlu0 0
        %739 = vperm.xlu0 %738, %v673
        %v740 = vpop.permute.xlu0 %739
        %743 = vset.pattern.permute.xlu0 0
        %744 = vperm.xlu0 %743, %v674
        %v745 = vpop.permute.xlu0 %744
        %748 = vset.pattern.permute.xlu0 0
        %749 = vperm.xlu0 %748, %v675
        %v750 = vpop.permute.xlu0 %749
        %753 = vset.pattern.permute.xlu0 0
        %754 = vperm.xlu0 %753, %v676
        %v755 = vpop.permute.xlu0 %754
        %758 = vset.pattern.permute.xlu0 0
        %759 = vperm.xlu0 %758, %v677
        %v760 = vpop.permute.xlu0 %759
        %763 = vset.pattern.permute.xlu0 0
        %764 = vperm.xlu0 %763, %v678
        %v765 = vpop.permute.xlu0 %764
        %768 = vset.pattern.permute.xlu0 0
        %769 = vperm.xlu0 %768, %v679
        %v770 = vpop.permute.xlu0 %769
        %773 = vset.pattern.permute.xlu0 0
        %774 = vperm.xlu0 %773, %v680
        %v775 = vpop.permute.xlu0 %774
        %778 = vset.pattern.permute.xlu0 0
        %779 = vperm.xlu0 %778, %v681
        %v780 = vpop.permute.xlu0 %779
        %783 = vset.pattern.permute.xlu0 0
        %784 = vperm.xlu0 %783, %v682
        %v785 = vpop.permute.xlu0 %784
        %788 = vset.pattern.permute.xlu0 0
        %789 = vperm.xlu0 %788, %v683
        %v790 = vpop.permute.xlu0 %789
        %793 = vset.pattern.permute.xlu0 0
        %794 = vperm.xlu0 %793, %v684
        %v795 = vpop.permute.xlu0 %794
        %798 = vset.pattern.permute.xlu0 0
        %799 = vperm.xlu0 %798, %v685
        %v800 = vpop.permute.xlu0 %799
        %803 = vset.pattern.permute.xlu0 0
        %804 = vperm.xlu0 %803, %v686
        %v805 = vpop.permute.xlu0 %804
        %808 = vset.pattern.permute.xlu0 0
        %809 = vperm.xlu0 %808, %v687
        %v810 = vpop.permute.xlu0 %809
        %813 = vset.pattern.permute.xlu0 0
        %814 = vperm.xlu0 %813, %v688
        %v815 = vpop.permute.xlu0 %814
        %v817 = vsub.f32 %v609, %v740
        %v818 = vsub.f32 %v610, %v745
        %v819 = vsub.f32 %v611, %v750
        %v820 = vsub.f32 %v612, %v755
        %v821 = vsub.f32 %v613, %v760
        %v822 = vsub.f32 %v614, %v765
        %v823 = vsub.f32 %v615, %v770
        %v824 = vsub.f32 %v616, %v775
        %v825 = vsub.f32 %v617, %v780
        %v826 = vsub.f32 %v618, %v785
        %v827 = vsub.f32 %v619, %v790
        %v828 = vsub.f32 %v620, %v795
        %v829 = vsub.f32 %v621, %v800
        %v830 = vsub.f32 %v622, %v805
        %v831 = vsub.f32 %v623, %v810
        %v832 = vsub.f32 %v624, %v815
        %v833 = vmul.f32 %v817, 1.442695
        %v834 = vpow.pop %v833
        %v835 = vmul.f32 %v818, 1.442695
        %v836 = vpow.pop %v835
        %v837 = vmul.f32 %v819, 1.442695
        %v838 = vpow.pop %v837
        %v839 = vmul.f32 %v820, 1.442695
        %v840 = vpow.pop %v839
        %v841 = vmul.f32 %v821, 1.442695
        %v842 = vpow.pop %v841
        %v843 = vmul.f32 %v822, 1.442695
        %v844 = vpow.pop %v843
        %v845 = vmul.f32 %v823, 1.442695
        %v846 = vpow.pop %v845
        %v847 = vmul.f32 %v824, 1.442695
        %v848 = vpow.pop %v847
        %v849 = vmul.f32 %v825, 1.442695
        %v850 = vpow.pop %v849
        %v851 = vmul.f32 %v826, 1.442695
        %v852 = vpow.pop %v851
        %v853 = vmul.f32 %v827, 1.442695
        %v854 = vpow.pop %v853
        %v855 = vmul.f32 %v828, 1.442695
        %v856 = vpow.pop %v855
        %v857 = vmul.f32 %v829, 1.442695
        %v858 = vpow.pop %v857
        %v859 = vmul.f32 %v830, 1.442695
        %v860 = vpow.pop %v859
        %v861 = vmul.f32 %v831, 1.442695
        %v862 = vpow.pop %v861
        %v863 = vmul.f32 %v832, 1.442695
        %v864 = vpow.pop %v863
        %v865 = vld [vmem:[#allocation3] sm:$0xff]
        %v866 = vld [vmem:[#allocation3 + $0x8] sm:$0xff]
        %v867 = vld [vmem:[#allocation3 + $0x10] sm:$0xff]
        %v868 = vld [vmem:[#allocation3 + $0x18] sm:$0xff]
        %v869 = vld [vmem:[#allocation3 + $0x20] sm:$0xff]
        %v870 = vld [vmem:[#allocation3 + $0x28] sm:$0xff]
        %v871 = vld [vmem:[#allocation3 + $0x30] sm:$0xff]
        %v872 = vld [vmem:[#allocation3 + $0x38] sm:$0xff]
        %v873 = vld [vmem:[#allocation3 + $0x40] sm:$0xff]
        %v874 = vld [vmem:[#allocation3 + $0x48] sm:$0xff]
        %v875 = vld [vmem:[#allocation3 + $0x50] sm:$0xff]
        %v876 = vld [vmem:[#allocation3 + $0x58] sm:$0xff]
        %v877 = vld [vmem:[#allocation3 + $0x60] sm:$0xff]
        %v878 = vld [vmem:[#allocation3 + $0x68] sm:$0xff]
        %v879 = vld [vmem:[#allocation3 + $0x70] sm:$0xff]
        %v880 = vld [vmem:[#allocation3 + $0x78] sm:$0xff]
        %v881 = vmul.f32 %v706, %v865
        %v882 = vmul.f32 %v708, %v866
        %v883 = vmul.f32 %v710, %v867
        %v884 = vmul.f32 %v712, %v868
        %v885 = vmul.f32 %v714, %v869
        %v886 = vmul.f32 %v716, %v870
        %v887 = vmul.f32 %v718, %v871
        %v888 = vmul.f32 %v720, %v872
        %v889 = vmul.f32 %v722, %v873
        %v890 = vmul.f32 %v724, %v874
        %v891 = vmul.f32 %v726, %v875
        %v892 = vmul.f32 %v728, %v876
        %v893 = vmul.f32 %v730, %v877
        %v894 = vmul.f32 %v732, %v878
        %v895 = vmul.f32 %v734, %v879
        %v896 = vmul.f32 %v736, %v880
        %897 = vadd.xlane.f32.xlu0 %v834
        %v898 = vpop.xlane.xlu0 %897
        %899 = vadd.xlane.f32.xlu0 %v836
        %v900 = vpop.xlane.xlu0 %899
        %901 = vadd.xlane.f32.xlu0 %v838
        %v902 = vpop.xlane.xlu0 %901
        %903 = vadd.xlane.f32.xlu0 %v840
        %v904 = vpop.xlane.xlu0 %903
        %905 = vadd.xlane.f32.xlu0 %v842
        %v906 = vpop.xlane.xlu0 %905
        %907 = vadd.xlane.f32.xlu0 %v844
        %v908 = vpop.xlane.xlu0 %907
        %909 = vadd.xlane.f32.xlu0 %v846
        %v910 = vpop.xlane.xlu0 %909
        %911 = vadd.xlane.f32.xlu0 %v848
        %v912 = vpop.xlane.xlu0 %911
        %913 = vadd.xlane.f32.xlu0 %v850
        %v914 = vpop.xlane.xlu0 %913
        %915 = vadd.xlane.f32.xlu0 %v852
        %v916 = vpop.xlane.xlu0 %915
        %917 = vadd.xlane.f32.xlu0 %v854
        %v918 = vpop.xlane.xlu0 %917
        %919 = vadd.xlane.f32.xlu0 %v856
        %v920 = vpop.xlane.xlu0 %919
        %921 = vadd.xlane.f32.xlu0 %v858
        %v922 = vpop.xlane.xlu0 %921
        %923 = vadd.xlane.f32.xlu0 %v860
        %v924 = vpop.xlane.xlu0 %923
        %925 = vadd.xlane.f32.xlu0 %v862
        %v926 = vpop.xlane.xlu0 %925
        %927 = vadd.xlane.f32.xlu0 %v864
        %v928 = vpop.xlane.xlu0 %927
        %v929 = vadd.f32 %v881, %v898
        %v930 = vadd.f32 %v882, %v900
        %v931 = vadd.f32 %v883, %v902
        %v932 = vadd.f32 %v884, %v904
        %v933 = vadd.f32 %v885, %v906
        %v934 = vadd.f32 %v886, %v908
        %v935 = vadd.f32 %v887, %v910
        %v936 = vadd.f32 %v888, %v912
        %v937 = vadd.f32 %v889, %v914
        %v938 = vadd.f32 %v890, %v916
        %v939 = vadd.f32 %v891, %v918
        %v940 = vadd.f32 %v892, %v920
        %v941 = vadd.f32 %v893, %v922
        %v942 = vadd.f32 %v894, %v924
        %v943 = vadd.f32 %v895, %v926
        %v944 = vadd.f32 %v896, %v928
        %vm945 = vcmask 7168
        %946 = vst.msk [vmem:[#allocation3] sm:$0xff] %vm945, %v929
        %947 = vst.msk [vmem:[#allocation3 + $0x8] sm:$0xff] %vm945, %v930
        %948 = vst.msk [vmem:[#allocation3 + $0x10] sm:$0xff] %vm945, %v931
        %949 = vst.msk [vmem:[#allocation3 + $0x18] sm:$0xff] %vm945, %v932
        %950 = vst.msk [vmem:[#allocation3 + $0x20] sm:$0xff] %vm945, %v933
        %951 = vst.msk [vmem:[#allocation3 + $0x28] sm:$0xff] %vm945, %v934
        %952 = vst.msk [vmem:[#allocation3 + $0x30] sm:$0xff] %vm945, %v935
        %953 = vst.msk [vmem:[#allocation3 + $0x38] sm:$0xff] %vm945, %v936
        %954 = vst.msk [vmem:[#allocation3 + $0x40] sm:$0xff] %vm945, %v937
        %955 = vst.msk [vmem:[#allocation3 + $0x48] sm:$0xff] %vm945, %v938
        %956 = vst.msk [vmem:[#allocation3 + $0x50] sm:$0xff] %vm945, %v939
        %957 = vst.msk [vmem:[#allocation3 + $0x58] sm:$0xff] %vm945, %v940
        %958 = vst.msk [vmem:[#allocation3 + $0x60] sm:$0xff] %vm945, %v941
        %959 = vst.msk [vmem:[#allocation3 + $0x68] sm:$0xff] %vm945, %v942
        %960 = vst.msk [vmem:[#allocation3 + $0x70] sm:$0xff] %vm945, %v943
        %961 = vst.msk [vmem:[#allocation3 + $0x78] sm:$0xff] %vm945, %v944
        %v962 = vld [vmem:[#allocation4] sm:$0xff]
        %v963 = vld [vmem:[#allocation4 + $0x8] sm:$0xff]
        %v964 = vld [vmem:[#allocation4 + $0x10] sm:$0xff]
        %v965 = vld [vmem:[#allocation4 + $0x18] sm:$0xff]
        %v966 = vld [vmem:[#allocation4 + $0x20] sm:$0xff]
        %v967 = vld [vmem:[#allocation4 + $0x28] sm:$0xff]
        %v968 = vld [vmem:[#allocation4 + $0x30] sm:$0xff]
        %v969 = vld [vmem:[#allocation4 + $0x38] sm:$0xff]
        %v970 = vld [vmem:[#allocation4 + $0x40] sm:$0xff]
        %v971 = vld [vmem:[#allocation4 + $0x48] sm:$0xff]
        %v972 = vld [vmem:[#allocation4 + $0x50] sm:$0xff]
        %v973 = vld [vmem:[#allocation4 + $0x58] sm:$0xff]
        %v974 = vld [vmem:[#allocation4 + $0x60] sm:$0xff]
        %v975 = vld [vmem:[#allocation4 + $0x68] sm:$0xff]
        %v976 = vld [vmem:[#allocation4 + $0x70] sm:$0xff]
        %v977 = vld [vmem:[#allocation4 + $0x78] sm:$0xff]
        %979 = vset.pattern.permute.xlu0 0
        %980 = vperm.xlu0 %979, %v706
        %v981 = vpop.permute.xlu0 %980
        %984 = vset.pattern.permute.xlu0 0
        %985 = vperm.xlu0 %984, %v708
        %v986 = vpop.permute.xlu0 %985
        %989 = vset.pattern.permute.xlu0 0
        %990 = vperm.xlu0 %989, %v710
        %v991 = vpop.permute.xlu0 %990
        %994 = vset.pattern.permute.xlu0 0
        %995 = vperm.xlu0 %994, %v712
        %v996 = vpop.permute.xlu0 %995
        %999 = vset.pattern.permute.xlu0 0
        %1000 = vperm.xlu0 %999, %v714
        %v1001 = vpop.permute.xlu0 %1000
        %1004 = vset.pattern.permute.xlu0 0
        %1005 = vperm.xlu0 %1004, %v716
        %v1006 = vpop.permute.xlu0 %1005
        %1009 = vset.pattern.permute.xlu0 0
        %1010 = vperm.xlu0 %1009, %v718
        %v1011 = vpop.permute.xlu0 %1010
        %1014 = vset.pattern.permute.xlu0 0
        %1015 = vperm.xlu0 %1014, %v720
        %v1016 = vpop.permute.xlu0 %1015
        %1019 = vset.pattern.permute.xlu0 0
        %1020 = vperm.xlu0 %1019, %v722
        %v1021 = vpop.permute.xlu0 %1020
        %1024 = vset.pattern.permute.xlu0 0
        %1025 = vperm.xlu0 %1024, %v724
        %v1026 = vpop.permute.xlu0 %1025
        %1029 = vset.pattern.permute.xlu0 0
        %1030 = vperm.xlu0 %1029, %v726
        %v1031 = vpop.permute.xlu0 %1030
        %1034 = vset.pattern.permute.xlu0 0
        %1035 = vperm.xlu0 %1034, %v728
        %v1036 = vpop.permute.xlu0 %1035
        %1039 = vset.pattern.permute.xlu0 0
        %1040 = vperm.xlu0 %1039, %v730
        %v1041 = vpop.permute.xlu0 %1040
        %1044 = vset.pattern.permute.xlu0 0
        %1045 = vperm.xlu0 %1044, %v732
        %v1046 = vpop.permute.xlu0 %1045
        %1049 = vset.pattern.permute.xlu0 0
        %1050 = vperm.xlu0 %1049, %v734
        %v1051 = vpop.permute.xlu0 %1050
        %1054 = vset.pattern.permute.xlu0 0
        %1055 = vperm.xlu0 %1054, %v736
        %v1056 = vpop.permute.xlu0 %1055
        %v1058 = vmul.f32 %v981, %v962
        %v1059 = vmul.f32 %v986, %v963
        %v1060 = vmul.f32 %v991, %v964
        %v1061 = vmul.f32 %v996, %v965
        %v1062 = vmul.f32 %v1001, %v966
        %v1063 = vmul.f32 %v1006, %v967
        %v1064 = vmul.f32 %v1011, %v968
        %v1065 = vmul.f32 %v1016, %v969
        %v1066 = vmul.f32 %v1021, %v970
        %v1067 = vmul.f32 %v1026, %v971
        %v1068 = vmul.f32 %v1031, %v972
        %v1069 = vmul.f32 %v1036, %v973
        %v1070 = vmul.f32 %v1041, %v974
        %v1071 = vmul.f32 %v1046, %v975
        %v1072 = vmul.f32 %v1051, %v976
        %v1073 = vmul.f32 %v1056, %v977
        %v1074 = vpack.c.bf16 %v836, %v834
        %v1075 = vpack.c.bf16 %v840, %v838
        %v1076 = vpack.c.bf16 %v844, %v842
        %v1077 = vpack.c.bf16 %v848, %v846
        %v1078 = vpack.c.bf16 %v852, %v850
        %v1079 = vpack.c.bf16 %v856, %v854
        %v1080 = vpack.c.bf16 %v860, %v858
        %v1081 = vpack.c.bf16 %v864, %v862
        %v1098 = vunpack.c.l.b16 %v461
        %v1099 = vunpack.c.l.b16 %v462
        %v1100 = vunpack.c.l.b16 %v463
        %v1101 = vunpack.c.l.b16 %v464
        %v1102 = vunpack.c.l.b16 %v465
        %v1103 = vunpack.c.l.b16 %v466
        %v1104 = vunpack.c.l.b16 %v467
        %v1105 = vunpack.c.l.b16 %v468
        %v1106 = vunpack.c.l.b16 %v469
        %v1107 = vunpack.c.l.b16 %v470
        %v1108 = vunpack.c.l.b16 %v471
        %v1109 = vunpack.c.l.b16 %v472
        %v1110 = vunpack.c.l.b16 %v473
        %v1111 = vunpack.c.l.b16 %v474
        %v1112 = vunpack.c.l.b16 %v475
        %v1113 = vunpack.c.l.b16 %v476
        %v1114 = vpack.c.b16 %v1099, %v1098
        %v1115 = vpack.c.b16 %v1101, %v1100
        %v1116 = vpack.c.b16 %v1103, %v1102
        %v1117 = vpack.c.b16 %v1105, %v1104
        %v1118 = vpack.c.b16 %v1107, %v1106
        %v1119 = vpack.c.b16 %v1109, %v1108
        %v1120 = vpack.c.b16 %v1111, %v1110
        %v1121 = vpack.c.b16 %v1113, %v1112
        %1130 = vmatprep.subr.bf16.mxu0 0
        %1131 = vmatpush1.bf16.msra.mxu0 %v1114
        %1132 = vmatprep.subr.bf16.mxu0 0
        %1133 = vmatpush1.bf16.msra.mxu0 %v1115
        %1134 = vmatprep.subr.bf16.mxu0 0
        %1135 = vmatpush1.bf16.msra.mxu0 %v1116
        %1136 = vmatprep.subr.bf16.mxu0 0
        %1137 = vmatpush1.bf16.msra.mxu0 %v1117
        %1138 = vmatprep.subr.bf16.mxu0 0
        %1139 = vmatpush1.bf16.msra.mxu0 %v1118
        %1140 = vmatprep.subr.bf16.mxu0 0
        %1141 = vmatpush1.bf16.msra.mxu0 %v1119
        %1142 = vmatprep.subr.bf16.mxu0 0
        %1143 = vmatpush1.bf16.msra.mxu0 %v1120
        %1144 = vmatprep.subr.bf16.mxu0 0
        %1145 = vmatpush1.bf16.msra.mxu0 %v1121
        %1146 = vmatprep.subr.bf16.mxu0 0
        %1147 = vmatpush1.bf16.msra.mxu0 0
        %1148 = vmatprep.subr.bf16.mxu0 0
        %1149 = vmatpush1.bf16.msra.mxu0 0
        %1150 = vmatprep.subr.bf16.mxu0 0
        %1151 = vmatpush1.bf16.msra.mxu0 0
        %1152 = vmatprep.subr.bf16.mxu0 0
        %1153 = vmatpush1.bf16.msra.mxu0 0
        %1154 = vmatprep.subr.bf16.mxu0 0
        %1155 = vmatpush1.bf16.msra.mxu0 0
        %1156 = vmatprep.subr.bf16.mxu0 0
        %1157 = vmatpush1.bf16.msra.mxu0 0
        %1158 = vmatprep.subr.bf16.mxu0 0
        %1159 = vmatpush1.bf16.msra.mxu0 0
        %1160 = vmatprep.subr.bf16.mxu0 0
        %1161 = vmatpush1.bf16.msra.mxu0 0
        %1162 = vmatprep.mubr.bf16.mxu0 0
        %1163 = vmatmul.mubr.bf16.gmra.mrb[0].mxu0 %v1074
        %v1164 = vpop.f32.mrb[0].mxu0
        %v1165 = vadd.f32 0.0, %v1164
        %v1166 = vpop.f32.mrb[0].mxu0
        %v1167 = vpop.f32.mrb[0].mxu0
        %v1168 = vadd.f32 0.0, %v1167
        %v1169 = vpop.f32.mrb[0].mxu0
        %1170 = vmatprep.mubr.bf16.mxu0 0
        %1171 = vmatmul.mubr.bf16.gmra.mrb[0].mxu0 %v1075
        %v1172 = vpop.f32.mrb[0].mxu0
        %v1173 = vadd.f32 0.0, %v1172
        %v1174 = vpop.f32.mrb[0].mxu0
        %v1175 = vpop.f32.mrb[0].mxu0
        %v1176 = vadd.f32 0.0, %v1175
        %v1177 = vpop.f32.mrb[0].mxu0
        %1178 = vmatprep.mubr.bf16.mxu0 0
        %1179 = vmatmul.mubr.bf16.gmra.mrb[0].mxu0 %v1076
        %v1180 = vpop.f32.mrb[0].mxu0
        %v1181 = vadd.f32 0.0, %v1180
        %v1182 = vpop.f32.mrb[0].mxu0
        %v1183 = vpop.f32.mrb[0].mxu0
        %v1184 = vadd.f32 0.0, %v1183
        %v1185 = vpop.f32.mrb[0].mxu0
        %1186 = vmatprep.mubr.bf16.mxu0 0
        %1187 = vmatmul.mubr.bf16.gmra.mrb[0].mxu0 %v1077
        %v1188 = vpop.f32.mrb[0].mxu0
        %v1189 = vadd.f32 0.0, %v1188
        %v1190 = vpop.f32.mrb[0].mxu0
        %v1191 = vpop.f32.mrb[0].mxu0
        %v1192 = vadd.f32 0.0, %v1191
        %v1193 = vpop.f32.mrb[0].mxu0
        %1194 = vmatprep.mubr.bf16.mxu0 0
        %1195 = vmatmul.mubr.bf16.gmra.mrb[0].mxu0 %v1078
        %v1196 = vpop.f32.mrb[0].mxu0
        %v1197 = vadd.f32 0.0, %v1196
        %v1198 = vpop.f32.mrb[0].mxu0
        %v1199 = vpop.f32.mrb[0].mxu0
        %v1200 = vadd.f32 0.0, %v1199
        %v1201 = vpop.f32.mrb[0].mxu0
        %1202 = vmatprep.mubr.bf16.mxu0 0
        %1203 = vmatmul.mubr.bf16.gmra.mrb[0].mxu0 %v1079
        %v1204 = vpop.f32.mrb[0].mxu0
        %v1205 = vadd.f32 0.0, %v1204
        %v1206 = vpop.f32.mrb[0].mxu0
        %v1207 = vpop.f32.mrb[0].mxu0
        %v1208 = vadd.f32 0.0, %v1207
        %v1209 = vpop.f32.mrb[0].mxu0
        %1210 = vmatprep.mubr.bf16.mxu0 0
        %1211 = vmatmul.mubr.bf16.gmra.mrb[0].mxu0 %v1080
        %v1212 = vpop.f32.mrb[0].mxu0
        %v1213 = vadd.f32 0.0, %v1212
        %v1214 = vpop.f32.mrb[0].mxu0
        %v1215 = vpop.f32.mrb[0].mxu0
        %v1216 = vadd.f32 0.0, %v1215
        %v1217 = vpop.f32.mrb[0].mxu0
        %1218 = vmatprep.mubr.bf16.mxu0 0
        %1219 = vmatmul.mubr.bf16.gmra.mrb[0].mxu0 %v1081
        %v1220 = vpop.f32.mrb[0].mxu0
        %v1221 = vadd.f32 0.0, %v1220
        %v1222 = vpop.f32.mrb[0].mxu0
        %v1223 = vpop.f32.mrb[0].mxu0
        %v1224 = vadd.f32 0.0, %v1223
        %v1225 = vpop.f32.mrb[0].mxu0
        %1226 = vdwg.mxu0
        %v1227 = vadd.f32 %v1058, %v1165
        %v1228 = vadd.f32 %v1059, %v1168
        %v1229 = vadd.f32 %v1060, %v1173
        %v1230 = vadd.f32 %v1061, %v1176
        %v1231 = vadd.f32 %v1062, %v1181
        %v1232 = vadd.f32 %v1063, %v1184
        %v1233 = vadd.f32 %v1064, %v1189
        %v1234 = vadd.f32 %v1065, %v1192
        %v1235 = vadd.f32 %v1066, %v1197
        %v1236 = vadd.f32 %v1067, %v1200
        %v1237 = vadd.f32 %v1068, %v1205
        %v1238 = vadd.f32 %v1069, %v1208
        %v1239 = vadd.f32 %v1070, %v1213
        %v1240 = vadd.f32 %v1071, %v1216
        %v1241 = vadd.f32 %v1072, %v1221
        %v1242 = vadd.f32 %v1073, %v1224
        %vm1243 = vcmask 261120
        %1244 = vst.msk [vmem:[#allocation4] sm:$0xff] %vm1243, %v1227
        %1245 = vst.msk [vmem:[#allocation4 + $0x8] sm:$0xff] %vm1243, %v1228
        %1246 = vst.msk [vmem:[#allocation4 + $0x10] sm:$0xff] %vm1243, %v1229
        %1247 = vst.msk [vmem:[#allocation4 + $0x18] sm:$0xff] %vm1243, %v1230
        %1248 = vst.msk [vmem:[#allocation4 + $0x20] sm:$0xff] %vm1243, %v1231
        %1249 = vst.msk [vmem:[#allocation4 + $0x28] sm:$0xff] %vm1243, %v1232
        %1250 = vst.msk [vmem:[#allocation4 + $0x30] sm:$0xff] %vm1243, %v1233
        %1251 = vst.msk [vmem:[#allocation4 + $0x38] sm:$0xff] %vm1243, %v1234
        %1252 = vst.msk [vmem:[#allocation4 + $0x40] sm:$0xff] %vm1243, %v1235
        %1253 = vst.msk [vmem:[#allocation4 + $0x48] sm:$0xff] %vm1243, %v1236
        %1254 = vst.msk [vmem:[#allocation4 + $0x50] sm:$0xff] %vm1243, %v1237
        %1255 = vst.msk [vmem:[#allocation4 + $0x58] sm:$0xff] %vm1243, %v1238
        %1256 = vst.msk [vmem:[#allocation4 + $0x60] sm:$0xff] %vm1243, %v1239
        %1257 = vst.msk [vmem:[#allocation4 + $0x68] sm:$0xff] %vm1243, %v1240
        %1258 = vst.msk [vmem:[#allocation4 + $0x70] sm:$0xff] %vm1243, %v1241
        %1259 = vst.msk [vmem:[#allocation4 + $0x78] sm:$0xff] %vm1243, %v1242
        %1260 = vst.msk [vmem:[#allocation2] sm:$0xff] %vm945, %v673
        %1261 = vst.msk [vmem:[#allocation2 + $0x8] sm:$0xff] %vm945, %v674
        %1262 = vst.msk [vmem:[#allocation2 + $0x10] sm:$0xff] %vm945, %v675
        %1263 = vst.msk [vmem:[#allocation2 + $0x18] sm:$0xff] %vm945, %v676
        %1264 = vst.msk [vmem:[#allocation2 + $0x20] sm:$0xff] %vm945, %v677
        %1265 = vst.msk [vmem:[#allocation2 + $0x28] sm:$0xff] %vm945, %v678
        %1266 = vst.msk [vmem:[#allocation2 + $0x30] sm:$0xff] %vm945, %v679
        %1267 = vst.msk [vmem:[#allocation2 + $0x38] sm:$0xff] %vm945, %v680
        %1268 = vst.msk [vmem:[#allocation2 + $0x40] sm:$0xff] %vm945, %v681
        %1269 = vst.msk [vmem:[#allocation2 + $0x48] sm:$0xff] %vm945, %v682
        %1270 = vst.msk [vmem:[#allocation2 + $0x50] sm:$0xff] %vm945, %v683
        %1271 = vst.msk [vmem:[#allocation2 + $0x58] sm:$0xff] %vm945, %v684
        %1272 = vst.msk [vmem:[#allocation2 + $0x60] sm:$0xff] %vm945, %v685
        %1273 = vst.msk [vmem:[#allocation2 + $0x68] sm:$0xff] %vm945, %v686
        %1274 = vst.msk [vmem:[#allocation2 + $0x70] sm:$0xff] %vm945, %v687
        %1275 = vst.msk [vmem:[#allocation2 + $0x78] sm:$0xff] %vm945, %v688
        %1276 = vset.pattern.permute.xlu0 1
        %1277 = vperm.xlu0 %1276, %v445
        %v1278 = vpop.permute.xlu0 %1277
        %1280 = vset.pattern.permute.xlu0 1
        %1281 = vperm.xlu0 %1280, %v446
        %v1282 = vpop.permute.xlu0 %1281
        %1284 = vset.pattern.permute.xlu0 1
        %1285 = vperm.xlu0 %1284, %v447
        %v1286 = vpop.permute.xlu0 %1285
        %1288 = vset.pattern.permute.xlu0 1
        %1289 = vperm.xlu0 %1288, %v448
        %v1290 = vpop.permute.xlu0 %1289
        %1292 = vset.pattern.permute.xlu0 1
        %1293 = vperm.xlu0 %1292, %v449
        %v1294 = vpop.permute.xlu0 %1293
        %1296 = vset.pattern.permute.xlu0 1
        %1297 = vperm.xlu0 %1296, %v450
        %v1298 = vpop.permute.xlu0 %1297
        %1300 = vset.pattern.permute.xlu0 1
        %1301 = vperm.xlu0 %1300, %v451
        %v1302 = vpop.permute.xlu0 %1301
        %1304 = vset.pattern.permute.xlu0 1
        %1305 = vperm.xlu0 %1304, %v452
        %v1306 = vpop.permute.xlu0 %1305
        %1308 = vset.pattern.permute.xlu0 1
        %1309 = vperm.xlu0 %1308, %v453
        %v1310 = vpop.permute.xlu0 %1309
        %1312 = vset.pattern.permute.xlu0 1
        %1313 = vperm.xlu0 %1312, %v454
        %v1314 = vpop.permute.xlu0 %1313
        %1316 = vset.pattern.permute.xlu0 1
        %1317 = vperm.xlu0 %1316, %v455
        %v1318 = vpop.permute.xlu0 %1317
        %1320 = vset.pattern.permute.xlu0 1
        %1321 = vperm.xlu0 %1320, %v456
        %v1322 = vpop.permute.xlu0 %1321
        %1324 = vset.pattern.permute.xlu0 1
        %1325 = vperm.xlu0 %1324, %v457
        %v1326 = vpop.permute.xlu0 %1325
        %1328 = vset.pattern.permute.xlu0 1
        %1329 = vperm.xlu0 %1328, %v458
        %v1330 = vpop.permute.xlu0 %1329
        %1332 = vset.pattern.permute.xlu0 1
        %1333 = vperm.xlu0 %1332, %v459
        %v1334 = vpop.permute.xlu0 %1333
        %1336 = vset.pattern.permute.xlu0 1
        %1337 = vperm.xlu0 %1336, %v460
        %v1338 = vpop.permute.xlu0 %1337
        %v1340 = vlaneseq
        %v1341 = vshrl.u32 %v1340, 7
        %v1342 = vsub.s32 1, %v1341
        %v1343 = vrot.slane %v444, %v1342
        %v1344 = vadd.f32 %v1278, %v1343
        %v1345 = vadd.f32 %v1282, %v1343
        %v1346 = vadd.f32 %v1286, %v1343
        %v1347 = vadd.f32 %v1290, %v1343
        %v1348 = vadd.f32 %v1294, %v1343
        %v1349 = vadd.f32 %v1298, %v1343
        %v1350 = vadd.f32 %v1302, %v1343
        %v1351 = vadd.f32 %v1306, %v1343
        %v1352 = vadd.f32 %v1310, %v1343
        %v1353 = vadd.f32 %v1314, %v1343
        %v1354 = vadd.f32 %v1318, %v1343
        %v1355 = vadd.f32 %v1322, %v1343
        %v1356 = vadd.f32 %v1326, %v1343
        %v1357 = vadd.f32 %v1330, %v1343
        %v1358 = vadd.f32 %v1334, %v1343
        %v1359 = vadd.f32 %v1338, %v1343
        %v1360 = vmul.f32 %v1344, 0.2
        %v1361 = vmul.f32 %v1345, 0.2
        %v1362 = vmul.f32 %v1346, 0.2
        %v1363 = vmul.f32 %v1347, 0.2
        %v1364 = vmul.f32 %v1348, 0.2
        %v1365 = vmul.f32 %v1349, 0.2
        %v1366 = vmul.f32 %v1350, 0.2
        %v1367 = vmul.f32 %v1351, 0.2
        %v1368 = vmul.f32 %v1352, 0.2
        %v1369 = vmul.f32 %v1353, 0.2
        %v1370 = vmul.f32 %v1354, 0.2
        %v1371 = vmul.f32 %v1355, 0.2
        %v1372 = vmul.f32 %v1356, 0.2
        %v1373 = vmul.f32 %v1357, 0.2
        %v1374 = vmul.f32 %v1358, 0.2
        %v1375 = vmul.f32 %v1359, 0.2
        %v1376 = vmax.f32 %v1344, %v1360
        %v1377 = vmax.f32 %v1345, %v1361
        %v1378 = vmax.f32 %v1346, %v1362
        %v1379 = vmax.f32 %v1347, %v1363
        %v1380 = vmax.f32 %v1348, %v1364
        %v1381 = vmax.f32 %v1349, %v1365
        %v1382 = vmax.f32 %v1350, %v1366
        %v1383 = vmax.f32 %v1351, %v1367
        %v1384 = vmax.f32 %v1352, %v1368
        %v1385 = vmax.f32 %v1353, %v1369
        %v1386 = vmax.f32 %v1354, %v1370
        %v1387 = vmax.f32 %v1355, %v1371
        %v1388 = vmax.f32 %v1356, %v1372
        %v1389 = vmax.f32 %v1357, %v1373
        %v1390 = vmax.f32 %v1358, %v1374
        %v1391 = vmax.f32 %v1359, %v1375
        %v1392 = vadd.f32 %v1376, %v428
        %v1393 = vadd.f32 %v1377, %v429
        %v1394 = vadd.f32 %v1378, %v430
        %v1395 = vadd.f32 %v1379, %v431
        %v1396 = vadd.f32 %v1380, %v432
        %v1397 = vadd.f32 %v1381, %v433
        %v1398 = vadd.f32 %v1382, %v434
        %v1399 = vadd.f32 %v1383, %v435
        %v1400 = vadd.f32 %v1384, %v436
        %v1401 = vadd.f32 %v1385, %v437
        %v1402 = vadd.f32 %v1386, %v438
        %v1403 = vadd.f32 %v1387, %v439
        %v1404 = vadd.f32 %v1388, %v440
        %v1405 = vadd.f32 %v1389, %v441
        %v1406 = vadd.f32 %v1390, %v442
        %v1407 = vadd.f32 %v1391, %v443
        %v1408 = vld [vmem:[#allocation2] sm:$0xff]
        %v1409 = vld [vmem:[#allocation2 + $0x8] sm:$0xff]
        %v1410 = vld [vmem:[#allocation2 + $0x10] sm:$0xff]
        %v1411 = vld [vmem:[#allocation2 + $0x18] sm:$0xff]
        %v1412 = vld [vmem:[#allocation2 + $0x20] sm:$0xff]
        %v1413 = vld [vmem:[#allocation2 + $0x28] sm:$0xff]
        %v1414 = vld [vmem:[#allocation2 + $0x30] sm:$0xff]
        %v1415 = vld [vmem:[#allocation2 + $0x38] sm:$0xff]
        %v1416 = vld [vmem:[#allocation2 + $0x40] sm:$0xff]
        %v1417 = vld [vmem:[#allocation2 + $0x48] sm:$0xff]
        %v1418 = vld [vmem:[#allocation2 + $0x50] sm:$0xff]
        %v1419 = vld [vmem:[#allocation2 + $0x58] sm:$0xff]
        %v1420 = vld [vmem:[#allocation2 + $0x60] sm:$0xff]
        %v1421 = vld [vmem:[#allocation2 + $0x68] sm:$0xff]
        %v1422 = vld [vmem:[#allocation2 + $0x70] sm:$0xff]
        %v1423 = vld [vmem:[#allocation2 + $0x78] sm:$0xff]
        %1424 = vmax.xlane.f32.xlu0 %v1392
        %v1425 = vpop.xlane.xlu0 %1424
        %1426 = vmax.xlane.f32.xlu0 %v1393
        %v1427 = vpop.xlane.xlu0 %1426
        %1428 = vmax.xlane.f32.xlu0 %v1394
        %v1429 = vpop.xlane.xlu0 %1428
        %1430 = vmax.xlane.f32.xlu0 %v1395
        %v1431 = vpop.xlane.xlu0 %1430
        %1432 = vmax.xlane.f32.xlu0 %v1396
        %v1433 = vpop.xlane.xlu0 %1432
        %1434 = vmax.xlane.f32.xlu0 %v1397
        %v1435 = vpop.xlane.xlu0 %1434
        %1436 = vmax.xlane.f32.xlu0 %v1398
        %v1437 = vpop.xlane.xlu0 %1436
        %1438 = vmax.xlane.f32.xlu0 %v1399
        %v1439 = vpop.xlane.xlu0 %1438
        %1440 = vmax.xlane.f32.xlu0 %v1400
        %v1441 = vpop.xlane.xlu0 %1440
        %1442 = vmax.xlane.f32.xlu0 %v1401
        %v1443 = vpop.xlane.xlu0 %1442
        %1444 = vmax.xlane.f32.xlu0 %v1402
        %v1445 = vpop.xlane.xlu0 %1444
        %1446 = vmax.xlane.f32.xlu0 %v1403
        %v1447 = vpop.xlane.xlu0 %1446
        %1448 = vmax.xlane.f32.xlu0 %v1404
        %v1449 = vpop.xlane.xlu0 %1448
        %1450 = vmax.xlane.f32.xlu0 %v1405
        %v1451 = vpop.xlane.xlu0 %1450
        %1452 = vmax.xlane.f32.xlu0 %v1406
        %v1453 = vpop.xlane.xlu0 %1452
        %1454 = vmax.xlane.f32.xlu0 %v1407
        %v1455 = vpop.xlane.xlu0 %1454
        %v1456 = vmax.f32 %v1408, %v1425
        %v1457 = vmax.f32 %v1409, %v1427
        %v1458 = vmax.f32 %v1410, %v1429
        %v1459 = vmax.f32 %v1411, %v1431
        %v1460 = vmax.f32 %v1412, %v1433
        %v1461 = vmax.f32 %v1413, %v1435
        %v1462 = vmax.f32 %v1414, %v1437
        %v1463 = vmax.f32 %v1415, %v1439
        %v1464 = vmax.f32 %v1416, %v1441
        %v1465 = vmax.f32 %v1417, %v1443
        %v1466 = vmax.f32 %v1418, %v1445
        %v1467 = vmax.f32 %v1419, %v1447
        %v1468 = vmax.f32 %v1420, %v1449
        %v1469 = vmax.f32 %v1421, %v1451
        %v1470 = vmax.f32 %v1422, %v1453
        %v1471 = vmax.f32 %v1423, %v1455
        %v1472 = vsub.f32 %v1408, %v1456
        %v1473 = vsub.f32 %v1409, %v1457
        %v1474 = vsub.f32 %v1410, %v1458
        %v1475 = vsub.f32 %v1411, %v1459
        %v1476 = vsub.f32 %v1412, %v1460
        %v1477 = vsub.f32 %v1413, %v1461
        %v1478 = vsub.f32 %v1414, %v1462
        %v1479 = vsub.f32 %v1415, %v1463
        %v1480 = vsub.f32 %v1416, %v1464
        %v1481 = vsub.f32 %v1417, %v1465
        %v1482 = vsub.f32 %v1418, %v1466
        %v1483 = vsub.f32 %v1419, %v1467
        %v1484 = vsub.f32 %v1420, %v1468
        %v1485 = vsub.f32 %v1421, %v1469
        %v1486 = vsub.f32 %v1422, %v1470
        %v1487 = vsub.f32 %v1423, %v1471
        %v1488 = vmul.f32 %v1472, 1.442695
        %v1489 = vpow.pop %v1488
        %v1490 = vmul.f32 %v1473, 1.442695
        %v1491 = vpow.pop %v1490
        %v1492 = vmul.f32 %v1474, 1.442695
        %v1493 = vpow.pop %v1492
        %v1494 = vmul.f32 %v1475, 1.442695
        %v1495 = vpow.pop %v1494
        %v1496 = vmul.f32 %v1476, 1.442695
        %v1497 = vpow.pop %v1496
        %v1498 = vmul.f32 %v1477, 1.442695
        %v1499 = vpow.pop %v1498
        %v1500 = vmul.f32 %v1478, 1.442695
        %v1501 = vpow.pop %v1500
        %v1502 = vmul.f32 %v1479, 1.442695
        %v1503 = vpow.pop %v1502
        %v1504 = vmul.f32 %v1480, 1.442695
        %v1505 = vpow.pop %v1504
        %v1506 = vmul.f32 %v1481, 1.442695
        %v1507 = vpow.pop %v1506
        %v1508 = vmul.f32 %v1482, 1.442695
        %v1509 = vpow.pop %v1508
        %v1510 = vmul.f32 %v1483, 1.442695
        %v1511 = vpow.pop %v1510
        %v1512 = vmul.f32 %v1484, 1.442695
        %v1513 = vpow.pop %v1512
        %v1514 = vmul.f32 %v1485, 1.442695
        %v1515 = vpow.pop %v1514
        %v1516 = vmul.f32 %v1486, 1.442695
        %v1517 = vpow.pop %v1516
        %v1518 = vmul.f32 %v1487, 1.442695
        %v1519 = vpow.pop %v1518
        %1521 = vset.pattern.permute.xlu0 1
        %1522 = vperm.xlu0 %1521, %v1456
        %v1523 = vpop.permute.xlu0 %1522
        %1526 = vset.pattern.permute.xlu0 1
        %1527 = vperm.xlu0 %1526, %v1457
        %v1528 = vpop.permute.xlu0 %1527
        %1531 = vset.pattern.permute.xlu0 1
        %1532 = vperm.xlu0 %1531, %v1458
        %v1533 = vpop.permute.xlu0 %1532
        %1536 = vset.pattern.permute.xlu0 1
        %1537 = vperm.xlu0 %1536, %v1459
        %v1538 = vpop.permute.xlu0 %1537
        %1541 = vset.pattern.permute.xlu0 1
        %1542 = vperm.xlu0 %1541, %v1460
        %v1543 = vpop.permute.xlu0 %1542
        %1546 = vset.pattern.permute.xlu0 1
        %1547 = vperm.xlu0 %1546, %v1461
        %v1548 = vpop.permute.xlu0 %1547
        %1551 = vset.pattern.permute.xlu0 1
        %1552 = vperm.xlu0 %1551, %v1462
        %v1553 = vpop.permute.xlu0 %1552
        %1556 = vset.pattern.permute.xlu0 1
        %1557 = vperm.xlu0 %1556, %v1463
        %v1558 = vpop.permute.xlu0 %1557
        %1561 = vset.pattern.permute.xlu0 1
        %1562 = vperm.xlu0 %1561, %v1464
        %v1563 = vpop.permute.xlu0 %1562
        %1566 = vset.pattern.permute.xlu0 1
        %1567 = vperm.xlu0 %1566, %v1465
        %v1568 = vpop.permute.xlu0 %1567
        %1571 = vset.pattern.permute.xlu0 1
        %1572 = vperm.xlu0 %1571, %v1466
        %v1573 = vpop.permute.xlu0 %1572
        %1576 = vset.pattern.permute.xlu0 1
        %1577 = vperm.xlu0 %1576, %v1467
        %v1578 = vpop.permute.xlu0 %1577
        %1581 = vset.pattern.permute.xlu0 1
        %1582 = vperm.xlu0 %1581, %v1468
        %v1583 = vpop.permute.xlu0 %1582
        %1586 = vset.pattern.permute.xlu0 1
        %1587 = vperm.xlu0 %1586, %v1469
        %v1588 = vpop.permute.xlu0 %1587
        %1591 = vset.pattern.permute.xlu0 1
        %1592 = vperm.xlu0 %1591, %v1470
        %v1593 = vpop.permute.xlu0 %1592
        %1596 = vset.pattern.permute.xlu0 1
        %1597 = vperm.xlu0 %1596, %v1471
        %v1598 = vpop.permute.xlu0 %1597
        %v1600 = vsub.f32 %v1392, %v1523
        %v1601 = vsub.f32 %v1393, %v1528
        %v1602 = vsub.f32 %v1394, %v1533
        %v1603 = vsub.f32 %v1395, %v1538
        %v1604 = vsub.f32 %v1396, %v1543
        %v1605 = vsub.f32 %v1397, %v1548
        %v1606 = vsub.f32 %v1398, %v1553
        %v1607 = vsub.f32 %v1399, %v1558
        %v1608 = vsub.f32 %v1400, %v1563
        %v1609 = vsub.f32 %v1401, %v1568
        %v1610 = vsub.f32 %v1402, %v1573
        %v1611 = vsub.f32 %v1403, %v1578
        %v1612 = vsub.f32 %v1404, %v1583
        %v1613 = vsub.f32 %v1405, %v1588
        %v1614 = vsub.f32 %v1406, %v1593
        %v1615 = vsub.f32 %v1407, %v1598
        %v1616 = vmul.f32 %v1600, 1.442695
        %v1617 = vpow.pop %v1616
        %v1618 = vmul.f32 %v1601, 1.442695
        %v1619 = vpow.pop %v1618
        %v1620 = vmul.f32 %v1602, 1.442695
        %v1621 = vpow.pop %v1620
        %v1622 = vmul.f32 %v1603, 1.442695
        %v1623 = vpow.pop %v1622
        %v1624 = vmul.f32 %v1604, 1.442695
        %v1625 = vpow.pop %v1624
        %v1626 = vmul.f32 %v1605, 1.442695
        %v1627 = vpow.pop %v1626
        %v1628 = vmul.f32 %v1606, 1.442695
        %v1629 = vpow.pop %v1628
        %v1630 = vmul.f32 %v1607, 1.442695
        %v1631 = vpow.pop %v1630
        %v1632 = vmul.f32 %v1608, 1.442695
        %v1633 = vpow.pop %v1632
        %v1634 = vmul.f32 %v1609, 1.442695
        %v1635 = vpow.pop %v1634
        %v1636 = vmul.f32 %v1610, 1.442695
        %v1637 = vpow.pop %v1636
        %v1638 = vmul.f32 %v1611, 1.442695
        %v1639 = vpow.pop %v1638
        %v1640 = vmul.f32 %v1612, 1.442695
        %v1641 = vpow.pop %v1640
        %v1642 = vmul.f32 %v1613, 1.442695
        %v1643 = vpow.pop %v1642
        %v1644 = vmul.f32 %v1614, 1.442695
        %v1645 = vpow.pop %v1644
        %v1646 = vmul.f32 %v1615, 1.442695
        %v1647 = vpow.pop %v1646
        %v1648 = vld [vmem:[#allocation3] sm:$0xff]
        %v1649 = vld [vmem:[#allocation3 + $0x8] sm:$0xff]
        %v1650 = vld [vmem:[#allocation3 + $0x10] sm:$0xff]
        %v1651 = vld [vmem:[#allocation3 + $0x18] sm:$0xff]
        %v1652 = vld [vmem:[#allocation3 + $0x20] sm:$0xff]
        %v1653 = vld [vmem:[#allocation3 + $0x28] sm:$0xff]
        %v1654 = vld [vmem:[#allocation3 + $0x30] sm:$0xff]
        %v1655 = vld [vmem:[#allocation3 + $0x38] sm:$0xff]
        %v1656 = vld [vmem:[#allocation3 + $0x40] sm:$0xff]
        %v1657 = vld [vmem:[#allocation3 + $0x48] sm:$0xff]
        %v1658 = vld [vmem:[#allocation3 + $0x50] sm:$0xff]
        %v1659 = vld [vmem:[#allocation3 + $0x58] sm:$0xff]
        %v1660 = vld [vmem:[#allocation3 + $0x60] sm:$0xff]
        %v1661 = vld [vmem:[#allocation3 + $0x68] sm:$0xff]
        %v1662 = vld [vmem:[#allocation3 + $0x70] sm:$0xff]
        %v1663 = vld [vmem:[#allocation3 + $0x78] sm:$0xff]
        %v1664 = vmul.f32 %v1489, %v1648
        %v1665 = vmul.f32 %v1491, %v1649
        %v1666 = vmul.f32 %v1493, %v1650
        %v1667 = vmul.f32 %v1495, %v1651
        %v1668 = vmul.f32 %v1497, %v1652
        %v1669 = vmul.f32 %v1499, %v1653
        %v1670 = vmul.f32 %v1501, %v1654
        %v1671 = vmul.f32 %v1503, %v1655
        %v1672 = vmul.f32 %v1505, %v1656
        %v1673 = vmul.f32 %v1507, %v1657
        %v1674 = vmul.f32 %v1509, %v1658
        %v1675 = vmul.f32 %v1511, %v1659
        %v1676 = vmul.f32 %v1513, %v1660
        %v1677 = vmul.f32 %v1515, %v1661
        %v1678 = vmul.f32 %v1517, %v1662
        %v1679 = vmul.f32 %v1519, %v1663
        %1680 = vadd.xlane.f32.xlu0 %v1617
        %v1681 = vpop.xlane.xlu0 %1680
        %1682 = vadd.xlane.f32.xlu0 %v1619
        %v1683 = vpop.xlane.xlu0 %1682
        %1684 = vadd.xlane.f32.xlu0 %v1621
        %v1685 = vpop.xlane.xlu0 %1684
        %1686 = vadd.xlane.f32.xlu0 %v1623
        %v1687 = vpop.xlane.xlu0 %1686
        %1688 = vadd.xlane.f32.xlu0 %v1625
        %v1689 = vpop.xlane.xlu0 %1688
        %1690 = vadd.xlane.f32.xlu0 %v1627
        %v1691 = vpop.xlane.xlu0 %1690
        %1692 = vadd.xlane.f32.xlu0 %v1629
        %v1693 = vpop.xlane.xlu0 %1692
        %1694 = vadd.xlane.f32.xlu0 %v1631
        %v1695 = vpop.xlane.xlu0 %1694
        %1696 = vadd.xlane.f32.xlu0 %v1633
        %v1697 = vpop.xlane.xlu0 %1696
        %1698 = vadd.xlane.f32.xlu0 %v1635
        %v1699 = vpop.xlane.xlu0 %1698
        %1700 = vadd.xlane.f32.xlu0 %v1637
        %v1701 = vpop.xlane.xlu0 %1700
        %1702 = vadd.xlane.f32.xlu0 %v1639
        %v1703 = vpop.xlane.xlu0 %1702
        %1704 = vadd.xlane.f32.xlu0 %v1641
        %v1705 = vpop.xlane.xlu0 %1704
        %1706 = vadd.xlane.f32.xlu0 %v1643
        %v1707 = vpop.xlane.xlu0 %1706
        %1708 = vadd.xlane.f32.xlu0 %v1645
        %v1709 = vpop.xlane.xlu0 %1708
        %1710 = vadd.xlane.f32.xlu0 %v1647
        %v1711 = vpop.xlane.xlu0 %1710
        %v1712 = vadd.f32 %v1664, %v1681
        %v1713 = vadd.f32 %v1665, %v1683
        %v1714 = vadd.f32 %v1666, %v1685
        %v1715 = vadd.f32 %v1667, %v1687
        %v1716 = vadd.f32 %v1668, %v1689
        %v1717 = vadd.f32 %v1669, %v1691
        %v1718 = vadd.f32 %v1670, %v1693
        %v1719 = vadd.f32 %v1671, %v1695
        %v1720 = vadd.f32 %v1672, %v1697
        %v1721 = vadd.f32 %v1673, %v1699
        %v1722 = vadd.f32 %v1674, %v1701
        %v1723 = vadd.f32 %v1675, %v1703
        %v1724 = vadd.f32 %v1676, %v1705
        %v1725 = vadd.f32 %v1677, %v1707
        %v1726 = vadd.f32 %v1678, %v1709
        %v1727 = vadd.f32 %v1679, %v1711
        %vm1728 = vcmask 15368
        %1729 = vst.msk [vmem:[#allocation3] sm:$0xff] %vm1728, %v1712
        %1730 = vst.msk [vmem:[#allocation3 + $0x8] sm:$0xff] %vm1728, %v1713
        %1731 = vst.msk [vmem:[#allocation3 + $0x10] sm:$0xff] %vm1728, %v1714
        %1732 = vst.msk [vmem:[#allocation3 + $0x18] sm:$0xff] %vm1728, %v1715
        %1733 = vst.msk [vmem:[#allocation3 + $0x20] sm:$0xff] %vm1728, %v1716
        %1734 = vst.msk [vmem:[#allocation3 + $0x28] sm:$0xff] %vm1728, %v1717
        %1735 = vst.msk [vmem:[#allocation3 + $0x30] sm:$0xff] %vm1728, %v1718
        %1736 = vst.msk [vmem:[#allocation3 + $0x38] sm:$0xff] %vm1728, %v1719
        %1737 = vst.msk [vmem:[#allocation3 + $0x40] sm:$0xff] %vm1728, %v1720
        %1738 = vst.msk [vmem:[#allocation3 + $0x48] sm:$0xff] %vm1728, %v1721
        %1739 = vst.msk [vmem:[#allocation3 + $0x50] sm:$0xff] %vm1728, %v1722
        %1740 = vst.msk [vmem:[#allocation3 + $0x58] sm:$0xff] %vm1728, %v1723
        %1741 = vst.msk [vmem:[#allocation3 + $0x60] sm:$0xff] %vm1728, %v1724
        %1742 = vst.msk [vmem:[#allocation3 + $0x68] sm:$0xff] %vm1728, %v1725
        %1743 = vst.msk [vmem:[#allocation3 + $0x70] sm:$0xff] %vm1728, %v1726
        %1744 = vst.msk [vmem:[#allocation3 + $0x78] sm:$0xff] %vm1728, %v1727
        %v1745 = vld [vmem:[#allocation4] sm:$0xff]
        %v1746 = vld [vmem:[#allocation4 + $0x8] sm:$0xff]
        %v1747 = vld [vmem:[#allocation4 + $0x10] sm:$0xff]
        %v1748 = vld [vmem:[#allocation4 + $0x18] sm:$0xff]
        %v1749 = vld [vmem:[#allocation4 + $0x20] sm:$0xff]
        %v1750 = vld [vmem:[#allocation4 + $0x28] sm:$0xff]
        %v1751 = vld [vmem:[#allocation4 + $0x30] sm:$0xff]
        %v1752 = vld [vmem:[#allocation4 + $0x38] sm:$0xff]
        %v1753 = vld [vmem:[#allocation4 + $0x40] sm:$0xff]
        %v1754 = vld [vmem:[#allocation4 + $0x48] sm:$0xff]
        %v1755 = vld [vmem:[#allocation4 + $0x50] sm:$0xff]
        %v1756 = vld [vmem:[#allocation4 + $0x58] sm:$0xff]
        %v1757 = vld [vmem:[#allocation4 + $0x60] sm:$0xff]
        %v1758 = vld [vmem:[#allocation4 + $0x68] sm:$0xff]
        %v1759 = vld [vmem:[#allocation4 + $0x70] sm:$0xff]
        %v1760 = vld [vmem:[#allocation4 + $0x78] sm:$0xff]
        %1762 = vset.pattern.permute.xlu0 1
        %1763 = vperm.xlu0 %1762, %v1489
        %v1764 = vpop.permute.xlu0 %1763
        %1767 = vset.pattern.permute.xlu0 1
        %1768 = vperm.xlu0 %1767, %v1491
        %v1769 = vpop.permute.xlu0 %1768
        %1772 = vset.pattern.permute.xlu0 1
        %1773 = vperm.xlu0 %1772, %v1493
        %v1774 = vpop.permute.xlu0 %1773
        %1777 = vset.pattern.permute.xlu0 1
        %1778 = vperm.xlu0 %1777, %v1495
        %v1779 = vpop.permute.xlu0 %1778
        %1782 = vset.pattern.permute.xlu0 1
        %1783 = vperm.xlu0 %1782, %v1497
        %v1784 = vpop.permute.xlu0 %1783
        %1787 = vset.pattern.permute.xlu0 1
        %1788 = vperm.xlu0 %1787, %v1499
        %v1789 = vpop.permute.xlu0 %1788
        %1792 = vset.pattern.permute.xlu0 1
        %1793 = vperm.xlu0 %1792, %v1501
        %v1794 = vpop.permute.xlu0 %1793
        %1797 = vset.pattern.permute.xlu0 1
        %1798 = vperm.xlu0 %1797, %v1503
        %v1799 = vpop.permute.xlu0 %1798
        %1802 = vset.pattern.permute.xlu0 1
        %1803 = vperm.xlu0 %1802, %v1505
        %v1804 = vpop.permute.xlu0 %1803
        %1807 = vset.pattern.permute.xlu0 1
        %1808 = vperm.xlu0 %1807, %v1507
        %v1809 = vpop.permute.xlu0 %1808
        %1812 = vset.pattern.permute.xlu0 1
        %1813 = vperm.xlu0 %1812, %v1509
        %v1814 = vpop.permute.xlu0 %1813
        %1817 = vset.pattern.permute.xlu0 1
        %1818 = vperm.xlu0 %1817, %v1511
        %v1819 = vpop.permute.xlu0 %1818
        %1822 = vset.pattern.permute.xlu0 1
        %1823 = vperm.xlu0 %1822, %v1513
        %v1824 = vpop.permute.xlu0 %1823
        %1827 = vset.pattern.permute.xlu0 1
        %1828 = vperm.xlu0 %1827, %v1515
        %v1829 = vpop.permute.xlu0 %1828
        %1832 = vset.pattern.permute.xlu0 1
        %1833 = vperm.xlu0 %1832, %v1517
        %v1834 = vpop.permute.xlu0 %1833
        %1837 = vset.pattern.permute.xlu0 1
        %1838 = vperm.xlu0 %1837, %v1519
        %v1839 = vpop.permute.xlu0 %1838
        %v1841 = vmul.f32 %v1764, %v1745
        %v1842 = vmul.f32 %v1769, %v1746
        %v1843 = vmul.f32 %v1774, %v1747
        %v1844 = vmul.f32 %v1779, %v1748
        %v1845 = vmul.f32 %v1784, %v1749
        %v1846 = vmul.f32 %v1789, %v1750
        %v1847 = vmul.f32 %v1794, %v1751
        %v1848 = vmul.f32 %v1799, %v1752
        %v1849 = vmul.f32 %v1804, %v1753
        %v1850 = vmul.f32 %v1809, %v1754
        %v1851 = vmul.f32 %v1814, %v1755
        %v1852 = vmul.f32 %v1819, %v1756
        %v1853 = vmul.f32 %v1824, %v1757
        %v1854 = vmul.f32 %v1829, %v1758
        %v1855 = vmul.f32 %v1834, %v1759
        %v1856 = vmul.f32 %v1839, %v1760
        %v1857 = vpack.c.bf16 %v1619, %v1617
        %v1858 = vpack.c.bf16 %v1623, %v1621
        %v1859 = vpack.c.bf16 %v1627, %v1625
        %v1860 = vpack.c.bf16 %v1631, %v1629
        %v1861 = vpack.c.bf16 %v1635, %v1633
        %v1862 = vpack.c.bf16 %v1639, %v1637
        %v1863 = vpack.c.bf16 %v1643, %v1641
        %v1864 = vpack.c.bf16 %v1647, %v1645
        %1865 = vrot.lane.b32.xlu0 %v1114, 96
        %v1866 = vpop.permute.xlu0 %1865
        %1867 = vrot.lane.b32.xlu0 %v1115, 96
        %v1868 = vpop.permute.xlu0 %1867
        %1869 = vrot.lane.b32.xlu0 %v1116, 96
        %v1870 = vpop.permute.xlu0 %1869
        %1871 = vrot.lane.b32.xlu0 %v1117, 96
        %v1872 = vpop.permute.xlu0 %1871
        %1873 = vrot.lane.b32.xlu0 %v1118, 96
        %v1874 = vpop.permute.xlu0 %1873
        %1875 = vrot.lane.b32.xlu0 %v1119, 96
        %v1876 = vpop.permute.xlu0 %1875
        %1877 = vrot.lane.b32.xlu0 %v1120, 96
        %v1878 = vpop.permute.xlu0 %1877
        %1879 = vrot.lane.b32.xlu0 %v1121, 96
        %v1880 = vpop.permute.xlu0 %1879
        %1889 = vmatprep.subr.bf16.mxu0 0
        %1890 = vmatpush1.bf16.msra.mxu0 %v1866
        %1891 = vmatprep.subr.bf16.mxu0 0
        %1892 = vmatpush1.bf16.msra.mxu0 %v1868
        %1893 = vmatprep.subr.bf16.mxu0 0
        %1894 = vmatpush1.bf16.msra.mxu0 %v1870
        %1895 = vmatprep.subr.bf16.mxu0 0
        %1896 = vmatpush1.bf16.msra.mxu0 %v1872
        %1897 = vmatprep.subr.bf16.mxu0 0
        %1898 = vmatpush1.bf16.msra.mxu0 %v1874
        %1899 = vmatprep.subr.bf16.mxu0 0
        %1900 = vmatpush1.bf16.msra.mxu0 %v1876
        %1901 = vmatprep.subr.bf16.mxu0 0
        %1902 = vmatpush1.bf16.msra.mxu0 %v1878
        %1903 = vmatprep.subr.bf16.mxu0 0
        %1904 = vmatpush1.bf16.msra.mxu0 %v1880
        %1905 = vmatprep.subr.bf16.mxu0 0
        %1906 = vmatpush1.bf16.msra.mxu0 0
        %1907 = vmatprep.subr.bf16.mxu0 0
        %1908 = vmatpush1.bf16.msra.mxu0 0
        %1909 = vmatprep.subr.bf16.mxu0 0
        %1910 = vmatpush1.bf16.msra.mxu0 0
        %1911 = vmatprep.subr.bf16.mxu0 0
        %1912 = vmatpush1.bf16.msra.mxu0 0
        %1913 = vmatprep.subr.bf16.mxu0 0
        %1914 = vmatpush1.bf16.msra.mxu0 0
        %1915 = vmatprep.subr.bf16.mxu0 0
        %1916 = vmatpush1.bf16.msra.mxu0 0
        %1917 = vmatprep.subr.bf16.mxu0 0
        %1918 = vmatpush1.bf16.msra.mxu0 0
        %1919 = vmatprep.subr.bf16.mxu0 0
        %1920 = vmatpush1.bf16.msra.mxu0 0
        %1921 = vmatprep.mubr.bf16.mxu0 0
        %1922 = vmatmul.mubr.bf16.gmra.mrb[0].mxu0 %v1857
        %v1923 = vpop.f32.mrb[0].mxu0
        %v1924 = vadd.f32 0.0, %v1923
        %v1925 = vpop.f32.mrb[0].mxu0
        %v1926 = vpop.f32.mrb[0].mxu0
        %v1927 = vadd.f32 0.0, %v1926
        %v1928 = vpop.f32.mrb[0].mxu0
        %1929 = vmatprep.mubr.bf16.mxu0 0
        %1930 = vmatmul.mubr.bf16.gmra.mrb[0].mxu0 %v1858
        %v1931 = vpop.f32.mrb[0].mxu0
        %v1932 = vadd.f32 0.0, %v1931
        %v1933 = vpop.f32.mrb[0].mxu0
        %v1934 = vpop.f32.mrb[0].mxu0
        %v1935 = vadd.f32 0.0, %v1934
        %v1936 = vpop.f32.mrb[0].mxu0
        %1937 = vmatprep.mubr.bf16.mxu0 0
        %1938 = vmatmul.mubr.bf16.gmra.mrb[0].mxu0 %v1859
        %v1939 = vpop.f32.mrb[0].mxu0
        %v1940 = vadd.f32 0.0, %v1939
        %v1941 = vpop.f32.mrb[0].mxu0
        %v1942 = vpop.f32.mrb[0].mxu0
        %v1943 = vadd.f32 0.0, %v1942
        %v1944 = vpop.f32.mrb[0].mxu0
        %1945 = vmatprep.mubr.bf16.mxu0 0
        %1946 = vmatmul.mubr.bf16.gmra.mrb[0].mxu0 %v1860
        %v1947 = vpop.f32.mrb[0].mxu0
        %v1948 = vadd.f32 0.0, %v1947
        %v1949 = vpop.f32.mrb[0].mxu0
        %v1950 = vpop.f32.mrb[0].mxu0
        %v1951 = vadd.f32 0.0, %v1950
        %v1952 = vpop.f32.mrb[0].mxu0
        %1953 = vmatprep.mubr.bf16.mxu0 0
        %1954 = vmatmul.mubr.bf16.gmra.mrb[0].mxu0 %v1861
        %v1955 = vpop.f32.mrb[0].mxu0
        %v1956 = vadd.f32 0.0, %v1955
        %v1957 = vpop.f32.mrb[0].mxu0
        %v1958 = vpop.f32.mrb[0].mxu0
        %v1959 = vadd.f32 0.0, %v1958
        %v1960 = vpop.f32.mrb[0].mxu0
        %1961 = vmatprep.mubr.bf16.mxu0 0
        %1962 = vmatmul.mubr.bf16.gmra.mrb[0].mxu0 %v1862
        %v1963 = vpop.f32.mrb[0].mxu0
        %v1964 = vadd.f32 0.0, %v1963
        %v1965 = vpop.f32.mrb[0].mxu0
        %v1966 = vpop.f32.mrb[0].mxu0
        %v1967 = vadd.f32 0.0, %v1966
        %v1968 = vpop.f32.mrb[0].mxu0
        %1969 = vmatprep.mubr.bf16.mxu0 0
        %1970 = vmatmul.mubr.bf16.gmra.mrb[0].mxu0 %v1863
        %v1971 = vpop.f32.mrb[0].mxu0
        %v1972 = vadd.f32 0.0, %v1971
        %v1973 = vpop.f32.mrb[0].mxu0
        %v1974 = vpop.f32.mrb[0].mxu0
        %v1975 = vadd.f32 0.0, %v1974
        %v1976 = vpop.f32.mrb[0].mxu0
        %1977 = vmatprep.mubr.bf16.mxu0 0
        %1978 = vmatmul.mubr.bf16.gmra.mrb[0].mxu0 %v1864
        %v1979 = vpop.f32.mrb[0].mxu0
        %v1980 = vadd.f32 0.0, %v1979
        %v1981 = vpop.f32.mrb[0].mxu0
        %v1982 = vpop.f32.mrb[0].mxu0
        %v1983 = vadd.f32 0.0, %v1982
        %v1984 = vpop.f32.mrb[0].mxu0
        %1985 = vdwg.mxu0
        %2002 = vrot.lane.b32.xlu0 %v1924, 32
        %v2003 = vpop.permute.xlu0 %2002
        %2004 = vrot.lane.b32.xlu0 %v1927, 32
        %v2005 = vpop.permute.xlu0 %2004
        %2006 = vrot.lane.b32.xlu0 %v1932, 32
        %v2007 = vpop.permute.xlu0 %2006
        %2008 = vrot.lane.b32.xlu0 %v1935, 32
        %v2009 = vpop.permute.xlu0 %2008
        %2010 = vrot.lane.b32.xlu0 %v1940, 32
        %v2011 = vpop.permute.xlu0 %2010
        %2012 = vrot.lane.b32.xlu0 %v1943, 32
        %v2013 = vpop.permute.xlu0 %2012
        %2014 = vrot.lane.b32.xlu0 %v1948, 32
        %v2015 = vpop.permute.xlu0 %2014
        %2016 = vrot.lane.b32.xlu0 %v1951, 32
        %v2017 = vpop.permute.xlu0 %2016
        %2018 = vrot.lane.b32.xlu0 %v1956, 32
        %v2019 = vpop.permute.xlu0 %2018
        %2020 = vrot.lane.b32.xlu0 %v1959, 32
        %v2021 = vpop.permute.xlu0 %2020
        %2022 = vrot.lane.b32.xlu0 %v1964, 32
        %v2023 = vpop.permute.xlu0 %2022
        %2024 = vrot.lane.b32.xlu0 %v1967, 32
        %v2025 = vpop.permute.xlu0 %2024
        %2026 = vrot.lane.b32.xlu0 %v1972, 32
        %v2027 = vpop.permute.xlu0 %2026
        %2028 = vrot.lane.b32.xlu0 %v1975, 32
        %v2029 = vpop.permute.xlu0 %2028
        %2030 = vrot.lane.b32.xlu0 %v1980, 32
        %v2031 = vpop.permute.xlu0 %2030
        %2032 = vrot.lane.b32.xlu0 %v1983, 32
        %v2033 = vpop.permute.xlu0 %2032
        %v2050 = vadd.f32 %v1841, %v2003
        %v2051 = vadd.f32 %v1842, %v2005
        %v2052 = vadd.f32 %v1843, %v2007
        %v2053 = vadd.f32 %v1844, %v2009
        %v2054 = vadd.f32 %v1845, %v2011
        %v2055 = vadd.f32 %v1846, %v2013
        %v2056 = vadd.f32 %v1847, %v2015
        %v2057 = vadd.f32 %v1848, %v2017
        %v2058 = vadd.f32 %v1849, %v2019
        %v2059 = vadd.f32 %v1850, %v2021
        %v2060 = vadd.f32 %v1851, %v2023
        %v2061 = vadd.f32 %v1852, %v2025
        %v2062 = vadd.f32 %v1853, %v2027
        %v2063 = vadd.f32 %v1854, %v2029
        %v2064 = vadd.f32 %v1855, %v2031
        %v2065 = vadd.f32 %v1856, %v2033
        %vm2066 = vcmask 523520
        %2067 = vst.msk [vmem:[#allocation4] sm:$0xff] %vm2066, %v2050
        %2068 = vst.msk [vmem:[#allocation4 + $0x8] sm:$0xff] %vm2066, %v2051
        %2069 = vst.msk [vmem:[#allocation4 + $0x10] sm:$0xff] %vm2066, %v2052
        %2070 = vst.msk [vmem:[#allocation4 + $0x18] sm:$0xff] %vm2066, %v2053
        %2071 = vst.msk [vmem:[#allocation4 + $0x20] sm:$0xff] %vm2066, %v2054
        %2072 = vst.msk [vmem:[#allocation4 + $0x28] sm:$0xff] %vm2066, %v2055
        %2073 = vst.msk [vmem:[#allocation4 + $0x30] sm:$0xff] %vm2066, %v2056
        %2074 = vst.msk [vmem:[#allocation4 + $0x38] sm:$0xff] %vm2066, %v2057
        %2075 = vst.msk [vmem:[#allocation4 + $0x40] sm:$0xff] %vm2066, %v2058
        %2076 = vst.msk [vmem:[#allocation4 + $0x48] sm:$0xff] %vm2066, %v2059
        %2077 = vst.msk [vmem:[#allocation4 + $0x50] sm:$0xff] %vm2066, %v2060
        %2078 = vst.msk [vmem:[#allocation4 + $0x58] sm:$0xff] %vm2066, %v2061
        %2079 = vst.msk [vmem:[#allocation4 + $0x60] sm:$0xff] %vm2066, %v2062
        %2080 = vst.msk [vmem:[#allocation4 + $0x68] sm:$0xff] %vm2066, %v2063
        %2081 = vst.msk [vmem:[#allocation4 + $0x70] sm:$0xff] %vm2066, %v2064
        %2082 = vst.msk [vmem:[#allocation4 + $0x78] sm:$0xff] %vm2066, %v2065
        %2083 = vst.msk [vmem:[#allocation2] sm:$0xff] %vm1728, %v1456
        %2084 = vst.msk [vmem:[#allocation2 + $0x8] sm:$0xff] %vm1728, %v1457
        %2085 = vst.msk [vmem:[#allocation2 + $0x10] sm:$0xff] %vm1728, %v1458
        %2086 = vst.msk [vmem:[#allocation2 + $0x18] sm:$0xff] %vm1728, %v1459
        %2087 = vst.msk [vmem:[#allocation2 + $0x20] sm:$0xff] %vm1728, %v1460
        %2088 = vst.msk [vmem:[#allocation2 + $0x28] sm:$0xff] %vm1728, %v1461
        %2089 = vst.msk [vmem:[#allocation2 + $0x30] sm:$0xff] %vm1728, %v1462
        %2090 = vst.msk [vmem:[#allocation2 + $0x38] sm:$0xff] %vm1728, %v1463
        %2091 = vst.msk [vmem:[#allocation2 + $0x40] sm:$0xff] %vm1728, %v1464
        %2092 = vst.msk [vmem:[#allocation2 + $0x48] sm:$0xff] %vm1728, %v1465
        %2093 = vst.msk [vmem:[#allocation2 + $0x50] sm:$0xff] %vm1728, %v1466
        %2094 = vst.msk [vmem:[#allocation2 + $0x58] sm:$0xff] %vm1728, %v1467
        %2095 = vst.msk [vmem:[#allocation2 + $0x60] sm:$0xff] %vm1728, %v1468
        %2096 = vst.msk [vmem:[#allocation2 + $0x68] sm:$0xff] %vm1728, %v1469
        %2097 = vst.msk [vmem:[#allocation2 + $0x70] sm:$0xff] %vm1728, %v1470
        %2098 = vst.msk [vmem:[#allocation2 + $0x78] sm:$0xff] %vm1728, %v1471
        %2099 = vset.pattern.permute.xlu0 2
        %2100 = vperm.xlu0 %2099, %v445
        %v2101 = vpop.permute.xlu0 %2100
        %2103 = vset.pattern.permute.xlu0 2
        %2104 = vperm.xlu0 %2103, %v446
        %v2105 = vpop.permute.xlu0 %2104
        %2107 = vset.pattern.permute.xlu0 2
        %2108 = vperm.xlu0 %2107, %v447
        %v2109 = vpop.permute.xlu0 %2108
        %2111 = vset.pattern.permute.xlu0 2
        %2112 = vperm.xlu0 %2111, %v448
        %v2113 = vpop.permute.xlu0 %2112
        %2115 = vset.pattern.permute.xlu0 2
        %2116 = vperm.xlu0 %2115, %v449
        %v2117 = vpop.permute.xlu0 %2116
        %2119 = vset.pattern.permute.xlu0 2
        %2120 = vperm.xlu0 %2119, %v450
        %v2121 = vpop.permute.xlu0 %2120
        %2123 = vset.pattern.permute.xlu0 2
        %2124 = vperm.xlu0 %2123, %v451
        %v2125 = vpop.permute.xlu0 %2124
        %2127 = vset.pattern.permute.xlu0 2
        %2128 = vperm.xlu0 %2127, %v452
        %v2129 = vpop.permute.xlu0 %2128
        %2131 = vset.pattern.permute.xlu0 2
        %2132 = vperm.xlu0 %2131, %v453
        %v2133 = vpop.permute.xlu0 %2132
        %2135 = vset.pattern.permute.xlu0 2
        %2136 = vperm.xlu0 %2135, %v454
        %v2137 = vpop.permute.xlu0 %2136
        %2139 = vset.pattern.permute.xlu0 2
        %2140 = vperm.xlu0 %2139, %v455
        %v2141 = vpop.permute.xlu0 %2140
        %2143 = vset.pattern.permute.xlu0 2
        %2144 = vperm.xlu0 %2143, %v456
        %v2145 = vpop.permute.xlu0 %2144
        %2147 = vset.pattern.permute.xlu0 2
        %2148 = vperm.xlu0 %2147, %v457
        %v2149 = vpop.permute.xlu0 %2148
        %2151 = vset.pattern.permute.xlu0 2
        %2152 = vperm.xlu0 %2151, %v458
        %v2153 = vpop.permute.xlu0 %2152
        %2155 = vset.pattern.permute.xlu0 2
        %2156 = vperm.xlu0 %2155, %v459
        %v2157 = vpop.permute.xlu0 %2156
        %2159 = vset.pattern.permute.xlu0 2
        %2160 = vperm.xlu0 %2159, %v460
        %v2161 = vpop.permute.xlu0 %2160
        %v2163 = vlaneseq
        %v2164 = vshrl.u32 %v2163, 7
        %v2165 = vsub.s32 2, %v2164
        %v2166 = vrot.slane %v444, %v2165
        %v2167 = vadd.f32 %v2101, %v2166
        %v2168 = vadd.f32 %v2105, %v2166
        %v2169 = vadd.f32 %v2109, %v2166
        %v2170 = vadd.f32 %v2113, %v2166
        %v2171 = vadd.f32 %v2117, %v2166
        %v2172 = vadd.f32 %v2121, %v2166
        %v2173 = vadd.f32 %v2125, %v2166
        %v2174 = vadd.f32 %v2129, %v2166
        %v2175 = vadd.f32 %v2133, %v2166
        %v2176 = vadd.f32 %v2137, %v2166
        %v2177 = vadd.f32 %v2141, %v2166
        %v2178 = vadd.f32 %v2145, %v2166
        %v2179 = vadd.f32 %v2149, %v2166
        %v2180 = vadd.f32 %v2153, %v2166
        %v2181 = vadd.f32 %v2157, %v2166
        %v2182 = vadd.f32 %v2161, %v2166
        %v2183 = vmul.f32 %v2167, 0.2
        %v2184 = vmul.f32 %v2168, 0.2
        %v2185 = vmul.f32 %v2169, 0.2
        %v2186 = vmul.f32 %v2170, 0.2
        %v2187 = vmul.f32 %v2171, 0.2
        %v2188 = vmul.f32 %v2172, 0.2
        %v2189 = vmul.f32 %v2173, 0.2
        %v2190 = vmul.f32 %v2174, 0.2
        %v2191 = vmul.f32 %v2175, 0.2
        %v2192 = vmul.f32 %v2176, 0.2
        %v2193 = vmul.f32 %v2177, 0.2
        %v2194 = vmul.f32 %v2178, 0.2
        %v2195 = vmul.f32 %v2179, 0.2
        %v2196 = vmul.f32 %v2180, 0.2
        %v2197 = vmul.f32 %v2181, 0.2
        %v2198 = vmul.f32 %v2182, 0.2
        %v2199 = vmax.f32 %v2167, %v2183
        %v2200 = vmax.f32 %v2168, %v2184
        %v2201 = vmax.f32 %v2169, %v2185
        %v2202 = vmax.f32 %v2170, %v2186
        %v2203 = vmax.f32 %v2171, %v2187
        %v2204 = vmax.f32 %v2172, %v2188
        %v2205 = vmax.f32 %v2173, %v2189
        %v2206 = vmax.f32 %v2174, %v2190
        %v2207 = vmax.f32 %v2175, %v2191
        %v2208 = vmax.f32 %v2176, %v2192
        %v2209 = vmax.f32 %v2177, %v2193
        %v2210 = vmax.f32 %v2178, %v2194
        %v2211 = vmax.f32 %v2179, %v2195
        %v2212 = vmax.f32 %v2180, %v2196
        %v2213 = vmax.f32 %v2181, %v2197
        %v2214 = vmax.f32 %v2182, %v2198
        %v2215 = vadd.f32 %v2199, %v428
        %v2216 = vadd.f32 %v2200, %v429
        %v2217 = vadd.f32 %v2201, %v430
        %v2218 = vadd.f32 %v2202, %v431
        %v2219 = vadd.f32 %v2203, %v432
        %v2220 = vadd.f32 %v2204, %v433
        %v2221 = vadd.f32 %v2205, %v434
        %v2222 = vadd.f32 %v2206, %v435
        %v2223 = vadd.f32 %v2207, %v436
        %v2224 = vadd.f32 %v2208, %v437
        %v2225 = vadd.f32 %v2209, %v438
        %v2226 = vadd.f32 %v2210, %v439
        %v2227 = vadd.f32 %v2211, %v440
        %v2228 = vadd.f32 %v2212, %v441
        %v2229 = vadd.f32 %v2213, %v442
        %v2230 = vadd.f32 %v2214, %v443
        %v2231 = vld [vmem:[#allocation2] sm:$0xff]
        %v2232 = vld [vmem:[#allocation2 + $0x8] sm:$0xff]
        %v2233 = vld [vmem:[#allocation2 + $0x10] sm:$0xff]
        %v2234 = vld [vmem:[#allocation2 + $0x18] sm:$0xff]
        %v2235 = vld [vmem:[#allocation2 + $0x20] sm:$0xff]
        %v2236 = vld [vmem:[#allocation2 + $0x28] sm:$0xff]
        %v2237 = vld [vmem:[#allocation2 + $0x30] sm:$0xff]
        %v2238 = vld [vmem:[#allocation2 + $0x38] sm:$0xff]
        %v2239 = vld [vmem:[#allocation2 + $0x40] sm:$0xff]
        %v2240 = vld [vmem:[#allocation2 + $0x48] sm:$0xff]
        %v2241 = vld [vmem:[#allocation2 + $0x50] sm:$0xff]
        %v2242 = vld [vmem:[#allocation2 + $0x58] sm:$0xff]
        %v2243 = vld [vmem:[#allocation2 + $0x60] sm:$0xff]
        %v2244 = vld [vmem:[#allocation2 + $0x68] sm:$0xff]
        %v2245 = vld [vmem:[#allocation2 + $0x70] sm:$0xff]
        %v2246 = vld [vmem:[#allocation2 + $0x78] sm:$0xff]
        %2247 = vmax.xlane.f32.xlu0 %v2215
        %v2248 = vpop.xlane.xlu0 %2247
        %2249 = vmax.xlane.f32.xlu0 %v2216
        %v2250 = vpop.xlane.xlu0 %2249
        %2251 = vmax.xlane.f32.xlu0 %v2217
        %v2252 = vpop.xlane.xlu0 %2251
        %2253 = vmax.xlane.f32.xlu0 %v2218
        %v2254 = vpop.xlane.xlu0 %2253
        %2255 = vmax.xlane.f32.xlu0 %v2219
        %v2256 = vpop.xlane.xlu0 %2255
        %2257 = vmax.xlane.f32.xlu0 %v2220
        %v2258 = vpop.xlane.xlu0 %2257
        %2259 = vmax.xlane.f32.xlu0 %v2221
        %v2260 = vpop.xlane.xlu0 %2259
        %2261 = vmax.xlane.f32.xlu0 %v2222
        %v2262 = vpop.xlane.xlu0 %2261
        %2263 = vmax.xlane.f32.xlu0 %v2223
        %v2264 = vpop.xlane.xlu0 %2263
        %2265 = vmax.xlane.f32.xlu0 %v2224
        %v2266 = vpop.xlane.xlu0 %2265
        %2267 = vmax.xlane.f32.xlu0 %v2225
        %v2268 = vpop.xlane.xlu0 %2267
        %2269 = vmax.xlane.f32.xlu0 %v2226
        %v2270 = vpop.xlane.xlu0 %2269
        %2271 = vmax.xlane.f32.xlu0 %v2227
        %v2272 = vpop.xlane.xlu0 %2271
        %2273 = vmax.xlane.f32.xlu0 %v2228
        %v2274 = vpop.xlane.xlu0 %2273
        %2275 = vmax.xlane.f32.xlu0 %v2229
        %v2276 = vpop.xlane.xlu0 %2275
        %2277 = vmax.xlane.f32.xlu0 %v2230
        %v2278 = vpop.xlane.xlu0 %2277
        %v2279 = vmax.f32 %v2231, %v2248
        %v2280 = vmax.f32 %v2232, %v2250
        %v2281 = vmax.f32 %v2233, %v2252
        %v2282 = vmax.f32 %v2234, %v2254
        %v2283 = vmax.f32 %v2235, %v2256
        %v2284 = vmax.f32 %v2236, %v2258
        %v2285 = vmax.f32 %v2237, %v2260
        %v2286 = vmax.f32 %v2238, %v2262
        %v2287 = vmax.f32 %v2239, %v2264
        %v2288 = vmax.f32 %v2240, %v2266
        %v2289 = vmax.f32 %v2241, %v2268
        %v2290 = vmax.f32 %v2242, %v2270
        %v2291 = vmax.f32 %v2243, %v2272
        %v2292 = vmax.f32 %v2244, %v2274
        %v2293 = vmax.f32 %v2245, %v2276
        %v2294 = vmax.f32 %v2246, %v2278
        %v2295 = vsub.f32 %v2231, %v2279
        %v2296 = vsub.f32 %v2232, %v2280
        %v2297 = vsub.f32 %v2233, %v2281
        %v2298 = vsub.f32 %v2234, %v2282
        %v2299 = vsub.f32 %v2235, %v2283
        %v2300 = vsub.f32 %v2236, %v2284
        %v2301 = vsub.f32 %v2237, %v2285
        %v2302 = vsub.f32 %v2238, %v2286
        %v2303 = vsub.f32 %v2239, %v2287
        %v2304 = vsub.f32 %v2240, %v2288
        %v2305 = vsub.f32 %v2241, %v2289
        %v2306 = vsub.f32 %v2242, %v2290
        %v2307 = vsub.f32 %v2243, %v2291
        %v2308 = vsub.f32 %v2244, %v2292
        %v2309 = vsub.f32 %v2245, %v2293
        %v2310 = vsub.f32 %v2246, %v2294
        %v2311 = vmul.f32 %v2295, 1.442695
        %v2312 = vpow.pop %v2311
        %v2313 = vmul.f32 %v2296, 1.442695
        %v2314 = vpow.pop %v2313
        %v2315 = vmul.f32 %v2297, 1.442695
        %v2316 = vpow.pop %v2315
        %v2317 = vmul.f32 %v2298, 1.442695
        %v2318 = vpow.pop %v2317
        %v2319 = vmul.f32 %v2299, 1.442695
        %v2320 = vpow.pop %v2319
        %v2321 = vmul.f32 %v2300, 1.442695
        %v2322 = vpow.pop %v2321
        %v2323 = vmul.f32 %v2301, 1.442695
        %v2324 = vpow.pop %v2323
        %v2325 = vmul.f32 %v2302, 1.442695
        %v2326 = vpow.pop %v2325
        %v2327 = vmul.f32 %v2303, 1.442695
        %v2328 = vpow.pop %v2327
        %v2329 = vmul.f32 %v2304, 1.442695
        %v2330 = vpow.pop %v2329
        %v2331 = vmul.f32 %v2305, 1.442695
        %v2332 = vpow.pop %v2331
        %v2333 = vmul.f32 %v2306, 1.442695
        %v2334 = vpow.pop %v2333
        %v2335 = vmul.f32 %v2307, 1.442695
        %v2336 = vpow.pop %v2335
        %v2337 = vmul.f32 %v2308, 1.442695
        %v2338 = vpow.pop %v2337
        %v2339 = vmul.f32 %v2309, 1.442695
        %v2340 = vpow.pop %v2339
        %v2341 = vmul.f32 %v2310, 1.442695
        %v2342 = vpow.pop %v2341
        %2344 = vset.pattern.permute.xlu0 2
        %2345 = vperm.xlu0 %2344, %v2279
        %v2346 = vpop.permute.xlu0 %2345
        %2349 = vset.pattern.permute.xlu0 2
        %2350 = vperm.xlu0 %2349, %v2280
        %v2351 = vpop.permute.xlu0 %2350
        %2354 = vset.pattern.permute.xlu0 2
        %2355 = vperm.xlu0 %2354, %v2281
        %v2356 = vpop.permute.xlu0 %2355
        %2359 = vset.pattern.permute.xlu0 2
        %2360 = vperm.xlu0 %2359, %v2282
        %v2361 = vpop.permute.xlu0 %2360
        %2364 = vset.pattern.permute.xlu0 2
        %2365 = vperm.xlu0 %2364, %v2283
        %v2366 = vpop.permute.xlu0 %2365
        %2369 = vset.pattern.permute.xlu0 2
        %2370 = vperm.xlu0 %2369, %v2284
        %v2371 = vpop.permute.xlu0 %2370
        %2374 = vset.pattern.permute.xlu0 2
        %2375 = vperm.xlu0 %2374, %v2285
        %v2376 = vpop.permute.xlu0 %2375
        %2379 = vset.pattern.permute.xlu0 2
        %2380 = vperm.xlu0 %2379, %v2286
        %v2381 = vpop.permute.xlu0 %2380
        %2384 = vset.pattern.permute.xlu0 2
        %2385 = vperm.xlu0 %2384, %v2287
        %v2386 = vpop.permute.xlu0 %2385
        %2389 = vset.pattern.permute.xlu0 2
        %2390 = vperm.xlu0 %2389, %v2288
        %v2391 = vpop.permute.xlu0 %2390
        %2394 = vset.pattern.permute.xlu0 2
        %2395 = vperm.xlu0 %2394, %v2289
        %v2396 = vpop.permute.xlu0 %2395
        %2399 = vset.pattern.permute.xlu0 2
        %2400 = vperm.xlu0 %2399, %v2290
        %v2401 = vpop.permute.xlu0 %2400
        %2404 = vset.pattern.permute.xlu0 2
        %2405 = vperm.xlu0 %2404, %v2291
        %v2406 = vpop.permute.xlu0 %2405
        %2409 = vset.pattern.permute.xlu0 2
        %2410 = vperm.xlu0 %2409, %v2292
        %v2411 = vpop.permute.xlu0 %2410
        %2414 = vset.pattern.permute.xlu0 2
        %2415 = vperm.xlu0 %2414, %v2293
        %v2416 = vpop.permute.xlu0 %2415
        %2419 = vset.pattern.permute.xlu0 2
        %2420 = vperm.xlu0 %2419, %v2294
        %v2421 = vpop.permute.xlu0 %2420
        %v2423 = vsub.f32 %v2215, %v2346
        %v2424 = vsub.f32 %v2216, %v2351
        %v2425 = vsub.f32 %v2217, %v2356
        %v2426 = vsub.f32 %v2218, %v2361
        %v2427 = vsub.f32 %v2219, %v2366
        %v2428 = vsub.f32 %v2220, %v2371
        %v2429 = vsub.f32 %v2221, %v2376
        %v2430 = vsub.f32 %v2222, %v2381
        %v2431 = vsub.f32 %v2223, %v2386
        %v2432 = vsub.f32 %v2224, %v2391
        %v2433 = vsub.f32 %v2225, %v2396
        %v2434 = vsub.f32 %v2226, %v2401
        %v2435 = vsub.f32 %v2227, %v2406
        %v2436 = vsub.f32 %v2228, %v2411
        %v2437 = vsub.f32 %v2229, %v2416
        %v2438 = vsub.f32 %v2230, %v2421
        %v2439 = vmul.f32 %v2423, 1.442695
        %v2440 = vpow.pop %v2439
        %v2441 = vmul.f32 %v2424, 1.442695
        %v2442 = vpow.pop %v2441
        %v2443 = vmul.f32 %v2425, 1.442695
        %v2444 = vpow.pop %v2443
        %v2445 = vmul.f32 %v2426, 1.442695
        %v2446 = vpow.pop %v2445
        %v2447 = vmul.f32 %v2427, 1.442695
        %v2448 = vpow.pop %v2447
        %v2449 = vmul.f32 %v2428, 1.442695
        %v2450 = vpow.pop %v2449
        %v2451 = vmul.f32 %v2429, 1.442695
        %v2452 = vpow.pop %v2451
        %v2453 = vmul.f32 %v2430, 1.442695
        %v2454 = vpow.pop %v2453
        %v2455 = vmul.f32 %v2431, 1.442695
        %v2456 = vpow.pop %v2455
        %v2457 = vmul.f32 %v2432, 1.442695
        %v2458 = vpow.pop %v2457
        %v2459 = vmul.f32 %v2433, 1.442695
        %v2460 = vpow.pop %v2459
        %v2461 = vmul.f32 %v2434, 1.442695
        %v2462 = vpow.pop %v2461
        %v2463 = vmul.f32 %v2435, 1.442695
        %v2464 = vpow.pop %v2463
        %v2465 = vmul.f32 %v2436, 1.442695
        %v2466 = vpow.pop %v2465
        %v2467 = vmul.f32 %v2437, 1.442695
        %v2468 = vpow.pop %v2467
        %v2469 = vmul.f32 %v2438, 1.442695
        %v2470 = vpow.pop %v2469
        %v2471 = vld [vmem:[#allocation3] sm:$0xff]
        %v2472 = vld [vmem:[#allocation3 + $0x8] sm:$0xff]
        %v2473 = vld [vmem:[#allocation3 + $0x10] sm:$0xff]
        %v2474 = vld [vmem:[#allocation3 + $0x18] sm:$0xff]
        %v2475 = vld [vmem:[#allocation3 + $0x20] sm:$0xff]
        %v2476 = vld [vmem:[#allocation3 + $0x28] sm:$0xff]
        %v2477 = vld [vmem:[#allocation3 + $0x30] sm:$0xff]
        %v2478 = vld [vmem:[#allocation3 + $0x38] sm:$0xff]
        %v2479 = vld [vmem:[#allocation3 + $0x40] sm:$0xff]
        %v2480 = vld [vmem:[#allocation3 + $0x48] sm:$0xff]
        %v2481 = vld [vmem:[#allocation3 + $0x50] sm:$0xff]
        %v2482 = vld [vmem:[#allocation3 + $0x58] sm:$0xff]
        %v2483 = vld [vmem:[#allocation3 + $0x60] sm:$0xff]
        %v2484 = vld [vmem:[#allocation3 + $0x68] sm:$0xff]
        %v2485 = vld [vmem:[#allocation3 + $0x70] sm:$0xff]
        %v2486 = vld [vmem:[#allocation3 + $0x78] sm:$0xff]
        %v2487 = vmul.f32 %v2312, %v2471
        %v2488 = vmul.f32 %v2314, %v2472
        %v2489 = vmul.f32 %v2316, %v2473
        %v2490 = vmul.f32 %v2318, %v2474
        %v2491 = vmul.f32 %v2320, %v2475
        %v2492 = vmul.f32 %v2322, %v2476
        %v2493 = vmul.f32 %v2324, %v2477
        %v2494 = vmul.f32 %v2326, %v2478
        %v2495 = vmul.f32 %v2328, %v2479
        %v2496 = vmul.f32 %v2330, %v2480
        %v2497 = vmul.f32 %v2332, %v2481
        %v2498 = vmul.f32 %v2334, %v2482
        %v2499 = vmul.f32 %v2336, %v2483
        %v2500 = vmul.f32 %v2338, %v2484
        %v2501 = vmul.f32 %v2340, %v2485
        %v2502 = vmul.f32 %v2342, %v2486
        %2503 = vadd.xlane.f32.xlu0 %v2440
        %v2504 = vpop.xlane.xlu0 %2503
        %2505 = vadd.xlane.f32.xlu0 %v2442
        %v2506 = vpop.xlane.xlu0 %2505
        %2507 = vadd.xlane.f32.xlu0 %v2444
        %v2508 = vpop.xlane.xlu0 %2507
        %2509 = vadd.xlane.f32.xlu0 %v2446
        %v2510 = vpop.xlane.xlu0 %2509
        %2511 = vadd.xlane.f32.xlu0 %v2448
        %v2512 = vpop.xlane.xlu0 %2511
        %2513 = vadd.xlane.f32.xlu0 %v2450
        %v2514 = vpop.xlane.xlu0 %2513
        %2515 = vadd.xlane.f32.xlu0 %v2452
        %v2516 = vpop.xlane.xlu0 %2515
        %2517 = vadd.xlane.f32.xlu0 %v2454
        %v2518 = vpop.xlane.xlu0 %2517
        %2519 = vadd.xlane.f32.xlu0 %v2456
        %v2520 = vpop.xlane.xlu0 %2519
        %2521 = vadd.xlane.f32.xlu0 %v2458
        %v2522 = vpop.xlane.xlu0 %2521
        %2523 = vadd.xlane.f32.xlu0 %v2460
        %v2524 = vpop.xlane.xlu0 %2523
        %2525 = vadd.xlane.f32.xlu0 %v2462
        %v2526 = vpop.xlane.xlu0 %2525
        %2527 = vadd.xlane.f32.xlu0 %v2464
        %v2528 = vpop.xlane.xlu0 %2527
        %2529 = vadd.xlane.f32.xlu0 %v2466
        %v2530 = vpop.xlane.xlu0 %2529
        %2531 = vadd.xlane.f32.xlu0 %v2468
        %v2532 = vpop.xlane.xlu0 %2531
        %2533 = vadd.xlane.f32.xlu0 %v2470
        %v2534 = vpop.xlane.xlu0 %2533
        %v2535 = vadd.f32 %v2487, %v2504
        %v2536 = vadd.f32 %v2488, %v2506
        %v2537 = vadd.f32 %v2489, %v2508
        %v2538 = vadd.f32 %v2490, %v2510
        %v2539 = vadd.f32 %v2491, %v2512
        %v2540 = vadd.f32 %v2492, %v2514
        %v2541 = vadd.f32 %v2493, %v2516
        %v2542 = vadd.f32 %v2494, %v2518
        %v2543 = vadd.f32 %v2495, %v2520
        %v2544 = vadd.f32 %v2496, %v2522
        %v2545 = vadd.f32 %v2497, %v2524
        %v2546 = vadd.f32 %v2498, %v2526
        %v2547 = vadd.f32 %v2499, %v2528
        %v2548 = vadd.f32 %v2500, %v2530
        %v2549 = vadd.f32 %v2501, %v2532
        %v2550 = vadd.f32 %v2502, %v2534
        %vm2551 = vcmask 23568
        %2552 = vst.msk [vmem:[#allocation3] sm:$0xff] %vm2551, %v2535
        %2553 = vst.msk [vmem:[#allocation3 + $0x8] sm:$0xff] %vm2551, %v2536
        %2554 = vst.msk [vmem:[#allocation3 + $0x10] sm:$0xff] %vm2551, %v2537
        %2555 = vst.msk [vmem:[#allocation3 + $0x18] sm:$0xff] %vm2551, %v2538
        %2556 = vst.msk [vmem:[#allocation3 + $0x20] sm:$0xff] %vm2551, %v2539
        %2557 = vst.msk [vmem:[#allocation3 + $0x28] sm:$0xff] %vm2551, %v2540
        %2558 = vst.msk [vmem:[#allocation3 + $0x30] sm:$0xff] %vm2551, %v2541
        %2559 = vst.msk [vmem:[#allocation3 + $0x38] sm:$0xff] %vm2551, %v2542
        %2560 = vst.msk [vmem:[#allocation3 + $0x40] sm:$0xff] %vm2551, %v2543
        %2561 = vst.msk [vmem:[#allocation3 + $0x48] sm:$0xff] %vm2551, %v2544
        %2562 = vst.msk [vmem:[#allocation3 + $0x50] sm:$0xff] %vm2551, %v2545
        %2563 = vst.msk [vmem:[#allocation3 + $0x58] sm:$0xff] %vm2551, %v2546
        %2564 = vst.msk [vmem:[#allocation3 + $0x60] sm:$0xff] %vm2551, %v2547
        %2565 = vst.msk [vmem:[#allocation3 + $0x68] sm:$0xff] %vm2551, %v2548
        %2566 = vst.msk [vmem:[#allocation3 + $0x70] sm:$0xff] %vm2551, %v2549
        %2567 = vst.msk [vmem:[#allocation3 + $0x78] sm:$0xff] %vm2551, %v2550
        %v2568 = vld [vmem:[#allocation4] sm:$0xff]
        %v2569 = vld [vmem:[#allocation4 + $0x8] sm:$0xff]
        %v2570 = vld [vmem:[#allocation4 + $0x10] sm:$0xff]
        %v2571 = vld [vmem:[#allocation4 + $0x18] sm:$0xff]
        %v2572 = vld [vmem:[#allocation4 + $0x20] sm:$0xff]
        %v2573 = vld [vmem:[#allocation4 + $0x28] sm:$0xff]
        %v2574 = vld [vmem:[#allocation4 + $0x30] sm:$0xff]
        %v2575 = vld [vmem:[#allocation4 + $0x38] sm:$0xff]
        %v2576 = vld [vmem:[#allocation4 + $0x40] sm:$0xff]
        %v2577 = vld [vmem:[#allocation4 + $0x48] sm:$0xff]
        %v2578 = vld [vmem:[#allocation4 + $0x50] sm:$0xff]
        %v2579 = vld [vmem:[#allocation4 + $0x58] sm:$0xff]
        %v2580 = vld [vmem:[#allocation4 + $0x60] sm:$0xff]
        %v2581 = vld [vmem:[#allocation4 + $0x68] sm:$0xff]
        %v2582 = vld [vmem:[#allocation4 + $0x70] sm:$0xff]
        %v2583 = vld [vmem:[#allocation4 + $0x78] sm:$0xff]
        %2585 = vset.pattern.permute.xlu0 2
        %2586 = vperm.xlu0 %2585, %v2312
        %v2587 = vpop.permute.xlu0 %2586
        %2590 = vset.pattern.permute.xlu0 2
        %2591 = vperm.xlu0 %2590, %v2314
        %v2592 = vpop.permute.xlu0 %2591
        %2595 = vset.pattern.permute.xlu0 2
        %2596 = vperm.xlu0 %2595, %v2316
        %v2597 = vpop.permute.xlu0 %2596
        %2600 = vset.pattern.permute.xlu0 2
        %2601 = vperm.xlu0 %2600, %v2318
        %v2602 = vpop.permute.xlu0 %2601
        %2605 = vset.pattern.permute.xlu0 2
        %2606 = vperm.xlu0 %2605, %v2320
        %v2607 = vpop.permute.xlu0 %2606
        %2610 = vset.pattern.permute.xlu0 2
        %2611 = vperm.xlu0 %2610, %v2322
        %v2612 = vpop.permute.xlu0 %2611
        %2615 = vset.pattern.permute.xlu0 2
        %2616 = vperm.xlu0 %2615, %v2324
        %v2617 = vpop.permute.xlu0 %2616
        %2620 = vset.pattern.permute.xlu0 2
        %2621 = vperm.xlu0 %2620, %v2326
        %v2622 = vpop.permute.xlu0 %2621
        %2625 = vset.pattern.permute.xlu0 2
        %2626 = vperm.xlu0 %2625, %v2328
        %v2627 = vpop.permute.xlu0 %2626
        %2630 = vset.pattern.permute.xlu0 2
        %2631 = vperm.xlu0 %2630, %v2330
        %v2632 = vpop.permute.xlu0 %2631
        %2635 = vset.pattern.permute.xlu0 2
        %2636 = vperm.xlu0 %2635, %v2332
        %v2637 = vpop.permute.xlu0 %2636
        %2640 = vset.pattern.permute.xlu0 2
        %2641 = vperm.xlu0 %2640, %v2334
        %v2642 = vpop.permute.xlu0 %2641
        %2645 = vset.pattern.permute.xlu0 2
        %2646 = vperm.xlu0 %2645, %v2336
        %v2647 = vpop.permute.xlu0 %2646
        %2650 = vset.pattern.permute.xlu0 2
        %2651 = vperm.xlu0 %2650, %v2338
        %v2652 = vpop.permute.xlu0 %2651
        %2655 = vset.pattern.permute.xlu0 2
        %2656 = vperm.xlu0 %2655, %v2340
        %v2657 = vpop.permute.xlu0 %2656
        %2660 = vset.pattern.permute.xlu0 2
        %2661 = vperm.xlu0 %2660, %v2342
        %v2662 = vpop.permute.xlu0 %2661
        %v2664 = vmul.f32 %v2587, %v2568
        %v2665 = vmul.f32 %v2592, %v2569
        %v2666 = vmul.f32 %v2597, %v2570
        %v2667 = vmul.f32 %v2602, %v2571
        %v2668 = vmul.f32 %v2607, %v2572
        %v2669 = vmul.f32 %v2612, %v2573
        %v2670 = vmul.f32 %v2617, %v2574
        %v2671 = vmul.f32 %v2622, %v2575
        %v2672 = vmul.f32 %v2627, %v2576
        %v2673 = vmul.f32 %v2632, %v2577
        %v2674 = vmul.f32 %v2637, %v2578
        %v2675 = vmul.f32 %v2642, %v2579
        %v2676 = vmul.f32 %v2647, %v2580
        %v2677 = vmul.f32 %v2652, %v2581
        %v2678 = vmul.f32 %v2657, %v2582
        %v2679 = vmul.f32 %v2662, %v2583
        %v2680 = vpack.c.bf16 %v2442, %v2440
        %v2681 = vpack.c.bf16 %v2446, %v2444
        %v2682 = vpack.c.bf16 %v2450, %v2448
        %v2683 = vpack.c.bf16 %v2454, %v2452
        %v2684 = vpack.c.bf16 %v2458, %v2456
        %v2685 = vpack.c.bf16 %v2462, %v2460
        %v2686 = vpack.c.bf16 %v2466, %v2464
        %v2687 = vpack.c.bf16 %v2470, %v2468
        %2688 = vrot.lane.b32.xlu0 %v1114, 64
        %v2689 = vpop.permute.xlu0 %2688
        %2690 = vrot.lane.b32.xlu0 %v1115, 64
        %v2691 = vpop.permute.xlu0 %2690
        %2692 = vrot.lane.b32.xlu0 %v1116, 64
        %v2693 = vpop.permute.xlu0 %2692
        %2694 = vrot.lane.b32.xlu0 %v1117, 64
        %v2695 = vpop.permute.xlu0 %2694
        %2696 = vrot.lane.b32.xlu0 %v1118, 64
        %v2697 = vpop.permute.xlu0 %2696
        %2698 = vrot.lane.b32.xlu0 %v1119, 64
        %v2699 = vpop.permute.xlu0 %2698
        %2700 = vrot.lane.b32.xlu0 %v1120, 64
        %v2701 = vpop.permute.xlu0 %2700
        %2702 = vrot.lane.b32.xlu0 %v1121, 64
        %v2703 = vpop.permute.xlu0 %2702
        %2712 = vmatprep.subr.bf16.mxu0 0
        %2713 = vmatpush1.bf16.msra.mxu0 %v2689
        %2714 = vmatprep.subr.bf16.mxu0 0
        %2715 = vmatpush1.bf16.msra.mxu0 %v2691
        %2716 = vmatprep.subr.bf16.mxu0 0
        %2717 = vmatpush1.bf16.msra.mxu0 %v2693
        %2718 = vmatprep.subr.bf16.mxu0 0
        %2719 = vmatpush1.bf16.msra.mxu0 %v2695
        %2720 = vmatprep.subr.bf16.mxu0 0
        %2721 = vmatpush1.bf16.msra.mxu0 %v2697
        %2722 = vmatprep.subr.bf16.mxu0 0
        %2723 = vmatpush1.bf16.msra.mxu0 %v2699
        %2724 = vmatprep.subr.bf16.mxu0 0
        %2725 = vmatpush1.bf16.msra.mxu0 %v2701
        %2726 = vmatprep.subr.bf16.mxu0 0
        %2727 = vmatpush1.bf16.msra.mxu0 %v2703
        %2728 = vmatprep.subr.bf16.mxu0 0
        %2729 = vmatpush1.bf16.msra.mxu0 0
        %2730 = vmatprep.subr.bf16.mxu0 0
        %2731 = vmatpush1.bf16.msra.mxu0 0
        %2732 = vmatprep.subr.bf16.mxu0 0
        %2733 = vmatpush1.bf16.msra.mxu0 0
        %2734 = vmatprep.subr.bf16.mxu0 0
        %2735 = vmatpush1.bf16.msra.mxu0 0
        %2736 = vmatprep.subr.bf16.mxu0 0
        %2737 = vmatpush1.bf16.msra.mxu0 0
        %2738 = vmatprep.subr.bf16.mxu0 0
        %2739 = vmatpush1.bf16.msra.mxu0 0
        %2740 = vmatprep.subr.bf16.mxu0 0
        %2741 = vmatpush1.bf16.msra.mxu0 0
        %2742 = vmatprep.subr.bf16.mxu0 0
        %2743 = vmatpush1.bf16.msra.mxu0 0
        %2744 = vmatprep.mubr.bf16.mxu0 0
        %2745 = vmatmul.mubr.bf16.gmra.mrb[0].mxu0 %v2680
        %v2746 = vpop.f32.mrb[0].mxu0
        %v2747 = vadd.f32 0.0, %v2746
        %v2748 = vpop.f32.mrb[0].mxu0
        %v2749 = vpop.f32.mrb[0].mxu0
        %v2750 = vadd.f32 0.0, %v2749
        %v2751 = vpop.f32.mrb[0].mxu0
        %2752 = vmatprep.mubr.bf16.mxu0 0
        %2753 = vmatmul.mubr.bf16.gmra.mrb[0].mxu0 %v2681
        %v2754 = vpop.f32.mrb[0].mxu0
        %v2755 = vadd.f32 0.0, %v2754
        %v2756 = vpop.f32.mrb[0].mxu0
        %v2757 = vpop.f32.mrb[0].mxu0
        %v2758 = vadd.f32 0.0, %v2757
        %v2759 = vpop.f32.mrb[0].mxu0
        %2760 = vmatprep.mubr.bf16.mxu0 0
        %2761 = vmatmul.mubr.bf16.gmra.mrb[0].mxu0 %v2682
        %v2762 = vpop.f32.mrb[0].mxu0
        %v2763 = vadd.f32 0.0, %v2762
        %v2764 = vpop.f32.mrb[0].mxu0
        %v2765 = vpop.f32.mrb[0].mxu0
        %v2766 = vadd.f32 0.0, %v2765
        %v2767 = vpop.f32.mrb[0].mxu0
        %2768 = vmatprep.mubr.bf16.mxu0 0
        %2769 = vmatmul.mubr.bf16.gmra.mrb[0].mxu0 %v2683
        %v2770 = vpop.f32.mrb[0].mxu0
        %v2771 = vadd.f32 0.0, %v2770
        %v2772 = vpop.f32.mrb[0].mxu0
        %v2773 = vpop.f32.mrb[0].mxu0
        %v2774 = vadd.f32 0.0, %v2773
        %v2775 = vpop.f32.mrb[0].mxu0
        %2776 = vmatprep.mubr.bf16.mxu0 0
        %2777 = vmatmul.mubr.bf16.gmra.mrb[0].mxu0 %v2684
        %v2778 = vpop.f32.mrb[0].mxu0
        %v2779 = vadd.f32 0.0, %v2778
        %v2780 = vpop.f32.mrb[0].mxu0
        %v2781 = vpop.f32.mrb[0].mxu0
        %v2782 = vadd.f32 0.0, %v2781
        %v2783 = vpop.f32.mrb[0].mxu0
        %2784 = vmatprep.mubr.bf16.mxu0 0
        %2785 = vmatmul.mubr.bf16.gmra.mrb[0].mxu0 %v2685
        %v2786 = vpop.f32.mrb[0].mxu0
        %v2787 = vadd.f32 0.0, %v2786
        %v2788 = vpop.f32.mrb[0].mxu0
        %v2789 = vpop.f32.mrb[0].mxu0
        %v2790 = vadd.f32 0.0, %v2789
        %v2791 = vpop.f32.mrb[0].mxu0
        %2792 = vmatprep.mubr.bf16.mxu0 0
        %2793 = vmatmul.mubr.bf16.gmra.mrb[0].mxu0 %v2686
        %v2794 = vpop.f32.mrb[0].mxu0
        %v2795 = vadd.f32 0.0, %v2794
        %v2796 = vpop.f32.mrb[0].mxu0
        %v2797 = vpop.f32.mrb[0].mxu0
        %v2798 = vadd.f32 0.0, %v2797
        %v2799 = vpop.f32.mrb[0].mxu0
        %2800 = vmatprep.mubr.bf16.mxu0 0
        %2801 = vmatmul.mubr.bf16.gmra.mrb[0].mxu0 %v2687
        %v2802 = vpop.f32.mrb[0].mxu0
        %v2803 = vadd.f32 0.0, %v2802
        %v2804 = vpop.f32.mrb[0].mxu0
        %v2805 = vpop.f32.mrb[0].mxu0
        %v2806 = vadd.f32 0.0, %v2805
        %v2807 = vpop.f32.mrb[0].mxu0
        %2808 = vdwg.mxu0
        %2825 = vrot.lane.b32.xlu0 %v2747, 64
        %v2826 = vpop.permute.xlu0 %2825
        %2827 = vrot.lane.b32.xlu0 %v2750, 64
        %v2828 = vpop.permute.xlu0 %2827
        %2829 = vrot.lane.b32.xlu0 %v2755, 64
        %v2830 = vpop.permute.xlu0 %2829
        %2831 = vrot.lane.b32.xlu0 %v2758, 64
        %v2832 = vpop.permute.xlu0 %2831
        %2833 = vrot.lane.b32.xlu0 %v2763, 64
        %v2834 = vpop.permute.xlu0 %2833
        %2835 = vrot.lane.b32.xlu0 %v2766, 64
        %v2836 = vpop.permute.xlu0 %2835
        %2837 = vrot.lane.b32.xlu0 %v2771, 64
        %v2838 = vpop.permute.xlu0 %2837
        %2839 = vrot.lane.b32.xlu0 %v2774, 64
        %v2840 = vpop.permute.xlu0 %2839
        %2841 = vrot.lane.b32.xlu0 %v2779, 64
        %v2842 = vpop.permute.xlu0 %2841
        %2843 = vrot.lane.b32.xlu0 %v2782, 64
        %v2844 = vpop.permute.xlu0 %2843
        %2845 = vrot.lane.b32.xlu0 %v2787, 64
        %v2846 = vpop.permute.xlu0 %2845
        %2847 = vrot.lane.b32.xlu0 %v2790, 64
        %v2848 = vpop.permute.xlu0 %2847
        %2849 = vrot.lane.b32.xlu0 %v2795, 64
        %v2850 = vpop.permute.xlu0 %2849
        %2851 = vrot.lane.b32.xlu0 %v2798, 64
        %v2852 = vpop.permute.xlu0 %2851
        %2853 = vrot.lane.b32.xlu0 %v2803, 64
        %v2854 = vpop.permute.xlu0 %2853
        %2855 = vrot.lane.b32.xlu0 %v2806, 64
        %v2856 = vpop.permute.xlu0 %2855
        %v2873 = vadd.f32 %v2664, %v2826
        %v2874 = vadd.f32 %v2665, %v2828
        %v2875 = vadd.f32 %v2666, %v2830
        %v2876 = vadd.f32 %v2667, %v2832
        %v2877 = vadd.f32 %v2668, %v2834
        %v2878 = vadd.f32 %v2669, %v2836
        %v2879 = vadd.f32 %v2670, %v2838
        %v2880 = vadd.f32 %v2671, %v2840
        %v2881 = vadd.f32 %v2672, %v2842
        %v2882 = vadd.f32 %v2673, %v2844
        %v2883 = vadd.f32 %v2674, %v2846
        %v2884 = vadd.f32 %v2675, %v2848
        %v2885 = vadd.f32 %v2676, %v2850
        %v2886 = vadd.f32 %v2677, %v2852
        %v2887 = vadd.f32 %v2678, %v2854
        %v2888 = vadd.f32 %v2679, %v2856
        %vm2889 = vcmask 785920
        %2890 = vst.msk [vmem:[#allocation4] sm:$0xff] %vm2889, %v2873
        %2891 = vst.msk [vmem:[#allocation4 + $0x8] sm:$0xff] %vm2889, %v2874
        %2892 = vst.msk [vmem:[#allocation4 + $0x10] sm:$0xff] %vm2889, %v2875
        %2893 = vst.msk [vmem:[#allocation4 + $0x18] sm:$0xff] %vm2889, %v2876
        %2894 = vst.msk [vmem:[#allocation4 + $0x20] sm:$0xff] %vm2889, %v2877
        %2895 = vst.msk [vmem:[#allocation4 + $0x28] sm:$0xff] %vm2889, %v2878
        %2896 = vst.msk [vmem:[#allocation4 + $0x30] sm:$0xff] %vm2889, %v2879
        %2897 = vst.msk [vmem:[#allocation4 + $0x38] sm:$0xff] %vm2889, %v2880
        %2898 = vst.msk [vmem:[#allocation4 + $0x40] sm:$0xff] %vm2889, %v2881
        %2899 = vst.msk [vmem:[#allocation4 + $0x48] sm:$0xff] %vm2889, %v2882
        %2900 = vst.msk [vmem:[#allocation4 + $0x50] sm:$0xff] %vm2889, %v2883
        %2901 = vst.msk [vmem:[#allocation4 + $0x58] sm:$0xff] %vm2889, %v2884
        %2902 = vst.msk [vmem:[#allocation4 + $0x60] sm:$0xff] %vm2889, %v2885
        %2903 = vst.msk [vmem:[#allocation4 + $0x68] sm:$0xff] %vm2889, %v2886
        %2904 = vst.msk [vmem:[#allocation4 + $0x70] sm:$0xff] %vm2889, %v2887
        %2905 = vst.msk [vmem:[#allocation4 + $0x78] sm:$0xff] %vm2889, %v2888
        %2906 = vst.msk [vmem:[#allocation2] sm:$0xff] %vm2551, %v2279
        %2907 = vst.msk [vmem:[#allocation2 + $0x8] sm:$0xff] %vm2551, %v2280
        %2908 = vst.msk [vmem:[#allocation2 + $0x10] sm:$0xff] %vm2551, %v2281
        %2909 = vst.msk [vmem:[#allocation2 + $0x18] sm:$0xff] %vm2551, %v2282
        %2910 = vst.msk [vmem:[#allocation2 + $0x20] sm:$0xff] %vm2551, %v2283
        %2911 = vst.msk [vmem:[#allocation2 + $0x28] sm:$0xff] %vm2551, %v2284
        %2912 = vst.msk [vmem:[#allocation2 + $0x30] sm:$0xff] %vm2551, %v2285
        %2913 = vst.msk [vmem:[#allocation2 + $0x38] sm:$0xff] %vm2551, %v2286
        %2914 = vst.msk [vmem:[#allocation2 + $0x40] sm:$0xff] %vm2551, %v2287
        %2915 = vst.msk [vmem:[#allocation2 + $0x48] sm:$0xff] %vm2551, %v2288
        %2916 = vst.msk [vmem:[#allocation2 + $0x50] sm:$0xff] %vm2551, %v2289
        %2917 = vst.msk [vmem:[#allocation2 + $0x58] sm:$0xff] %vm2551, %v2290
        %2918 = vst.msk [vmem:[#allocation2 + $0x60] sm:$0xff] %vm2551, %v2291
        %2919 = vst.msk [vmem:[#allocation2 + $0x68] sm:$0xff] %vm2551, %v2292
        %2920 = vst.msk [vmem:[#allocation2 + $0x70] sm:$0xff] %vm2551, %v2293
        %2921 = vst.msk [vmem:[#allocation2 + $0x78] sm:$0xff] %vm2551, %v2294
        %2922 = vset.pattern.permute.xlu0 3
        %2923 = vperm.xlu0 %2922, %v445
        %v2924 = vpop.permute.xlu0 %2923
        %2926 = vset.pattern.permute.xlu0 3
        %2927 = vperm.xlu0 %2926, %v446
        %v2928 = vpop.permute.xlu0 %2927
        %2930 = vset.pattern.permute.xlu0 3
        %2931 = vperm.xlu0 %2930, %v447
        %v2932 = vpop.permute.xlu0 %2931
        %2934 = vset.pattern.permute.xlu0 3
        %2935 = vperm.xlu0 %2934, %v448
        %v2936 = vpop.permute.xlu0 %2935
        %2938 = vset.pattern.permute.xlu0 3
        %2939 = vperm.xlu0 %2938, %v449
        %v2940 = vpop.permute.xlu0 %2939
        %2942 = vset.pattern.permute.xlu0 3
        %2943 = vperm.xlu0 %2942, %v450
        %v2944 = vpop.permute.xlu0 %2943
        %2946 = vset.pattern.permute.xlu0 3
        %2947 = vperm.xlu0 %2946, %v451
        %v2948 = vpop.permute.xlu0 %2947
        %2950 = vset.pattern.permute.xlu0 3
        %2951 = vperm.xlu0 %2950, %v452
        %v2952 = vpop.permute.xlu0 %2951
        %2954 = vset.pattern.permute.xlu0 3
        %2955 = vperm.xlu0 %2954, %v453
        %v2956 = vpop.permute.xlu0 %2955
        %2958 = vset.pattern.permute.xlu0 3
        %2959 = vperm.xlu0 %2958, %v454
        %v2960 = vpop.permute.xlu0 %2959
        %2962 = vset.pattern.permute.xlu0 3
        %2963 = vperm.xlu0 %2962, %v455
        %v2964 = vpop.permute.xlu0 %2963
        %2966 = vset.pattern.permute.xlu0 3
        %2967 = vperm.xlu0 %2966, %v456
        %v2968 = vpop.permute.xlu0 %2967
        %2970 = vset.pattern.permute.xlu0 3
        %2971 = vperm.xlu0 %2970, %v457
        %v2972 = vpop.permute.xlu0 %2971
        %2974 = vset.pattern.permute.xlu0 3
        %2975 = vperm.xlu0 %2974, %v458
        %v2976 = vpop.permute.xlu0 %2975
        %2978 = vset.pattern.permute.xlu0 3
        %2979 = vperm.xlu0 %2978, %v459
        %v2980 = vpop.permute.xlu0 %2979
        %2982 = vset.pattern.permute.xlu0 3
        %2983 = vperm.xlu0 %2982, %v460
        %v2984 = vpop.permute.xlu0 %2983
        %v2986 = vlaneseq
        %v2987 = vshrl.u32 %v2986, 7
        %v2988 = vsub.s32 3, %v2987
        %v2989 = vrot.slane %v444, %v2988
        %v2990 = vadd.f32 %v2924, %v2989
        %v2991 = vadd.f32 %v2928, %v2989
        %v2992 = vadd.f32 %v2932, %v2989
        %v2993 = vadd.f32 %v2936, %v2989
        %v2994 = vadd.f32 %v2940, %v2989
        %v2995 = vadd.f32 %v2944, %v2989
        %v2996 = vadd.f32 %v2948, %v2989
        %v2997 = vadd.f32 %v2952, %v2989
        %v2998 = vadd.f32 %v2956, %v2989
        %v2999 = vadd.f32 %v2960, %v2989
        %v3000 = vadd.f32 %v2964, %v2989
        %v3001 = vadd.f32 %v2968, %v2989
        %v3002 = vadd.f32 %v2972, %v2989
        %v3003 = vadd.f32 %v2976, %v2989
        %v3004 = vadd.f32 %v2980, %v2989
        %v3005 = vadd.f32 %v2984, %v2989
        %v3006 = vmul.f32 %v2990, 0.2
        %v3007 = vmul.f32 %v2991, 0.2
        %v3008 = vmul.f32 %v2992, 0.2
        %v3009 = vmul.f32 %v2993, 0.2
        %v3010 = vmul.f32 %v2994, 0.2
        %v3011 = vmul.f32 %v2995, 0.2
        %v3012 = vmul.f32 %v2996, 0.2
        %v3013 = vmul.f32 %v2997, 0.2
        %v3014 = vmul.f32 %v2998, 0.2
        %v3015 = vmul.f32 %v2999, 0.2
        %v3016 = vmul.f32 %v3000, 0.2
        %v3017 = vmul.f32 %v3001, 0.2
        %v3018 = vmul.f32 %v3002, 0.2
        %v3019 = vmul.f32 %v3003, 0.2
        %v3020 = vmul.f32 %v3004, 0.2
        %v3021 = vmul.f32 %v3005, 0.2
        %v3022 = vmax.f32 %v2990, %v3006
        %v3023 = vmax.f32 %v2991, %v3007
        %v3024 = vmax.f32 %v2992, %v3008
        %v3025 = vmax.f32 %v2993, %v3009
        %v3026 = vmax.f32 %v2994, %v3010
        %v3027 = vmax.f32 %v2995, %v3011
        %v3028 = vmax.f32 %v2996, %v3012
        %v3029 = vmax.f32 %v2997, %v3013
        %v3030 = vmax.f32 %v2998, %v3014
        %v3031 = vmax.f32 %v2999, %v3015
        %v3032 = vmax.f32 %v3000, %v3016
        %v3033 = vmax.f32 %v3001, %v3017
        %v3034 = vmax.f32 %v3002, %v3018
        %v3035 = vmax.f32 %v3003, %v3019
        %v3036 = vmax.f32 %v3004, %v3020
        %v3037 = vmax.f32 %v3005, %v3021
        %v3038 = vadd.f32 %v3022, %v428
        %v3039 = vadd.f32 %v3023, %v429
        %v3040 = vadd.f32 %v3024, %v430
        %v3041 = vadd.f32 %v3025, %v431
        %v3042 = vadd.f32 %v3026, %v432
        %v3043 = vadd.f32 %v3027, %v433
        %v3044 = vadd.f32 %v3028, %v434
        %v3045 = vadd.f32 %v3029, %v435
        %v3046 = vadd.f32 %v3030, %v436
        %v3047 = vadd.f32 %v3031, %v437
        %v3048 = vadd.f32 %v3032, %v438
        %v3049 = vadd.f32 %v3033, %v439
        %v3050 = vadd.f32 %v3034, %v440
        %v3051 = vadd.f32 %v3035, %v441
        %v3052 = vadd.f32 %v3036, %v442
        %v3053 = vadd.f32 %v3037, %v443
        %v3054 = vld [vmem:[#allocation2] sm:$0xff]
        %v3055 = vld [vmem:[#allocation2 + $0x8] sm:$0xff]
        %v3056 = vld [vmem:[#allocation2 + $0x10] sm:$0xff]
        %v3057 = vld [vmem:[#allocation2 + $0x18] sm:$0xff]
        %v3058 = vld [vmem:[#allocation2 + $0x20] sm:$0xff]
        %v3059 = vld [vmem:[#allocation2 + $0x28] sm:$0xff]
        %v3060 = vld [vmem:[#allocation2 + $0x30] sm:$0xff]
        %v3061 = vld [vmem:[#allocation2 + $0x38] sm:$0xff]
        %v3062 = vld [vmem:[#allocation2 + $0x40] sm:$0xff]
        %v3063 = vld [vmem:[#allocation2 + $0x48] sm:$0xff]
        %v3064 = vld [vmem:[#allocation2 + $0x50] sm:$0xff]
        %v3065 = vld [vmem:[#allocation2 + $0x58] sm:$0xff]
        %v3066 = vld [vmem:[#allocation2 + $0x60] sm:$0xff]
        %v3067 = vld [vmem:[#allocation2 + $0x68] sm:$0xff]
        %v3068 = vld [vmem:[#allocation2 + $0x70] sm:$0xff]
        %v3069 = vld [vmem:[#allocation2 + $0x78] sm:$0xff]
        %3070 = vmax.xlane.f32.xlu0 %v3038
        %v3071 = vpop.xlane.xlu0 %3070
        %3072 = vmax.xlane.f32.xlu0 %v3039
        %v3073 = vpop.xlane.xlu0 %3072
        %3074 = vmax.xlane.f32.xlu0 %v3040
        %v3075 = vpop.xlane.xlu0 %3074
        %3076 = vmax.xlane.f32.xlu0 %v3041
        %v3077 = vpop.xlane.xlu0 %3076
        %3078 = vmax.xlane.f32.xlu0 %v3042
        %v3079 = vpop.xlane.xlu0 %3078
        %3080 = vmax.xlane.f32.xlu0 %v3043
        %v3081 = vpop.xlane.xlu0 %3080
        %3082 = vmax.xlane.f32.xlu0 %v3044
        %v3083 = vpop.xlane.xlu0 %3082
        %3084 = vmax.xlane.f32.xlu0 %v3045
        %v3085 = vpop.xlane.xlu0 %3084
        %3086 = vmax.xlane.f32.xlu0 %v3046
        %v3087 = vpop.xlane.xlu0 %3086
        %3088 = vmax.xlane.f32.xlu0 %v3047
        %v3089 = vpop.xlane.xlu0 %3088
        %3090 = vmax.xlane.f32.xlu0 %v3048
        %v3091 = vpop.xlane.xlu0 %3090
        %3092 = vmax.xlane.f32.xlu0 %v3049
        %v3093 = vpop.xlane.xlu0 %3092
        %3094 = vmax.xlane.f32.xlu0 %v3050
        %v3095 = vpop.xlane.xlu0 %3094
        %3096 = vmax.xlane.f32.xlu0 %v3051
        %v3097 = vpop.xlane.xlu0 %3096
        %3098 = vmax.xlane.f32.xlu0 %v3052
        %v3099 = vpop.xlane.xlu0 %3098
        %3100 = vmax.xlane.f32.xlu0 %v3053
        %v3101 = vpop.xlane.xlu0 %3100
        %v3102 = vmax.f32 %v3054, %v3071
        %v3103 = vmax.f32 %v3055, %v3073
        %v3104 = vmax.f32 %v3056, %v3075
        %v3105 = vmax.f32 %v3057, %v3077
        %v3106 = vmax.f32 %v3058, %v3079
        %v3107 = vmax.f32 %v3059, %v3081
        %v3108 = vmax.f32 %v3060, %v3083
        %v3109 = vmax.f32 %v3061, %v3085
        %v3110 = vmax.f32 %v3062, %v3087
        %v3111 = vmax.f32 %v3063, %v3089
        %v3112 = vmax.f32 %v3064, %v3091
        %v3113 = vmax.f32 %v3065, %v3093
        %v3114 = vmax.f32 %v3066, %v3095
        %v3115 = vmax.f32 %v3067, %v3097
        %v3116 = vmax.f32 %v3068, %v3099
        %v3117 = vmax.f32 %v3069, %v3101
        %v3118 = vsub.f32 %v3054, %v3102
        %v3119 = vsub.f32 %v3055, %v3103
        %v3120 = vsub.f32 %v3056, %v3104
        %v3121 = vsub.f32 %v3057, %v3105
        %v3122 = vsub.f32 %v3058, %v3106
        %v3123 = vsub.f32 %v3059, %v3107
        %v3124 = vsub.f32 %v3060, %v3108
        %v3125 = vsub.f32 %v3061, %v3109
        %v3126 = vsub.f32 %v3062, %v3110
        %v3127 = vsub.f32 %v3063, %v3111
        %v3128 = vsub.f32 %v3064, %v3112
        %v3129 = vsub.f32 %v3065, %v3113
        %v3130 = vsub.f32 %v3066, %v3114
        %v3131 = vsub.f32 %v3067, %v3115
        %v3132 = vsub.f32 %v3068, %v3116
        %v3133 = vsub.f32 %v3069, %v3117
        %v3134 = vmul.f32 %v3118, 1.442695
        %v3135 = vpow.pop %v3134
        %v3136 = vmul.f32 %v3119, 1.442695
        %v3137 = vpow.pop %v3136
        %v3138 = vmul.f32 %v3120, 1.442695
        %v3139 = vpow.pop %v3138
        %v3140 = vmul.f32 %v3121, 1.442695
        %v3141 = vpow.pop %v3140
        %v3142 = vmul.f32 %v3122, 1.442695
        %v3143 = vpow.pop %v3142
        %v3144 = vmul.f32 %v3123, 1.442695
        %v3145 = vpow.pop %v3144
        %v3146 = vmul.f32 %v3124, 1.442695
        %v3147 = vpow.pop %v3146
        %v3148 = vmul.f32 %v3125, 1.442695
        %v3149 = vpow.pop %v3148
        %v3150 = vmul.f32 %v3126, 1.442695
        %v3151 = vpow.pop %v3150
        %v3152 = vmul.f32 %v3127, 1.442695
        %v3153 = vpow.pop %v3152
        %v3154 = vmul.f32 %v3128, 1.442695
        %v3155 = vpow.pop %v3154
        %v3156 = vmul.f32 %v3129, 1.442695
        %v3157 = vpow.pop %v3156
        %v3158 = vmul.f32 %v3130, 1.442695
        %v3159 = vpow.pop %v3158
        %v3160 = vmul.f32 %v3131, 1.442695
        %v3161 = vpow.pop %v3160
        %v3162 = vmul.f32 %v3132, 1.442695
        %v3163 = vpow.pop %v3162
        %v3164 = vmul.f32 %v3133, 1.442695
        %v3165 = vpow.pop %v3164
        %3167 = vset.pattern.permute.xlu0 3
        %3168 = vperm.xlu0 %3167, %v3102
        %v3169 = vpop.permute.xlu0 %3168
        %3172 = vset.pattern.permute.xlu0 3
        %3173 = vperm.xlu0 %3172, %v3103
        %v3174 = vpop.permute.xlu0 %3173
        %3177 = vset.pattern.permute.xlu0 3
        %3178 = vperm.xlu0 %3177, %v3104
        %v3179 = vpop.permute.xlu0 %3178
        %3182 = vset.pattern.permute.xlu0 3
        %3183 = vperm.xlu0 %3182, %v3105
        %v3184 = vpop.permute.xlu0 %3183
        %3187 = vset.pattern.permute.xlu0 3
        %3188 = vperm.xlu0 %3187, %v3106
        %v3189 = vpop.permute.xlu0 %3188
        %3192 = vset.pattern.permute.xlu0 3
        %3193 = vperm.xlu0 %3192, %v3107
        %v3194 = vpop.permute.xlu0 %3193
        %3197 = vset.pattern.permute.xlu0 3
        %3198 = vperm.xlu0 %3197, %v3108
        %v3199 = vpop.permute.xlu0 %3198
        %3202 = vset.pattern.permute.xlu0 3
        %3203 = vperm.xlu0 %3202, %v3109
        %v3204 = vpop.permute.xlu0 %3203
        %3207 = vset.pattern.permute.xlu0 3
        %3208 = vperm.xlu0 %3207, %v3110
        %v3209 = vpop.permute.xlu0 %3208
        %3212 = vset.pattern.permute.xlu0 3
        %3213 = vperm.xlu0 %3212, %v3111
        %v3214 = vpop.permute.xlu0 %3213
        %3217 = vset.pattern.permute.xlu0 3
        %3218 = vperm.xlu0 %3217, %v3112
        %v3219 = vpop.permute.xlu0 %3218
        %3222 = vset.pattern.permute.xlu0 3
        %3223 = vperm.xlu0 %3222, %v3113
        %v3224 = vpop.permute.xlu0 %3223
        %3227 = vset.pattern.permute.xlu0 3
        %3228 = vperm.xlu0 %3227, %v3114
        %v3229 = vpop.permute.xlu0 %3228
        %3232 = vset.pattern.permute.xlu0 3
        %3233 = vperm.xlu0 %3232, %v3115
        %v3234 = vpop.permute.xlu0 %3233
        %3237 = vset.pattern.permute.xlu0 3
        %3238 = vperm.xlu0 %3237, %v3116
        %v3239 = vpop.permute.xlu0 %3238
        %3242 = vset.pattern.permute.xlu0 3
        %3243 = vperm.xlu0 %3242, %v3117
        %v3244 = vpop.permute.xlu0 %3243
        %v3246 = vsub.f32 %v3038, %v3169
        %v3247 = vsub.f32 %v3039, %v3174
        %v3248 = vsub.f32 %v3040, %v3179
        %v3249 = vsub.f32 %v3041, %v3184
        %v3250 = vsub.f32 %v3042, %v3189
        %v3251 = vsub.f32 %v3043, %v3194
        %v3252 = vsub.f32 %v3044, %v3199
        %v3253 = vsub.f32 %v3045, %v3204
        %v3254 = vsub.f32 %v3046, %v3209
        %v3255 = vsub.f32 %v3047, %v3214
        %v3256 = vsub.f32 %v3048, %v3219
        %v3257 = vsub.f32 %v3049, %v3224
        %v3258 = vsub.f32 %v3050, %v3229
        %v3259 = vsub.f32 %v3051, %v3234
        %v3260 = vsub.f32 %v3052, %v3239
        %v3261 = vsub.f32 %v3053, %v3244
        %v3262 = vmul.f32 %v3246, 1.442695
        %v3263 = vpow.pop %v3262
        %v3264 = vmul.f32 %v3247, 1.442695
        %v3265 = vpow.pop %v3264
        %v3266 = vmul.f32 %v3248, 1.442695
        %v3267 = vpow.pop %v3266
        %v3268 = vmul.f32 %v3249, 1.442695
        %v3269 = vpow.pop %v3268
        %v3270 = vmul.f32 %v3250, 1.442695
        %v3271 = vpow.pop %v3270
        %v3272 = vmul.f32 %v3251, 1.442695
        %v3273 = vpow.pop %v3272
        %v3274 = vmul.f32 %v3252, 1.442695
        %v3275 = vpow.pop %v3274
        %v3276 = vmul.f32 %v3253, 1.442695
        %v3277 = vpow.pop %v3276
        %v3278 = vmul.f32 %v3254, 1.442695
        %v3279 = vpow.pop %v3278
        %v3280 = vmul.f32 %v3255, 1.442695
        %v3281 = vpow.pop %v3280
        %v3282 = vmul.f32 %v3256, 1.442695
        %v3283 = vpow.pop %v3282
        %v3284 = vmul.f32 %v3257, 1.442695
        %v3285 = vpow.pop %v3284
        %v3286 = vmul.f32 %v3258, 1.442695
        %v3287 = vpow.pop %v3286
        %v3288 = vmul.f32 %v3259, 1.442695
        %v3289 = vpow.pop %v3288
        %v3290 = vmul.f32 %v3260, 1.442695
        %v3291 = vpow.pop %v3290
        %v3292 = vmul.f32 %v3261, 1.442695
        %v3293 = vpow.pop %v3292
        %v3294 = vld [vmem:[#allocation3] sm:$0xff]
        %v3295 = vld [vmem:[#allocation3 + $0x8] sm:$0xff]
        %v3296 = vld [vmem:[#allocation3 + $0x10] sm:$0xff]
        %v3297 = vld [vmem:[#allocation3 + $0x18] sm:$0xff]
        %v3298 = vld [vmem:[#allocation3 + $0x20] sm:$0xff]
        %v3299 = vld [vmem:[#allocation3 + $0x28] sm:$0xff]
        %v3300 = vld [vmem:[#allocation3 + $0x30] sm:$0xff]
        %v3301 = vld [vmem:[#allocation3 + $0x38] sm:$0xff]
        %v3302 = vld [vmem:[#allocation3 + $0x40] sm:$0xff]
        %v3303 = vld [vmem:[#allocation3 + $0x48] sm:$0xff]
        %v3304 = vld [vmem:[#allocation3 + $0x50] sm:$0xff]
        %v3305 = vld [vmem:[#allocation3 + $0x58] sm:$0xff]
        %v3306 = vld [vmem:[#allocation3 + $0x60] sm:$0xff]
        %v3307 = vld [vmem:[#allocation3 + $0x68] sm:$0xff]
        %v3308 = vld [vmem:[#allocation3 + $0x70] sm:$0xff]
        %v3309 = vld [vmem:[#allocation3 + $0x78] sm:$0xff]
        %v3310 = vmul.f32 %v3135, %v3294
        %v3311 = vmul.f32 %v3137, %v3295
        %v3312 = vmul.f32 %v3139, %v3296
        %v3313 = vmul.f32 %v3141, %v3297
        %v3314 = vmul.f32 %v3143, %v3298
        %v3315 = vmul.f32 %v3145, %v3299
        %v3316 = vmul.f32 %v3147, %v3300
        %v3317 = vmul.f32 %v3149, %v3301
        %v3318 = vmul.f32 %v3151, %v3302
        %v3319 = vmul.f32 %v3153, %v3303
        %v3320 = vmul.f32 %v3155, %v3304
        %v3321 = vmul.f32 %v3157, %v3305
        %v3322 = vmul.f32 %v3159, %v3306
        %v3323 = vmul.f32 %v3161, %v3307
        %v3324 = vmul.f32 %v3163, %v3308
        %v3325 = vmul.f32 %v3165, %v3309
        %3326 = vadd.xlane.f32.xlu0 %v3263
        %v3327 = vpop.xlane.xlu0 %3326
        %3328 = vadd.xlane.f32.xlu0 %v3265
        %v3329 = vpop.xlane.xlu0 %3328
        %3330 = vadd.xlane.f32.xlu0 %v3267
        %v3331 = vpop.xlane.xlu0 %3330
        %3332 = vadd.xlane.f32.xlu0 %v3269
        %v3333 = vpop.xlane.xlu0 %3332
        %3334 = vadd.xlane.f32.xlu0 %v3271
        %v3335 = vpop.xlane.xlu0 %3334
        %3336 = vadd.xlane.f32.xlu0 %v3273
        %v3337 = vpop.xlane.xlu0 %3336
        %3338 = vadd.xlane.f32.xlu0 %v3275
        %v3339 = vpop.xlane.xlu0 %3338
        %3340 = vadd.xlane.f32.xlu0 %v3277
        %v3341 = vpop.xlane.xlu0 %3340
        %3342 = vadd.xlane.f32.xlu0 %v3279
        %v3343 = vpop.xlane.xlu0 %3342
        %3344 = vadd.xlane.f32.xlu0 %v3281
        %v3345 = vpop.xlane.xlu0 %3344
        %3346 = vadd.xlane.f32.xlu0 %v3283
        %v3347 = vpop.xlane.xlu0 %3346
        %3348 = vadd.xlane.f32.xlu0 %v3285
        %v3349 = vpop.xlane.xlu0 %3348
        %3350 = vadd.xlane.f32.xlu0 %v3287
        %v3351 = vpop.xlane.xlu0 %3350
        %3352 = vadd.xlane.f32.xlu0 %v3289
        %v3353 = vpop.xlane.xlu0 %3352
        %3354 = vadd.xlane.f32.xlu0 %v3291
        %v3355 = vpop.xlane.xlu0 %3354
        %3356 = vadd.xlane.f32.xlu0 %v3293
        %v3357 = vpop.xlane.xlu0 %3356
        %v3358 = vadd.f32 %v3310, %v3327
        %v3359 = vadd.f32 %v3311, %v3329
        %v3360 = vadd.f32 %v3312, %v3331
        %v3361 = vadd.f32 %v3313, %v3333
        %v3362 = vadd.f32 %v3314, %v3335
        %v3363 = vadd.f32 %v3315, %v3337
        %v3364 = vadd.f32 %v3316, %v3339
        %v3365 = vadd.f32 %v3317, %v3341
        %v3366 = vadd.f32 %v3318, %v3343
        %v3367 = vadd.f32 %v3319, %v3345
        %v3368 = vadd.f32 %v3320, %v3347
        %v3369 = vadd.f32 %v3321, %v3349
        %v3370 = vadd.f32 %v3322, %v3351
        %v3371 = vadd.f32 %v3323, %v3353
        %v3372 = vadd.f32 %v3324, %v3355
        %v3373 = vadd.f32 %v3325, %v3357
        %vm3374 = vcmask 31768
        %3375 = vst.msk [vmem:[#allocation3] sm:$0xff] %vm3374, %v3358
        %3376 = vst.msk [vmem:[#allocation3 + $0x8] sm:$0xff] %vm3374, %v3359
        %3377 = vst.msk [vmem:[#allocation3 + $0x10] sm:$0xff] %vm3374, %v3360
        %3378 = vst.msk [vmem:[#allocation3 + $0x18] sm:$0xff] %vm3374, %v3361
        %3379 = vst.msk [vmem:[#allocation3 + $0x20] sm:$0xff] %vm3374, %v3362
        %3380 = vst.msk [vmem:[#allocation3 + $0x28] sm:$0xff] %vm3374, %v3363
        %3381 = vst.msk [vmem:[#allocation3 + $0x30] sm:$0xff] %vm3374, %v3364
        %3382 = vst.msk [vmem:[#allocation3 + $0x38] sm:$0xff] %vm3374, %v3365
        %3383 = vst.msk [vmem:[#allocation3 + $0x40] sm:$0xff] %vm3374, %v3366
        %3384 = vst.msk [vmem:[#allocation3 + $0x48] sm:$0xff] %vm3374, %v3367
        %3385 = vst.msk [vmem:[#allocation3 + $0x50] sm:$0xff] %vm3374, %v3368
        %3386 = vst.msk [vmem:[#allocation3 + $0x58] sm:$0xff] %vm3374, %v3369
        %3387 = vst.msk [vmem:[#allocation3 + $0x60] sm:$0xff] %vm3374, %v3370
        %3388 = vst.msk [vmem:[#allocation3 + $0x68] sm:$0xff] %vm3374, %v3371
        %3389 = vst.msk [vmem:[#allocation3 + $0x70] sm:$0xff] %vm3374, %v3372
        %3390 = vst.msk [vmem:[#allocation3 + $0x78] sm:$0xff] %vm3374, %v3373
        %v3391 = vld [vmem:[#allocation4] sm:$0xff]
        %v3392 = vld [vmem:[#allocation4 + $0x8] sm:$0xff]
        %v3393 = vld [vmem:[#allocation4 + $0x10] sm:$0xff]
        %v3394 = vld [vmem:[#allocation4 + $0x18] sm:$0xff]
        %v3395 = vld [vmem:[#allocation4 + $0x20] sm:$0xff]
        %v3396 = vld [vmem:[#allocation4 + $0x28] sm:$0xff]
        %v3397 = vld [vmem:[#allocation4 + $0x30] sm:$0xff]
        %v3398 = vld [vmem:[#allocation4 + $0x38] sm:$0xff]
        %v3399 = vld [vmem:[#allocation4 + $0x40] sm:$0xff]
        %v3400 = vld [vmem:[#allocation4 + $0x48] sm:$0xff]
        %v3401 = vld [vmem:[#allocation4 + $0x50] sm:$0xff]
        %v3402 = vld [vmem:[#allocation4 + $0x58] sm:$0xff]
        %v3403 = vld [vmem:[#allocation4 + $0x60] sm:$0xff]
        %v3404 = vld [vmem:[#allocation4 + $0x68] sm:$0xff]
        %v3405 = vld [vmem:[#allocation4 + $0x70] sm:$0xff]
        %v3406 = vld [vmem:[#allocation4 + $0x78] sm:$0xff]
        %3408 = vset.pattern.permute.xlu0 3
        %3409 = vperm.xlu0 %3408, %v3135
        %v3410 = vpop.permute.xlu0 %3409
        %3413 = vset.pattern.permute.xlu0 3
        %3414 = vperm.xlu0 %3413, %v3137
        %v3415 = vpop.permute.xlu0 %3414
        %3418 = vset.pattern.permute.xlu0 3
        %3419 = vperm.xlu0 %3418, %v3139
        %v3420 = vpop.permute.xlu0 %3419
        %3423 = vset.pattern.permute.xlu0 3
        %3424 = vperm.xlu0 %3423, %v3141
        %v3425 = vpop.permute.xlu0 %3424
        %3428 = vset.pattern.permute.xlu0 3
        %3429 = vperm.xlu0 %3428, %v3143
        %v3430 = vpop.permute.xlu0 %3429
        %3433 = vset.pattern.permute.xlu0 3
        %3434 = vperm.xlu0 %3433, %v3145
        %v3435 = vpop.permute.xlu0 %3434
        %3438 = vset.pattern.permute.xlu0 3
        %3439 = vperm.xlu0 %3438, %v3147
        %v3440 = vpop.permute.xlu0 %3439
        %3443 = vset.pattern.permute.xlu0 3
        %3444 = vperm.xlu0 %3443, %v3149
        %v3445 = vpop.permute.xlu0 %3444
        %3448 = vset.pattern.permute.xlu0 3
        %3449 = vperm.xlu0 %3448, %v3151
        %v3450 = vpop.permute.xlu0 %3449
        %3453 = vset.pattern.permute.xlu0 3
        %3454 = vperm.xlu0 %3453, %v3153
        %v3455 = vpop.permute.xlu0 %3454
        %3458 = vset.pattern.permute.xlu0 3
        %3459 = vperm.xlu0 %3458, %v3155
        %v3460 = vpop.permute.xlu0 %3459
        %3463 = vset.pattern.permute.xlu0 3
        %3464 = vperm.xlu0 %3463, %v3157
        %v3465 = vpop.permute.xlu0 %3464
        %3468 = vset.pattern.permute.xlu0 3
        %3469 = vperm.xlu0 %3468, %v3159
        %v3470 = vpop.permute.xlu0 %3469
        %3473 = vset.pattern.permute.xlu0 3
        %3474 = vperm.xlu0 %3473, %v3161
        %v3475 = vpop.permute.xlu0 %3474
        %3478 = vset.pattern.permute.xlu0 3
        %3479 = vperm.xlu0 %3478, %v3163
        %v3480 = vpop.permute.xlu0 %3479
        %3483 = vset.pattern.permute.xlu0 3
        %3484 = vperm.xlu0 %3483, %v3165
        %v3485 = vpop.permute.xlu0 %3484
        %v3487 = vmul.f32 %v3410, %v3391
        %v3488 = vmul.f32 %v3415, %v3392
        %v3489 = vmul.f32 %v3420, %v3393
        %v3490 = vmul.f32 %v3425, %v3394
        %v3491 = vmul.f32 %v3430, %v3395
        %v3492 = vmul.f32 %v3435, %v3396
        %v3493 = vmul.f32 %v3440, %v3397
        %v3494 = vmul.f32 %v3445, %v3398
        %v3495 = vmul.f32 %v3450, %v3399
        %v3496 = vmul.f32 %v3455, %v3400
        %v3497 = vmul.f32 %v3460, %v3401
        %v3498 = vmul.f32 %v3465, %v3402
        %v3499 = vmul.f32 %v3470, %v3403
        %v3500 = vmul.f32 %v3475, %v3404
        %v3501 = vmul.f32 %v3480, %v3405
        %v3502 = vmul.f32 %v3485, %v3406
        %v3503 = vpack.c.bf16 %v3265, %v3263
        %v3504 = vpack.c.bf16 %v3269, %v3267
        %v3505 = vpack.c.bf16 %v3273, %v3271
        %v3506 = vpack.c.bf16 %v3277, %v3275
        %v3507 = vpack.c.bf16 %v3281, %v3279
        %v3508 = vpack.c.bf16 %v3285, %v3283
        %v3509 = vpack.c.bf16 %v3289, %v3287
        %v3510 = vpack.c.bf16 %v3293, %v3291
        %3511 = vrot.lane.b32.xlu0 %v1114, 32
        %v3512 = vpop.permute.xlu0 %3511
        %3513 = vrot.lane.b32.xlu0 %v1115, 32
        %v3514 = vpop.permute.xlu0 %3513
        %3515 = vrot.lane.b32.xlu0 %v1116, 32
        %v3516 = vpop.permute.xlu0 %3515
        %3517 = vrot.lane.b32.xlu0 %v1117, 32
        %v3518 = vpop.permute.xlu0 %3517
        %3519 = vrot.lane.b32.xlu0 %v1118, 32
        %v3520 = vpop.permute.xlu0 %3519
        %3521 = vrot.lane.b32.xlu0 %v1119, 32
        %v3522 = vpop.permute.xlu0 %3521
        %3523 = vrot.lane.b32.xlu0 %v1120, 32
        %v3524 = vpop.permute.xlu0 %3523
        %3525 = vrot.lane.b32.xlu0 %v1121, 32
        %v3526 = vpop.permute.xlu0 %3525
        %3535 = vmatprep.subr.bf16.mxu0 0
        %3536 = vmatpush1.bf16.msra.mxu0 %v3512
        %3537 = vmatprep.subr.bf16.mxu0 0
        %3538 = vmatpush1.bf16.msra.mxu0 %v3514
        %3539 = vmatprep.subr.bf16.mxu0 0
        %3540 = vmatpush1.bf16.msra.mxu0 %v3516
        %3541 = vmatprep.subr.bf16.mxu0 0
        %3542 = vmatpush1.bf16.msra.mxu0 %v3518
        %3543 = vmatprep.subr.bf16.mxu0 0
        %3544 = vmatpush1.bf16.msra.mxu0 %v3520
        %3545 = vmatprep.subr.bf16.mxu0 0
        %3546 = vmatpush1.bf16.msra.mxu0 %v3522
        %3547 = vmatprep.subr.bf16.mxu0 0
        %3548 = vmatpush1.bf16.msra.mxu0 %v3524
        %3549 = vmatprep.subr.bf16.mxu0 0
        %3550 = vmatpush1.bf16.msra.mxu0 %v3526
        %3551 = vmatprep.subr.bf16.mxu0 0
        %3552 = vmatpush1.bf16.msra.mxu0 0
        %3553 = vmatprep.subr.bf16.mxu0 0
        %3554 = vmatpush1.bf16.msra.mxu0 0
        %3555 = vmatprep.subr.bf16.mxu0 0
        %3556 = vmatpush1.bf16.msra.mxu0 0
        %3557 = vmatprep.subr.bf16.mxu0 0
        %3558 = vmatpush1.bf16.msra.mxu0 0
        %3559 = vmatprep.subr.bf16.mxu0 0
        %3560 = vmatpush1.bf16.msra.mxu0 0
        %3561 = vmatprep.subr.bf16.mxu0 0
        %3562 = vmatpush1.bf16.msra.mxu0 0
        %3563 = vmatprep.subr.bf16.mxu0 0
        %3564 = vmatpush1.bf16.msra.mxu0 0
        %3565 = vmatprep.subr.bf16.mxu0 0
        %3566 = vmatpush1.bf16.msra.mxu0 0
        %3567 = vmatprep.mubr.bf16.mxu0 0
        %3568 = vmatmul.mubr.bf16.gmra.mrb[0].mxu0 %v3503
        %v3569 = vpop.f32.mrb[0].mxu0
        %v3570 = vadd.f32 0.0, %v3569
        %v3571 = vpop.f32.mrb[0].mxu0
        %v3572 = vpop.f32.mrb[0].mxu0
        %v3573 = vadd.f32 0.0, %v3572
        %v3574 = vpop.f32.mrb[0].mxu0
        %3575 = vmatprep.mubr.bf16.mxu0 0
        %3576 = vmatmul.mubr.bf16.gmra.mrb[0].mxu0 %v3504
        %v3577 = vpop.f32.mrb[0].mxu0
        %v3578 = vadd.f32 0.0, %v3577
        %v3579 = vpop.f32.mrb[0].mxu0
        %v3580 = vpop.f32.mrb[0].mxu0
        %v3581 = vadd.f32 0.0, %v3580
        %v3582 = vpop.f32.mrb[0].mxu0
        %3583 = vmatprep.mubr.bf16.mxu0 0
        %3584 = vmatmul.mubr.bf16.gmra.mrb[0].mxu0 %v3505
        %v3585 = vpop.f32.mrb[0].mxu0
        %v3586 = vadd.f32 0.0, %v3585
        %v3587 = vpop.f32.mrb[0].mxu0
        %v3588 = vpop.f32.mrb[0].mxu0
        %v3589 = vadd.f32 0.0, %v3588
        %v3590 = vpop.f32.mrb[0].mxu0
        %3591 = vmatprep.mubr.bf16.mxu0 0
        %3592 = vmatmul.mubr.bf16.gmra.mrb[0].mxu0 %v3506
        %v3593 = vpop.f32.mrb[0].mxu0
        %v3594 = vadd.f32 0.0, %v3593
        %v3595 = vpop.f32.mrb[0].mxu0
        %v3596 = vpop.f32.mrb[0].mxu0
        %v3597 = vadd.f32 0.0, %v3596
        %v3598 = vpop.f32.mrb[0].mxu0
        %3599 = vmatprep.mubr.bf16.mxu0 0
        %3600 = vmatmul.mubr.bf16.gmra.mrb[0].mxu0 %v3507
        %v3601 = vpop.f32.mrb[0].mxu0
        %v3602 = vadd.f32 0.0, %v3601
        %v3603 = vpop.f32.mrb[0].mxu0
        %v3604 = vpop.f32.mrb[0].mxu0
        %v3605 = vadd.f32 0.0, %v3604
        %v3606 = vpop.f32.mrb[0].mxu0
        %3607 = vmatprep.mubr.bf16.mxu0 0
        %3608 = vmatmul.mubr.bf16.gmra.mrb[0].mxu0 %v3508
        %v3609 = vpop.f32.mrb[0].mxu0
        %v3610 = vadd.f32 0.0, %v3609
        %v3611 = vpop.f32.mrb[0].mxu0
        %v3612 = vpop.f32.mrb[0].mxu0
        %v3613 = vadd.f32 0.0, %v3612
        %v3614 = vpop.f32.mrb[0].mxu0
        %3615 = vmatprep.mubr.bf16.mxu0 0
        %3616 = vmatmul.mubr.bf16.gmra.mrb[0].mxu0 %v3509
        %v3617 = vpop.f32.mrb[0].mxu0
        %v3618 = vadd.f32 0.0, %v3617
        %v3619 = vpop.f32.mrb[0].mxu0
        %v3620 = vpop.f32.mrb[0].mxu0
        %v3621 = vadd.f32 0.0, %v3620
        %v3622 = vpop.f32.mrb[0].mxu0
        %3623 = vmatprep.mubr.bf16.mxu0 0
        %3624 = vmatmul.mubr.bf16.gmra.mrb[0].mxu0 %v3510
        %v3625 = vpop.f32.mrb[0].mxu0
        %v3626 = vadd.f32 0.0, %v3625
        %v3627 = vpop.f32.mrb[0].mxu0
        %v3628 = vpop.f32.mrb[0].mxu0
        %v3629 = vadd.f32 0.0, %v3628
        %v3630 = vpop.f32.mrb[0].mxu0
        %3631 = vdwg.mxu0
        %3648 = vrot.lane.b32.xlu0 %v3570, 96
        %v3649 = vpop.permute.xlu0 %3648
        %3650 = vrot.lane.b32.xlu0 %v3573, 96
        %v3651 = vpop.permute.xlu0 %3650
        %3652 = vrot.lane.b32.xlu0 %v3578, 96
        %v3653 = vpop.permute.xlu0 %3652
        %3654 = vrot.lane.b32.xlu0 %v3581, 96
        %v3655 = vpop.permute.xlu0 %3654
        %3656 = vrot.lane.b32.xlu0 %v3586, 96
        %v3657 = vpop.permute.xlu0 %3656
        %3658 = vrot.lane.b32.xlu0 %v3589, 96
        %v3659 = vpop.permute.xlu0 %3658
        %3660 = vrot.lane.b32.xlu0 %v3594, 96
        %v3661 = vpop.permute.xlu0 %3660
        %3662 = vrot.lane.b32.xlu0 %v3597, 96
        %v3663 = vpop.permute.xlu0 %3662
        %3664 = vrot.lane.b32.xlu0 %v3602, 96
        %v3665 = vpop.permute.xlu0 %3664
        %3666 = vrot.lane.b32.xlu0 %v3605, 96
        %v3667 = vpop.permute.xlu0 %3666
        %3668 = vrot.lane.b32.xlu0 %v3610, 96
        %v3669 = vpop.permute.xlu0 %3668
        %3670 = vrot.lane.b32.xlu0 %v3613, 96
        %v3671 = vpop.permute.xlu0 %3670
        %3672 = vrot.lane.b32.xlu0 %v3618, 96
        %v3673 = vpop.permute.xlu0 %3672
        %3674 = vrot.lane.b32.xlu0 %v3621, 96
        %v3675 = vpop.permute.xlu0 %3674
        %3676 = vrot.lane.b32.xlu0 %v3626, 96
        %v3677 = vpop.permute.xlu0 %3676
        %3678 = vrot.lane.b32.xlu0 %v3629, 96
        %v3679 = vpop.permute.xlu0 %3678
        %v3696 = vadd.f32 %v3487, %v3649
        %v3697 = vadd.f32 %v3488, %v3651
        %v3698 = vadd.f32 %v3489, %v3653
        %v3699 = vadd.f32 %v3490, %v3655
        %v3700 = vadd.f32 %v3491, %v3657
        %v3701 = vadd.f32 %v3492, %v3659
        %v3702 = vadd.f32 %v3493, %v3661
        %v3703 = vadd.f32 %v3494, %v3663
        %v3704 = vadd.f32 %v3495, %v3665
        %v3705 = vadd.f32 %v3496, %v3667
        %v3706 = vadd.f32 %v3497, %v3669
        %v3707 = vadd.f32 %v3498, %v3671
        %v3708 = vadd.f32 %v3499, %v3673
        %v3709 = vadd.f32 %v3500, %v3675
        %v3710 = vadd.f32 %v3501, %v3677
        %v3711 = vadd.f32 %v3502, %v3679
        %vm3712 = vcmask 1048320
        %3713 = vst.msk [vmem:[#allocation4] sm:$0xff] %vm3712, %v3696
        %3714 = vst.msk [vmem:[#allocation4 + $0x8] sm:$0xff] %vm3712, %v3697
        %3715 = vst.msk [vmem:[#allocation4 + $0x10] sm:$0xff] %vm3712, %v3698
        %3716 = vst.msk [vmem:[#allocation4 + $0x18] sm:$0xff] %vm3712, %v3699
        %3717 = vst.msk [vmem:[#allocation4 + $0x20] sm:$0xff] %vm3712, %v3700
        %3718 = vst.msk [vmem:[#allocation4 + $0x28] sm:$0xff] %vm3712, %v3701
        %3719 = vst.msk [vmem:[#allocation4 + $0x30] sm:$0xff] %vm3712, %v3702
        %3720 = vst.msk [vmem:[#allocation4 + $0x38] sm:$0xff] %vm3712, %v3703
        %3721 = vst.msk [vmem:[#allocation4 + $0x40] sm:$0xff] %vm3712, %v3704
        %3722 = vst.msk [vmem:[#allocation4 + $0x48] sm:$0xff] %vm3712, %v3705
        %3723 = vst.msk [vmem:[#allocation4 + $0x50] sm:$0xff] %vm3712, %v3706
        %3724 = vst.msk [vmem:[#allocation4 + $0x58] sm:$0xff] %vm3712, %v3707
        %3725 = vst.msk [vmem:[#allocation4 + $0x60] sm:$0xff] %vm3712, %v3708
        %3726 = vst.msk [vmem:[#allocation4 + $0x68] sm:$0xff] %vm3712, %v3709
        %3727 = vst.msk [vmem:[#allocation4 + $0x70] sm:$0xff] %vm3712, %v3710
        %3728 = vst.msk [vmem:[#allocation4 + $0x78] sm:$0xff] %vm3712, %v3711
        %3729 = vst.msk [vmem:[#allocation2] sm:$0xff] %vm3374, %v3102
        %3730 = vst.msk [vmem:[#allocation2 + $0x8] sm:$0xff] %vm3374, %v3103
        %3731 = vst.msk [vmem:[#allocation2 + $0x10] sm:$0xff] %vm3374, %v3104
        %3732 = vst.msk [vmem:[#allocation2 + $0x18] sm:$0xff] %vm3374, %v3105
        %3733 = vst.msk [vmem:[#allocation2 + $0x20] sm:$0xff] %vm3374, %v3106
        %3734 = vst.msk [vmem:[#allocation2 + $0x28] sm:$0xff] %vm3374, %v3107
        %3735 = vst.msk [vmem:[#allocation2 + $0x30] sm:$0xff] %vm3374, %v3108
        %3736 = vst.msk [vmem:[#allocation2 + $0x38] sm:$0xff] %vm3374, %v3109
        %3737 = vst.msk [vmem:[#allocation2 + $0x40] sm:$0xff] %vm3374, %v3110
        %3738 = vst.msk [vmem:[#allocation2 + $0x48] sm:$0xff] %vm3374, %v3111
        %3739 = vst.msk [vmem:[#allocation2 + $0x50] sm:$0xff] %vm3374, %v3112
        %3740 = vst.msk [vmem:[#allocation2 + $0x58] sm:$0xff] %vm3374, %v3113
        %3741 = vst.msk [vmem:[#allocation2 + $0x60] sm:$0xff] %vm3374, %v3114
        %3742 = vst.msk [vmem:[#allocation2 + $0x68] sm:$0xff] %vm3374, %v3115
        %3743 = vst.msk [vmem:[#allocation2 + $0x70] sm:$0xff] %vm3374, %v3116
        %3744 = vst.msk [vmem:[#allocation2 + $0x78] sm:$0xff] %vm3374, %v3117
        %p3745 = scmp.eq.s32.totalorder %s23, 1
        // Predicated region
        $region79: #{tpu_custom_call.1} parent=69 // pred_check
          %p3746 = pneg %p3745
        $region80: #{tpu_custom_call.1} parent=69 // pred_check_branch
          %3748 = sbr.rel (%p3746) target = $region82
        $region81: #{tpu_custom_call.1} parent=69 // pred_region
          %v3749 = vld [vmem:[#allocation3] sm:$0xff]
          %v3750 = vld [vmem:[#allocation3 + $0x8] sm:$0xff]
          %v3751 = vld [vmem:[#allocation3 + $0x10] sm:$0xff]
          %v3752 = vld [vmem:[#allocation3 + $0x18] sm:$0xff]
          %v3753 = vld [vmem:[#allocation3 + $0x20] sm:$0xff]
          %v3754 = vld [vmem:[#allocation3 + $0x28] sm:$0xff]
          %v3755 = vld [vmem:[#allocation3 + $0x30] sm:$0xff]
          %v3756 = vld [vmem:[#allocation3 + $0x38] sm:$0xff]
          %v3757 = vld [vmem:[#allocation3 + $0x40] sm:$0xff]
          %v3758 = vld [vmem:[#allocation3 + $0x48] sm:$0xff]
          %v3759 = vld [vmem:[#allocation3 + $0x50] sm:$0xff]
          %v3760 = vld [vmem:[#allocation3 + $0x58] sm:$0xff]
          %v3761 = vld [vmem:[#allocation3 + $0x60] sm:$0xff]
          %v3762 = vld [vmem:[#allocation3 + $0x68] sm:$0xff]
          %v3763 = vld [vmem:[#allocation3 + $0x70] sm:$0xff]
          %v3764 = vld [vmem:[#allocation3 + $0x78] sm:$0xff]
          %v3765 = vmax.f32 %v3749, 1e-30
          %v3766 = vmax.f32 %v3750, 1e-30
          %v3767 = vmax.f32 %v3751, 1e-30
          %v3768 = vmax.f32 %v3752, 1e-30
          %v3769 = vmax.f32 %v3753, 1e-30
          %v3770 = vmax.f32 %v3754, 1e-30
          %v3771 = vmax.f32 %v3755, 1e-30
          %v3772 = vmax.f32 %v3756, 1e-30
          %v3773 = vmax.f32 %v3757, 1e-30
          %v3774 = vmax.f32 %v3758, 1e-30
          %v3775 = vmax.f32 %v3759, 1e-30
          %v3776 = vmax.f32 %v3760, 1e-30
          %v3777 = vmax.f32 %v3761, 1e-30
          %v3778 = vmax.f32 %v3762, 1e-30
          %v3779 = vmax.f32 %v3763, 1e-30
          %v3780 = vmax.f32 %v3764, 1e-30
          %v3781 = vrcp.pop %v3765
          %v3782 = vrcp.pop %v3766
          %v3783 = vrcp.pop %v3767
          %v3784 = vrcp.pop %v3768
          %v3785 = vrcp.pop %v3769
          %v3786 = vrcp.pop %v3770
          %v3787 = vrcp.pop %v3771
          %v3788 = vrcp.pop %v3772
          %v3789 = vrcp.pop %v3773
          %v3790 = vrcp.pop %v3774
          %v3791 = vrcp.pop %v3775
          %v3792 = vrcp.pop %v3776
          %v3793 = vrcp.pop %v3777
          %v3794 = vrcp.pop %v3778
          %v3795 = vrcp.pop %v3779
          %v3796 = vrcp.pop %v3780
          %v3797 = vld [vmem:[#allocation4] sm:$0xff]
          %v3798 = vld [vmem:[#allocation4 + $0x8] sm:$0xff]
          %v3799 = vld [vmem:[#allocation4 + $0x10] sm:$0xff]
          %v3800 = vld [vmem:[#allocation4 + $0x18] sm:$0xff]
          %v3801 = vld [vmem:[#allocation4 + $0x20] sm:$0xff]
          %v3802 = vld [vmem:[#allocation4 + $0x28] sm:$0xff]
          %v3803 = vld [vmem:[#allocation4 + $0x30] sm:$0xff]
          %v3804 = vld [vmem:[#allocation4 + $0x38] sm:$0xff]
          %v3805 = vld [vmem:[#allocation4 + $0x40] sm:$0xff]
          %v3806 = vld [vmem:[#allocation4 + $0x48] sm:$0xff]
          %v3807 = vld [vmem:[#allocation4 + $0x50] sm:$0xff]
          %v3808 = vld [vmem:[#allocation4 + $0x58] sm:$0xff]
          %v3809 = vld [vmem:[#allocation4 + $0x60] sm:$0xff]
          %v3810 = vld [vmem:[#allocation4 + $0x68] sm:$0xff]
          %v3811 = vld [vmem:[#allocation4 + $0x70] sm:$0xff]
          %v3812 = vld [vmem:[#allocation4 + $0x78] sm:$0xff]
          %3814 = vset.pattern.permute.xlu0 0
          %3815 = vperm.xlu0 %3814, %v3781
          %v3816 = vpop.permute.xlu0 %3815
          %3819 = vset.pattern.permute.xlu0 0
          %3820 = vperm.xlu0 %3819, %v3782
          %v3821 = vpop.permute.xlu0 %3820
          %3824 = vset.pattern.permute.xlu0 0
          %3825 = vperm.xlu0 %3824, %v3783
          %v3826 = vpop.permute.xlu0 %3825
          %3829 = vset.pattern.permute.xlu0 0
          %3830 = vperm.xlu0 %3829, %v3784
          %v3831 = vpop.permute.xlu0 %3830
          %3834 = vset.pattern.permute.xlu0 0
          %3835 = vperm.xlu0 %3834, %v3785
          %v3836 = vpop.permute.xlu0 %3835
          %3839 = vset.pattern.permute.xlu0 0
          %3840 = vperm.xlu0 %3839, %v3786
          %v3841 = vpop.permute.xlu0 %3840
          %3844 = vset.pattern.permute.xlu0 0
          %3845 = vperm.xlu0 %3844, %v3787
          %v3846 = vpop.permute.xlu0 %3845
          %3849 = vset.pattern.permute.xlu0 0
          %3850 = vperm.xlu0 %3849, %v3788
          %v3851 = vpop.permute.xlu0 %3850
          %3854 = vset.pattern.permute.xlu0 0
          %3855 = vperm.xlu0 %3854, %v3789
          %v3856 = vpop.permute.xlu0 %3855
          %3859 = vset.pattern.permute.xlu0 0
          %3860 = vperm.xlu0 %3859, %v3790
          %v3861 = vpop.permute.xlu0 %3860
          %3864 = vset.pattern.permute.xlu0 0
          %3865 = vperm.xlu0 %3864, %v3791
          %v3866 = vpop.permute.xlu0 %3865
          %3869 = vset.pattern.permute.xlu0 0
          %3870 = vperm.xlu0 %3869, %v3792
          %v3871 = vpop.permute.xlu0 %3870
          %3874 = vset.pattern.permute.xlu0 0
          %3875 = vperm.xlu0 %3874, %v3793
          %v3876 = vpop.permute.xlu0 %3875
          %3879 = vset.pattern.permute.xlu0 0
          %3880 = vperm.xlu0 %3879, %v3794
          %v3881 = vpop.permute.xlu0 %3880
          %3884 = vset.pattern.permute.xlu0 0
          %3885 = vperm.xlu0 %3884, %v3795
          %v3886 = vpop.permute.xlu0 %3885
          %3889 = vset.pattern.permute.xlu0 0
          %3890 = vperm.xlu0 %3889, %v3796
          %v3891 = vpop.permute.xlu0 %3890
          %v3893 = vmul.f32 %v3797, %v3816
          %v3894 = vmul.f32 %v3798, %v3821
          %v3895 = vmul.f32 %v3799, %v3826
          %v3896 = vmul.f32 %v3800, %v3831
          %v3897 = vmul.f32 %v3801, %v3836
          %v3898 = vmul.f32 %v3802, %v3841
          %v3899 = vmul.f32 %v3803, %v3846
          %v3900 = vmul.f32 %v3804, %v3851
          %v3901 = vmul.f32 %v3805, %v3856
          %v3902 = vmul.f32 %v3806, %v3861
          %v3903 = vmul.f32 %v3807, %v3866
          %v3904 = vmul.f32 %v3808, %v3871
          %v3905 = vmul.f32 %v3809, %v3876
          %v3906 = vmul.f32 %v3810, %v3881
          %v3907 = vmul.f32 %v3811, %v3886
          %v3908 = vmul.f32 %v3812, %v3891
          %3909 = vst.msk [vmem:[%s303] sm:$0xff] %vm1243, %v3893
          %3910 = vst.msk [vmem:[%s303 + $0x8] sm:$0xff] %vm1243, %v3894
          %3911 = vst.msk [vmem:[%s303 + $0x10] sm:$0xff] %vm1243, %v3895
          %3912 = vst.msk [vmem:[%s303 + $0x18] sm:$0xff] %vm1243, %v3896
          %3913 = vst.msk [vmem:[%s303 + $0x20] sm:$0xff] %vm1243, %v3897
          %3914 = vst.msk [vmem:[%s303 + $0x28] sm:$0xff] %vm1243, %v3898
          %3915 = vst.msk [vmem:[%s303 + $0x30] sm:$0xff] %vm1243, %v3899
          %3916 = vst.msk [vmem:[%s303 + $0x38] sm:$0xff] %vm1243, %v3900
          %3917 = vst.msk [vmem:[%s303 + $0x40] sm:$0xff] %vm1243, %v3901
          %3918 = vst.msk [vmem:[%s303 + $0x48] sm:$0xff] %vm1243, %v3902
          %3919 = vst.msk [vmem:[%s303 + $0x50] sm:$0xff] %vm1243, %v3903
          %3920 = vst.msk [vmem:[%s303 + $0x58] sm:$0xff] %vm1243, %v3904
          %3921 = vst.msk [vmem:[%s303 + $0x60] sm:$0xff] %vm1243, %v3905
          %3922 = vst.msk [vmem:[%s303 + $0x68] sm:$0xff] %vm1243, %v3906
          %3923 = vst.msk [vmem:[%s303 + $0x70] sm:$0xff] %vm1243, %v3907
          %3924 = vst.msk [vmem:[%s303 + $0x78] sm:$0xff] %vm1243, %v3908
          %v3925 = vld [vmem:[#allocation4] sm:$0xff]
          %v3926 = vld [vmem:[#allocation4 + $0x8] sm:$0xff]
          %v3927 = vld [vmem:[#allocation4 + $0x10] sm:$0xff]
          %v3928 = vld [vmem:[#allocation4 + $0x18] sm:$0xff]
          %v3929 = vld [vmem:[#allocation4 + $0x20] sm:$0xff]
          %v3930 = vld [vmem:[#allocation4 + $0x28] sm:$0xff]
          %v3931 = vld [vmem:[#allocation4 + $0x30] sm:$0xff]
          %v3932 = vld [vmem:[#allocation4 + $0x38] sm:$0xff]
          %v3933 = vld [vmem:[#allocation4 + $0x40] sm:$0xff]
          %v3934 = vld [vmem:[#allocation4 + $0x48] sm:$0xff]
          %v3935 = vld [vmem:[#allocation4 + $0x50] sm:$0xff]
          %v3936 = vld [vmem:[#allocation4 + $0x58] sm:$0xff]
          %v3937 = vld [vmem:[#allocation4 + $0x60] sm:$0xff]
          %v3938 = vld [vmem:[#allocation4 + $0x68] sm:$0xff]
          %v3939 = vld [vmem:[#allocation4 + $0x70] sm:$0xff]
          %v3940 = vld [vmem:[#allocation4 + $0x78] sm:$0xff]
          %3941 = vset.pattern.permute.xlu0 1
          %3942 = vperm.xlu0 %3941, %v3781
          %v3943 = vpop.permute.xlu0 %3942
          %3945 = vset.pattern.permute.xlu0 1
          %3946 = vperm.xlu0 %3945, %v3782
          %v3947 = vpop.permute.xlu0 %3946
          %3949 = vset.pattern.permute.xlu0 1
          %3950 = vperm.xlu0 %3949, %v3783
          %v3951 = vpop.permute.xlu0 %3950
          %3953 = vset.pattern.permute.xlu0 1
          %3954 = vperm.xlu0 %3953, %v3784
          %v3955 = vpop.permute.xlu0 %3954
          %3957 = vset.pattern.permute.xlu0 1
          %3958 = vperm.xlu0 %3957, %v3785
          %v3959 = vpop.permute.xlu0 %3958
          %3961 = vset.pattern.permute.xlu0 1
          %3962 = vperm.xlu0 %3961, %v3786
          %v3963 = vpop.permute.xlu0 %3962
          %3965 = vset.pattern.permute.xlu0 1
          %3966 = vperm.xlu0 %3965, %v3787
          %v3967 = vpop.permute.xlu0 %3966
          %3969 = vset.pattern.permute.xlu0 1
          %3970 = vperm.xlu0 %3969, %v3788
          %v3971 = vpop.permute.xlu0 %3970
          %3973 = vset.pattern.permute.xlu0 1
          %3974 = vperm.xlu0 %3973, %v3789
          %v3975 = vpop.permute.xlu0 %3974
          %3977 = vset.pattern.permute.xlu0 1
          %3978 = vperm.xlu0 %3977, %v3790
          %v3979 = vpop.permute.xlu0 %3978
          %3981 = vset.pattern.permute.xlu0 1
          %3982 = vperm.xlu0 %3981, %v3791
          %v3983 = vpop.permute.xlu0 %3982
          %3985 = vset.pattern.permute.xlu0 1
          %3986 = vperm.xlu0 %3985, %v3792
          %v3987 = vpop.permute.xlu0 %3986
          %3989 = vset.pattern.permute.xlu0 1
          %3990 = vperm.xlu0 %3989, %v3793
          %v3991 = vpop.permute.xlu0 %3990
          %3993 = vset.pattern.permute.xlu0 1
          %3994 = vperm.xlu0 %3993, %v3794
          %v3995 = vpop.permute.xlu0 %3994
          %3997 = vset.pattern.permute.xlu0 1
          %3998 = vperm.xlu0 %3997, %v3795
          %v3999 = vpop.permute.xlu0 %3998
          %4001 = vset.pattern.permute.xlu0 1
          %4002 = vperm.xlu0 %4001, %v3796
          %v4003 = vpop.permute.xlu0 %4002
          %v4005 = vmul.f32 %v3925, %v3943
          %v4006 = vmul.f32 %v3926, %v3947
          %v4007 = vmul.f32 %v3927, %v3951
          %v4008 = vmul.f32 %v3928, %v3955
          %v4009 = vmul.f32 %v3929, %v3959
          %v4010 = vmul.f32 %v3930, %v3963
          %v4011 = vmul.f32 %v3931, %v3967
          %v4012 = vmul.f32 %v3932, %v3971
          %v4013 = vmul.f32 %v3933, %v3975
          %v4014 = vmul.f32 %v3934, %v3979
          %v4015 = vmul.f32 %v3935, %v3983
          %v4016 = vmul.f32 %v3936, %v3987
          %v4017 = vmul.f32 %v3937, %v3991
          %v4018 = vmul.f32 %v3938, %v3995
          %v4019 = vmul.f32 %v3939, %v3999
          %v4020 = vmul.f32 %v3940, %v4003
          %4021 = vst.msk [vmem:[%s303] sm:$0xff] %vm2066, %v4005
          %4022 = vst.msk [vmem:[%s303 + $0x8] sm:$0xff] %vm2066, %v4006
          %4023 = vst.msk [vmem:[%s303 + $0x10] sm:$0xff] %vm2066, %v4007
          %4024 = vst.msk [vmem:[%s303 + $0x18] sm:$0xff] %vm2066, %v4008
          %4025 = vst.msk [vmem:[%s303 + $0x20] sm:$0xff] %vm2066, %v4009
          %4026 = vst.msk [vmem:[%s303 + $0x28] sm:$0xff] %vm2066, %v4010
          %4027 = vst.msk [vmem:[%s303 + $0x30] sm:$0xff] %vm2066, %v4011
          %4028 = vst.msk [vmem:[%s303 + $0x38] sm:$0xff] %vm2066, %v4012
          %4029 = vst.msk [vmem:[%s303 + $0x40] sm:$0xff] %vm2066, %v4013
          %4030 = vst.msk [vmem:[%s303 + $0x48] sm:$0xff] %vm2066, %v4014
          %4031 = vst.msk [vmem:[%s303 + $0x50] sm:$0xff] %vm2066, %v4015
          %4032 = vst.msk [vmem:[%s303 + $0x58] sm:$0xff] %vm2066, %v4016
          %4033 = vst.msk [vmem:[%s303 + $0x60] sm:$0xff] %vm2066, %v4017
          %4034 = vst.msk [vmem:[%s303 + $0x68] sm:$0xff] %vm2066, %v4018
          %4035 = vst.msk [vmem:[%s303 + $0x70] sm:$0xff] %vm2066, %v4019
          %4036 = vst.msk [vmem:[%s303 + $0x78] sm:$0xff] %vm2066, %v4020
          %v4037 = vld [vmem:[#allocation4] sm:$0xff]
          %v4038 = vld [vmem:[#allocation4 + $0x8] sm:$0xff]
          %v4039 = vld [vmem:[#allocation4 + $0x10] sm:$0xff]
          %v4040 = vld [vmem:[#allocation4 + $0x18] sm:$0xff]
          %v4041 = vld [vmem:[#allocation4 + $0x20] sm:$0xff]
          %v4042 = vld [vmem:[#allocation4 + $0x28] sm:$0xff]
          %v4043 = vld [vmem:[#allocation4 + $0x30] sm:$0xff]
          %v4044 = vld [vmem:[#allocation4 + $0x38] sm:$0xff]
          %v4045 = vld [vmem:[#allocation4 + $0x40] sm:$0xff]
          %v4046 = vld [vmem:[#allocation4 + $0x48] sm:$0xff]
          %v4047 = vld [vmem:[#allocation4 + $0x50] sm:$0xff]
          %v4048 = vld [vmem:[#allocation4 + $0x58] sm:$0xff]
          %v4049 = vld [vmem:[#allocation4 + $0x60] sm:$0xff]
          %v4050 = vld [vmem:[#allocation4 + $0x68] sm:$0xff]
          %v4051 = vld [vmem:[#allocation4 + $0x70] sm:$0xff]
          %v4052 = vld [vmem:[#allocation4 + $0x78] sm:$0xff]
          %4053 = vset.pattern.permute.xlu0 2
          %4054 = vperm.xlu0 %4053, %v3781
          %v4055 = vpop.permute.xlu0 %4054
          %4057 = vset.pattern.permute.xlu0 2
          %4058 = vperm.xlu0 %4057, %v3782
          %v4059 = vpop.permute.xlu0 %4058
          %4061 = vset.pattern.permute.xlu0 2
          %4062 = vperm.xlu0 %4061, %v3783
          %v4063 = vpop.permute.xlu0 %4062
          %4065 = vset.pattern.permute.xlu0 2
          %4066 = vperm.xlu0 %4065, %v3784
          %v4067 = vpop.permute.xlu0 %4066
          %4069 = vset.pattern.permute.xlu0 2
          %4070 = vperm.xlu0 %4069, %v3785
          %v4071 = vpop.permute.xlu0 %4070
          %4073 = vset.pattern.permute.xlu0 2
          %4074 = vperm.xlu0 %4073, %v3786
          %v4075 = vpop.permute.xlu0 %4074
          %4077 = vset.pattern.permute.xlu0 2
          %4078 = vperm.xlu0 %4077, %v3787
          %v4079 = vpop.permute.xlu0 %4078
          %4081 = vset.pattern.permute.xlu0 2
          %4082 = vperm.xlu0 %4081, %v3788
          %v4083 = vpop.permute.xlu0 %4082
          %4085 = vset.pattern.permute.xlu0 2
          %4086 = vperm.xlu0 %4085, %v3789
          %v4087 = vpop.permute.xlu0 %4086
          %4089 = vset.pattern.permute.xlu0 2
          %4090 = vperm.xlu0 %4089, %v3790
          %v4091 = vpop.permute.xlu0 %4090
          %4093 = vset.pattern.permute.xlu0 2
          %4094 = vperm.xlu0 %4093, %v3791
          %v4095 = vpop.permute.xlu0 %4094
          %4097 = vset.pattern.permute.xlu0 2
          %4098 = vperm.xlu0 %4097, %v3792
          %v4099 = vpop.permute.xlu0 %4098
          %4101 = vset.pattern.permute.xlu0 2
          %4102 = vperm.xlu0 %4101, %v3793
          %v4103 = vpop.permute.xlu0 %4102
          %4105 = vset.pattern.permute.xlu0 2
          %4106 = vperm.xlu0 %4105, %v3794
          %v4107 = vpop.permute.xlu0 %4106
          %4109 = vset.pattern.permute.xlu0 2
          %4110 = vperm.xlu0 %4109, %v3795
          %v4111 = vpop.permute.xlu0 %4110
          %4113 = vset.pattern.permute.xlu0 2
          %4114 = vperm.xlu0 %4113, %v3796
          %v4115 = vpop.permute.xlu0 %4114
          %v4117 = vmul.f32 %v4037, %v4055
          %v4118 = vmul.f32 %v4038, %v4059
          %v4119 = vmul.f32 %v4039, %v4063
          %v4120 = vmul.f32 %v4040, %v4067
          %v4121 = vmul.f32 %v4041, %v4071
          %v4122 = vmul.f32 %v4042, %v4075
          %v4123 = vmul.f32 %v4043, %v4079
          %v4124 = vmul.f32 %v4044, %v4083
          %v4125 = vmul.f32 %v4045, %v4087
          %v4126 = vmul.f32 %v4046, %v4091
          %v4127 = vmul.f32 %v4047, %v4095
          %v4128 = vmul.f32 %v4048, %v4099
          %v4129 = vmul.f32 %v4049, %v4103
          %v4130 = vmul.f32 %v4050, %v4107
          %v4131 = vmul.f32 %v4051, %v4111
          %v4132 = vmul.f32 %v4052, %v4115
          %4133 = vst.msk [vmem:[%s303] sm:$0xff] %vm2889, %v4117
          %4134 = vst.msk [vmem:[%s303 + $0x8] sm:$0xff] %vm2889, %v4118
          %4135 = vst.msk [vmem:[%s303 + $0x10] sm:$0xff] %vm2889, %v4119
          %4136 = vst.msk [vmem:[%s303 + $0x18] sm:$0xff] %vm2889, %v4120
          %4137 = vst.msk [vmem:[%s303 + $0x20] sm:$0xff] %vm2889, %v4121
          %4138 = vst.msk [vmem:[%s303 + $0x28] sm:$0xff] %vm2889, %v4122
          %4139 = vst.msk [vmem:[%s303 + $0x30] sm:$0xff] %vm2889, %v4123
          %4140 = vst.msk [vmem:[%s303 + $0x38] sm:$0xff] %vm2889, %v4124
          %4141 = vst.msk [vmem:[%s303 + $0x40] sm:$0xff] %vm2889, %v4125
          %4142 = vst.msk [vmem:[%s303 + $0x48] sm:$0xff] %vm2889, %v4126
          %4143 = vst.msk [vmem:[%s303 + $0x50] sm:$0xff] %vm2889, %v4127
          %4144 = vst.msk [vmem:[%s303 + $0x58] sm:$0xff] %vm2889, %v4128
          %4145 = vst.msk [vmem:[%s303 + $0x60] sm:$0xff] %vm2889, %v4129
          %4146 = vst.msk [vmem:[%s303 + $0x68] sm:$0xff] %vm2889, %v4130
          %4147 = vst.msk [vmem:[%s303 + $0x70] sm:$0xff] %vm2889, %v4131
          %4148 = vst.msk [vmem:[%s303 + $0x78] sm:$0xff] %vm2889, %v4132
          %v4149 = vld [vmem:[#allocation4] sm:$0xff]
          %v4150 = vld [vmem:[#allocation4 + $0x8] sm:$0xff]
          %v4151 = vld [vmem:[#allocation4 + $0x10] sm:$0xff]
          %v4152 = vld [vmem:[#allocation4 + $0x18] sm:$0xff]
          %v4153 = vld [vmem:[#allocation4 + $0x20] sm:$0xff]
          %v4154 = vld [vmem:[#allocation4 + $0x28] sm:$0xff]
          %v4155 = vld [vmem:[#allocation4 + $0x30] sm:$0xff]
          %v4156 = vld [vmem:[#allocation4 + $0x38] sm:$0xff]
          %v4157 = vld [vmem:[#allocation4 + $0x40] sm:$0xff]
          %v4158 = vld [vmem:[#allocation4 + $0x48] sm:$0xff]
          %v4159 = vld [vmem:[#allocation4 + $0x50] sm:$0xff]
          %v4160 = vld [vmem:[#allocation4 + $0x58] sm:$0xff]
          %v4161 = vld [vmem:[#allocation4 + $0x60] sm:$0xff]
          %v4162 = vld [vmem:[#allocation4 + $0x68] sm:$0xff]
          %v4163 = vld [vmem:[#allocation4 + $0x70] sm:$0xff]
          %v4164 = vld [vmem:[#allocation4 + $0x78] sm:$0xff]
          %4165 = vset.pattern.permute.xlu0 3
          %4166 = vperm.xlu0 %4165, %v3781
          %v4167 = vpop.permute.xlu0 %4166
          %4169 = vset.pattern.permute.xlu0 3
          %4170 = vperm.xlu0 %4169, %v3782
          %v4171 = vpop.permute.xlu0 %4170
          %4173 = vset.pattern.permute.xlu0 3
          %4174 = vperm.xlu0 %4173, %v3783
          %v4175 = vpop.permute.xlu0 %4174
          %4177 = vset.pattern.permute.xlu0 3
          %4178 = vperm.xlu0 %4177, %v3784
          %v4179 = vpop.permute.xlu0 %4178
          %4181 = vset.pattern.permute.xlu0 3
          %4182 = vperm.xlu0 %4181, %v3785
          %v4183 = vpop.permute.xlu0 %4182
          %4185 = vset.pattern.permute.xlu0 3
          %4186 = vperm.xlu0 %4185, %v3786
          %v4187 = vpop.permute.xlu0 %4186
          %4189 = vset.pattern.permute.xlu0 3
          %4190 = vperm.xlu0 %4189, %v3787
          %v4191 = vpop.permute.xlu0 %4190
          %4193 = vset.pattern.permute.xlu0 3
          %4194 = vperm.xlu0 %4193, %v3788
          %v4195 = vpop.permute.xlu0 %4194
          %4197 = vset.pattern.permute.xlu0 3
          %4198 = vperm.xlu0 %4197, %v3789
          %v4199 = vpop.permute.xlu0 %4198
          %4201 = vset.pattern.permute.xlu0 3
          %4202 = vperm.xlu0 %4201, %v3790
          %v4203 = vpop.permute.xlu0 %4202
          %4205 = vset.pattern.permute.xlu0 3
          %4206 = vperm.xlu0 %4205, %v3791
          %v4207 = vpop.permute.xlu0 %4206
          %4209 = vset.pattern.permute.xlu0 3
          %4210 = vperm.xlu0 %4209, %v3792
          %v4211 = vpop.permute.xlu0 %4210
          %4213 = vset.pattern.permute.xlu0 3
          %4214 = vperm.xlu0 %4213, %v3793
          %v4215 = vpop.permute.xlu0 %4214
          %4217 = vset.pattern.permute.xlu0 3
          %4218 = vperm.xlu0 %4217, %v3794
          %v4219 = vpop.permute.xlu0 %4218
          %4221 = vset.pattern.permute.xlu0 3
          %4222 = vperm.xlu0 %4221, %v3795
          %v4223 = vpop.permute.xlu0 %4222
          %4225 = vset.pattern.permute.xlu0 3
          %4226 = vperm.xlu0 %4225, %v3796
          %v4227 = vpop.permute.xlu0 %4226
          %v4229 = vmul.f32 %v4149, %v4167
          %v4230 = vmul.f32 %v4150, %v4171
          %v4231 = vmul.f32 %v4151, %v4175
          %v4232 = vmul.f32 %v4152, %v4179
          %v4233 = vmul.f32 %v4153, %v4183
          %v4234 = vmul.f32 %v4154, %v4187
          %v4235 = vmul.f32 %v4155, %v4191
          %v4236 = vmul.f32 %v4156, %v4195
          %v4237 = vmul.f32 %v4157, %v4199
          %v4238 = vmul.f32 %v4158, %v4203
          %v4239 = vmul.f32 %v4159, %v4207
          %v4240 = vmul.f32 %v4160, %v4211
          %v4241 = vmul.f32 %v4161, %v4215
          %v4242 = vmul.f32 %v4162, %v4219
          %v4243 = vmul.f32 %v4163, %v4223
          %v4244 = vmul.f32 %v4164, %v4227
          %4245 = vst.msk [vmem:[%s303] sm:$0xff] %vm3712, %v4229
          %4246 = vst.msk [vmem:[%s303 + $0x8] sm:$0xff] %vm3712, %v4230
          %4247 = vst.msk [vmem:[%s303 + $0x10] sm:$0xff] %vm3712, %v4231
          %4248 = vst.msk [vmem:[%s303 + $0x18] sm:$0xff] %vm3712, %v4232
          %4249 = vst.msk [vmem:[%s303 + $0x20] sm:$0xff] %vm3712, %v4233
          %4250 = vst.msk [vmem:[%s303 + $0x28] sm:$0xff] %vm3712, %v4234
          %4251 = vst.msk [vmem:[%s303 + $0x30] sm:$0xff] %vm3712, %v4235
          %4252 = vst.msk [vmem:[%s303 + $0x38] sm:$0xff] %vm3712, %v4236
          %4253 = vst.msk [vmem:[%s303 + $0x40] sm:$0xff] %vm3712, %v4237
          %4254 = vst.msk [vmem:[%s303 + $0x48] sm:$0xff] %vm3712, %v4238
          %4255 = vst.msk [vmem:[%s303 + $0x50] sm:$0xff] %vm3712, %v4239
          %4256 = vst.msk [vmem:[%s303 + $0x58] sm:$0xff] %vm3712, %v4240
          %4257 = vst.msk [vmem:[%s303 + $0x60] sm:$0xff] %vm3712, %v4241
          %4258 = vst.msk [vmem:[%s303 + $0x68] sm:$0xff] %vm3712, %v4242
          %4259 = vst.msk [vmem:[%s303 + $0x70] sm:$0xff] %vm3712, %v4243
          %4260 = vst.msk [vmem:[%s303 + $0x78] sm:$0xff] %vm3712, %v4244
        $region82: #{tpu_custom_call.1} parent=69 // pred_fallthru
          _
        %s4261 = sand.u32 %s144, 1
        %s4262 = scalar_lea.sflag [#allocation7], %s4261
        %s4263 = sand.u32 %s144, 1
        %s4264 = smul.addr %s4263, 128
        %s4265 = scalar_lea.vmem [#allocation6], %s4264
        // Predicated region
        $region83: #{tpu_custom_call.1} parent=69 // pred_check
          %p4266 = pneg %p154
        $region84: #{tpu_custom_call.1} parent=69 // pred_check_branch
          %4268 = sbr.rel (%p4266) target = $region86
        $region85: #{tpu_custom_call.1} parent=69 // pred_region
          %s4269 = smul.u32 16, %s22
          %s4271 = ssub.s32 2048, 2048
          %4272 = vsyncadd %s4262, %s4271
          %s4273 = smul.addr %s4269, 128
          %s4274 = scalar_lea.hbm %s4, %s4273
          %s4275 = sshll.u32 %s4265, 4
          %s4276 = int_to_ptr.vmem [resolvable:$true] %s4275
          %4281 = dma.vmem_to_hbm [thread:$0]  %s4276, 2048, %s4274, %s4262, 128, 128, 8
        $region86: #{tpu_custom_call.1} parent=69 // pred_fallthru
          _
      $region70: #{tpu_custom_call.1} parent=5 // pred_fallthru
        _
      %p4282 = scmp.le.s32.totalorder 2, %s13
      // Predicated region
      $region87: #{tpu_custom_call.1} parent=5 // pred_check
        %p4283 = pneg %p4282
      $region88: #{tpu_custom_call.1} parent=5 // pred_check_branch
        %4285 = sbr.rel (%p4283) target = $region90
      $region89: #{tpu_custom_call.1} parent=5 // pred_region
        %s4286 = ssub.s32 %s13, 2
        // Predicated region
        $region91: #{tpu_custom_call.1} parent=89 // pred_check
          %p4287 = pneg %p160
        $region92: #{tpu_custom_call.1} parent=89 // pred_check_branch
          %4289 = sbr.rel (%p4287) target = $region94
        $region93: #{tpu_custom_call.1} parent=89 // pred_region
          %s4290 = sand.u32 %s145, 1
          %s4291 = scalar_lea.sflag [#allocation7], %s4290
          %s4292 = sand.u32 %s145, 1
          %s4293 = smul.addr %s4292, 128
          %s4294 = scalar_lea.vmem [#allocation6], %s4293
          %4295 = dma.done %s4291, 2048
        $region94: #{tpu_custom_call.1} parent=89 // pred_fallthru
          _
      $region90: #{tpu_custom_call.1} parent=5 // pred_fallthru
        _
    $region6: #{tpu_custom_call.1} parent=1 // loop_footer
      %s17 = sadd.s32 1, %s13
    $region7: #{tpu_custom_call.1} parent=1 // loop_footer_branch
      %12 = sbr.rel target = $region3
    $region8: #{tpu_custom_call.1} parent=1 // loop_exit
      _
    %4296 = vsyncpa [#allocation7], 1
    %s4297 = scalar_lea.sflag [#allocation7], 1
    %4298 = vsyncpa %s4297, 1

</llo_original>
